<compile_context>
chip_gen: v6e
topology: v6e:2x2x1
jax: 0.10.0
libtpu: 0.0.40
codegen_flags: <defaults>
</compile_context>

<pallas_src>
import math

import jax
import jax.numpy as jnp
from jax.experimental import pallas as pl
from jax.experimental.pallas import tpu as pltpu

# Module-fixed hyper-parameters (from the PyTorch spec).
OC1 = 16      # conv1 out channels
OC2 = 16      # conv2 out channels
D_FC1 = 512   # fc1 width
K1, K2, POOL1 = 5, 3, 3   # conv1 kernel, conv2 kernel, maxpool1 kernel/stride


def _round_up(x, m):
    return -(-x // m) * m


def _derived_dims(input_size, action_size):
    C, H, W = input_size
    OH1, OW1 = H - K1 + 1, W - K1 + 1
    PH, PW = OH1 // POOL1, OW1 // POOL1
    OH2, OW2 = PH - K2 + 1, PW - K2 + 1
    NPOS = OH2 * OW2
    APAD = max(128, _round_up(action_size, 128))
    return dict(
        C=C, H=H, W=W, OH1=OH1, OW1=OW1, PH=PH, PW=PW, OH2=OH2, OW2=OW2,
        NPOS=NPOS, FC_IN=OC2 * NPOS, DCAT=D_FC1 + action_size,
        KP1=max(128, _round_up(K1 * K1 * C, 128)),
        APAD=APAD, CATP=D_FC1 + APAD,
        DPAD=_round_up(D_FC1 + action_size, 128),
        NOUT=max(128, _round_up(action_size, 128)),
    )


# ------------------------------ fused kernel --------------------------------

def _critic_kernel(
    # inputs
    patch_ref,   # (9*PH*PW*B, KP1)       f32  conv1 im2col rows, ordered (di, dj, ph, pw, b)
    act_ref,     # (B, APAD)              f32  zero-padded actions
    w1_ref,      # (KP1, OC1)             f32  conv1 weight, rows = (i, j, c), zero-padded
    b1_ref,      # (1, OC1)               f32
    w2_ref,      # (PH*PW*OC1, NPOS*OC2)  f32  block-expanded conv2 weight
    b2_ref,      # (1, NPOS*OC2)          f32  conv2 bias tiled per output position
    fc1w_ref,    # (NPOS*OC2, 512)        f32  rows ordered (pos, oc)
    fc1b_ref,    # (1, 512)               f32
    fc2w_ref,    # (CATP, DPAD)           bf16
    fc2b_ref,    # (1, DPAD)              f32
    fc3w_ref,    # (DPAD, DPAD)           bf16
    fc3b_ref,    # (1, DPAD)              f32
    foutw_ref,   # (DPAD, NOUT)           bf16
    foutb_ref,   # (1, NOUT)              f32
    # output
    out_ref,     # (B, NOUT)              f32  lane-dense Q slab (cols >= A are 0)
    # VMEM scratch
    flat_ref,    # (B, PH*PW*OC1)         flattened pooled map, lanes = (ph, pw, c)
    cat_ref,     # (B, CATP)              concat(h, actions)
):
    f32, bf16 = jnp.float32, jnp.bfloat16
    B, flat_w = flat_ref.shape
    oc1 = w1_ref.shape[1]
    npp = flat_w // oc1                  # PH * PW pooled positions
    npr = B * npp                        # rows per pooling tap
    ntaps = patch_ref.shape[0] // npr    # POOL1 * POOL1
    d1 = fc1b_ref.shape[1]

    # --- conv1 + bias + ReLU: ONE GEMM over every conv1 position feeding the pool ---
    y = jnp.dot(patch_ref[...], w1_ref[...], preferred_element_type=f32)
    y = jnp.maximum(y + b1_ref[...], 0.0)                     # (ntaps*npr, OC1)

    # --- maxpool1 (3x3, stride 3): rows are tap-major -> 8 VPU maxes over contiguous,
    #     tile-aligned slices.  maxpool2 has kernel 1 -> identity (skipped). ----------
    m = y[0:npr, :]
    for t in range(1, ntaps):
        m = jnp.maximum(m, y[t * npr:(t + 1) * npr, :])       # (npr, OC1), rows (ph, pw, b)

    # --- flatten pooled map to lane-dense (B, PH*PW*OC1), lanes ordered (ph, pw, c) --
    for q in range(npp):
        flat_ref[:, q * oc1:(q + 1) * oc1] = m[q * B:(q + 1) * B, :]

    # --- conv2 + bias + ReLU as ONE GEMM (block-expanded weight) ---------------------
    z = jnp.dot(flat_ref[...], w2_ref[...], preferred_element_type=f32)
    z = jnp.maximum(z + b2_ref[...], 0.0)                     # (B, NPOS*OC2), lanes (pos, oc)

    # --- fc1 + ReLU as ONE GEMM (fc1 weight rows match z's (pos, oc) lane order) -----
    h = jnp.dot(z, fc1w_ref[...], preferred_element_type=f32)
    h = jnp.maximum(h + fc1b_ref[...], 0.0)                   # (B, 512)

    # --- fc2 on concat(h, actions): lane concat (both boundaries 128-aligned) --------
    cat_ref[:, 0:d1] = h
    cat_ref[:, d1:] = act_ref[...]
    h2 = jnp.dot(cat_ref[...].astype(bf16), fc2w_ref[...],
                 preferred_element_type=f32) + fc2b_ref[...]
    h2 = jnp.maximum(h2, 0.0)                                 # (B, DPAD); pad lanes stay 0

    # --- fc3 ------------------------------------------------------------------------
    h3 = jnp.dot(h2.astype(bf16), fc3w_ref[...],
                 preferred_element_type=f32) + fc3b_ref[...]
    h3 = jnp.maximum(h3, 0.0)

    # --- f_out: one lane-dense (B, NOUT) slab ----------------------------------------
    out_ref[...] = jnp.dot(h3.astype(bf16), foutw_ref[...],
                           preferred_element_type=f32) + foutb_ref[...]


# --------------------------- parameter construction --------------------------

def init_params(key, input_size, action_size):
    """Weights pre-permuted / block-expanded / zero-padded into the kernel layout."""
    d = _derived_dims(input_size, action_size)
    C, A = d["C"], action_size

    def u(k, shape, fan_in):
        bound = 1.0 / math.sqrt(fan_in)
        return jax.random.uniform(k, shape, jnp.float32, -bound, bound)

    ks = jax.random.split(key, 13)

    # conv1: canonical HWIO kernel + packed im2col layout (rows ordered (i, j, c)).
    fan1 = C * K1 * K1
    conv1_k = u(ks[0], (K1, K1, C, OC1), fan1)
    conv1_w = jnp.zeros((d["KP1"], OC1), jnp.float32).at[:K1 * K1 * C].set(
        conv1_k.reshape(K1 * K1 * C, OC1))
    conv1_b = u(ks[1], (1, OC1), fan1)

    # conv2: canonical HWIO kernel + block-expanded (pooled-flat -> all positions).
    fan2 = OC1 * K2 * K2
    conv2_k = u(ks[2], (K2, K2, OC1, OC2), fan2)
    conv2_b = u(ks[3], (1, OC2), fan2)
    PH, PW, OH2, OW2, NPOS = d["PH"], d["PW"], d["OH2"], d["OW2"], d["NPOS"]
    w2big = jnp.zeros((PH * PW * OC1, NPOS * OC2), jnp.float32)
    for i2 in range(OH2):
        for j2 in range(OW2):
            p = i2 * OW2 + j2
            for di in range(K2):
                for dj in range(K2):
                    q = (i2 + di) * PW + (j2 + dj)
                    w2big = w2big.at[q * OC1:(q + 1) * OC1,
                                     p * OC2:(p + 1) * OC2].set(conv2_k[di, dj])
    conv2_bbig = jnp.tile(conv2_b, (1, NPOS))

    # fc1: rows ordered (pos=(i2, j2), oc) to match the kernel's conv2 output lanes.
    fc1_w = u(ks[4], (NPOS * OC2, D_FC1), d["FC_IN"])
    fc1_b = u(ks[5], (1, D_FC1), d["FC_IN"])

    DCAT, DPAD, CATP, NOUT = d["DCAT"], d["DPAD"], d["CATP"], d["NOUT"]
    fc2_w = jnp.zeros((CATP, DPAD), jnp.float32)
    fc2_w = fc2_w.at[:D_FC1, :DCAT].set(u(ks[6], (D_FC1, DCAT), DCAT))
    fc2_w = fc2_w.at[D_FC1:D_FC1 + A, :DCAT].set(u(ks[7], (A, DCAT), DCAT))
    fc2_b = jnp.zeros((1, DPAD), jnp.float32).at[:, :DCAT].set(u(ks[8], (1, DCAT), DCAT))

    fc3_w = jnp.zeros((DPAD, DPAD), jnp.float32).at[:DCAT, :DCAT].set(
        u(ks[9], (DCAT, DCAT), DCAT))
    fc3_b = jnp.zeros((1, DPAD), jnp.float32).at[:, :DCAT].set(u(ks[10], (1, DCAT), DCAT))

    fout_w = jnp.zeros((DPAD, NOUT), jnp.float32).at[:DCAT, :A].set(
        u(ks[11], (DCAT, A), DCAT))
    fout_b = jnp.zeros((1, NOUT), jnp.float32).at[:, :A].set(u(ks[12], (1, A), DCAT))

    return {
        "conv1_k": conv1_k, "conv1_w": conv1_w, "conv1_b": conv1_b,
        "conv2_k": conv2_k, "conv2_b": conv2_b,
        "conv2_wbig": w2big, "conv2_bbig": conv2_bbig,
        "fc1_w": fc1_w, "fc1_b": fc1_b,
        # The three big FC weights (~90% of parameter bytes) are stored bf16 to halve
        # the HBM->VMEM weight DMA; matmuls accumulate in f32.
        "fc2_w": fc2_w.astype(jnp.bfloat16), "fc2_b": fc2_b,
        "fc3_w": fc3_w.astype(jnp.bfloat16), "fc3_b": fc3_b,
        "fout_w": fout_w.astype(jnp.bfloat16), "fout_b": fout_b,
    }


# ---------------------------------- forward ----------------------------------

_VMEM = pl.BlockSpec(memory_space=pltpu.MemorySpace.VMEM)


@jax.jit
def critic_forward(params, state_nchw, actions):
    """state_nchw: (B, C, H, W) f32, actions: (B, A) f32 -> Q: (B, A) f32."""
    B, C, H, W = state_nchw.shape
    A = actions.shape[1]
    OH1, OW1 = H - K1 + 1, W - K1 + 1
    PH, PW = OH1 // POOL1, OW1 // POOL1
    OHU, OWU = POOL1 * PH, POOL1 * PW          # conv1 rows/cols that survive pooling
    KP1, oc1 = params["conv1_w"].shape
    APAD = params["fc2_w"].shape[0] - D_FC1
    NOUT = params["fout_b"].shape[1]
    KKC = K1 * K1 * C

    # TODO(synk): the 4 KB NCHW->NHWC transpose + the ~150 KB im2col stay as plain-JAX
    # glue; building the lane-dense patch matrix in XLA beats lane-sparse in-kernel
    # stores on every TPU generation.
    x = jnp.transpose(state_nchw.astype(jnp.float32), (0, 2, 3, 1))
    taps = [x[:, i:i + OHU, j:j + OWU, :] for i in range(K1) for j in range(K1)]
    pat = jnp.concatenate(taps, axis=-1)                   # (B, OHU, OWU, K1*K1*C)
    pat = pat.reshape(B, PH, POOL1, PW, POOL1, KKC)
    pat = pat.transpose(2, 4, 1, 3, 0, 5)                  # (di, dj, ph, pw, b, KKC)
    pat = pat.reshape(POOL1 * POOL1 * PH * PW * B, KKC)
    pat = jnp.pad(pat, ((0, 0), (0, KP1 - KKC)))
    a_pad = jnp.pad(actions.astype(jnp.float32), ((0, 0), (0, APAD - A)))

    q_pad = pl.pallas_call(
        _critic_kernel,
        out_shape=jax.ShapeDtypeStruct((B, NOUT), jnp.float32),
        in_specs=[_VMEM] * 14,
        out_specs=_VMEM,
        scratch_shapes=[
            pltpu.VMEM((B, PH * PW * oc1), jnp.float32),   # flattened pooled map
            pltpu.VMEM((B, D_FC1 + APAD), jnp.float32),    # concat(h, actions)
        ],
        compiler_params=pltpu.CompilerParams(vmem_limit_bytes=32 * 1024 * 1024),
    )(
        pat, a_pad,
        params["conv1_w"], params["conv1_b"],
        params["conv2_wbig"], params["conv2_bbig"],
        params["fc1_w"], params["fc1_b"],
        params["fc2_w"], params["fc2_b"],
        params["fc3_w"], params["fc3_b"],
        params["fout_w"], params["fout_b"],
    )
    # TODO(synk): for production batches / v7x dual-TC, tile the batch with a grid
    # (dimension_semantics=("parallel",)) and block-resident weights instead of one
    # monolithic invocation; unnecessary at B=2.
    return q_pad[:, :A]


# ----------------------- pure-JAX reference (correctness) --------------------

def reference_forward(params, state_nchw, actions):
    """All-f32 reference using the canonical conv kernels (bf16 FC weights upcast)."""
    f32 = jnp.float32
    prec = jax.lax.Precision.HIGHEST
    A = actions.shape[1]
    DCAT = D_FC1 + A
    x = jnp.transpose(state_nchw.astype(f32), (0, 2, 3, 1))
    y = jax.lax.conv_general_dilated(
        x, params["conv1_k"], (1, 1), "VALID",
        dimension_numbers=("NHWC", "HWIO", "NHWC"), precision=prec)
    y = jax.nn.relu(y + params["conv1_b"])
    y = jax.lax.reduce_window(y, -jnp.inf, jax.lax.max,
                              (1, POOL1, POOL1, 1), (1, POOL1, POOL1, 1), "VALID")
    z = jax.lax.conv_general_dilated(
        y, params["conv2_k"], (1, 1), "VALID",
        dimension_numbers=("NHWC", "HWIO", "NHWC"), precision=prec)
    z = jax.nn.relu(z + params["conv2_b"])
    B = z.shape[0]
    flat = z.reshape(B, -1)                                # (B, NPOS*OC2), (i2, j2, oc)
    h = jax.nn.relu(jnp.dot(flat, params["fc1_w"], precision=prec) + params["fc1_b"])
    cat = jnp.concatenate([h, actions.astype(f32)], axis=1)
    w2 = params["fc2_w"][:DCAT, :DCAT].astype(f32)
    h = jax.nn.relu(jnp.dot(cat, w2, precision=prec) + params["fc2_b"][:, :DCAT])
    w3 = params["fc3_w"][:DCAT, :DCAT].astype(f32)
    h = jax.nn.relu(jnp.dot(h, w3, precision=prec) + params["fc3_b"][:, :DCAT])
    wo = params["fout_w"][:DCAT, :A].astype(f32)
    return jnp.dot(h, wo, precision=prec) + params["fout_b"][:, :A]


# ------------------------------------ main ------------------------------------

if __name__ == "__main__":
    key = jax.random.PRNGKey(0)
    input_size = (4, 16, 16)   # (C, H, W)
    action_size = 4
    batch = 2

    k_par, k_state, k_act = jax.random.split(key, 3)
    params = init_params(k_par, input_size, action_size)
    state = jax.random.normal(k_state, (batch,) + input_size, jnp.float32)
    actions = jax.random.normal(k_act, (batch, action_size), jnp.float32)

    q = critic_forward(params, state, actions)
    q = jax.block_until_ready(q)
    assert q.shape == (batch, action_size), q.shape
    assert q.dtype == jnp.float32

    q_ref = jax.block_until_ready(reference_forward(params, state, actions))
    err = float(jnp.max(jnp.abs(q - q_ref)))
    # Kernel runs fc2/fc3/f_out with bf16 operands (f32 accumulate) vs. an all-f32
    # reference -> allow a slightly looser tolerance than pure-f32.
    assert err < 1e-2, f"max |q - q_ref| = {err}"

    print("KERNEL_OK")
</pallas_src>

<mosaic_0001>
module attributes {stable_mosaic.version = 11 : i64} {
  func.func @_critic_kernel(%arg0: memref<288x128xf32, #tpu.memory_space<vmem>>, %arg1: memref<2x128xf32, #tpu.memory_space<vmem>>, %arg2: memref<128x16xf32, #tpu.memory_space<vmem>>, %arg3: memref<1x16xf32, #tpu.memory_space<vmem>>, %arg4: memref<256x64xf32, #tpu.memory_space<vmem>>, %arg5: memref<1x64xf32, #tpu.memory_space<vmem>>, %arg6: memref<64x512xf32, #tpu.memory_space<vmem>>, %arg7: memref<1x512xf32, #tpu.memory_space<vmem>>, %arg8: memref<640x640xbf16, #tpu.memory_space<vmem>>, %arg9: memref<1x640xf32, #tpu.memory_space<vmem>>, %arg10: memref<640x640xbf16, #tpu.memory_space<vmem>>, %arg11: memref<1x640xf32, #tpu.memory_space<vmem>>, %arg12: memref<640x128xbf16, #tpu.memory_space<vmem>>, %arg13: memref<1x128xf32, #tpu.memory_space<vmem>>, %arg14: memref<2x128xf32, #tpu.memory_space<vmem>>, %arg15: memref<2x256xf32, #tpu.memory_space<vmem>>, %arg16: memref<2x640xf32, #tpu.memory_space<vmem>>) attributes {dimension_semantics = [], scalar_prefetch = 0 : i64, scratch_operands = 2 : i64, tpu.core_type = #tpu.core_type<tc>} {
    %c0 = arith.constant 0 : index
    %c0_0 = arith.constant 0 : index
    %0 = vector.load %arg0[%c0, %c0_0] : memref<288x128xf32, #tpu.memory_space<vmem>>, vector<288x128xf32>
    %c0_1 = arith.constant 0 : index
    %c0_2 = arith.constant 0 : index
    %1 = vector.load %arg2[%c0_1, %c0_2] : memref<128x16xf32, #tpu.memory_space<vmem>>, vector<128x16xf32>
    %cst = arith.constant dense<0.000000e+00> : vector<288x16xf32>
    %2 = tpu.matmul %0, %1, %cst {dimension_numbers = #tpu.dot_dimension_numbers<[1], [0], [0], [1], [0, 0, 1, 1], [], []>} : vector<288x128xf32>, vector<128x16xf32>, vector<288x16xf32> -> vector<288x16xf32>
    %c0_3 = arith.constant 0 : index
    %c0_4 = arith.constant 0 : index
    %3 = vector.load %arg3[%c0_3, %c0_4] : memref<1x16xf32, #tpu.memory_space<vmem>>, vector<1x16xf32>
    %4 = vector.broadcast %3 : vector<1x16xf32> to vector<288x16xf32>
    %5 = arith.addf %2, %4 : vector<288x16xf32>
    %cst_5 = arith.constant 0.000000e+00 : f32
    %6 = vector.broadcast %cst_5 : f32 to vector<288x16xf32>
    %7 = arith.maximumf %5, %6 : vector<288x16xf32>
    %8 = vector.extract_strided_slice %7 {offsets = [0, 0], sizes = [32, 16], strides = [1, 1]} : vector<288x16xf32> to vector<32x16xf32>
    %9 = vector.extract_strided_slice %7 {offsets = [32, 0], sizes = [32, 16], strides = [1, 1]} : vector<288x16xf32> to vector<32x16xf32>
    %10 = arith.maximumf %8, %9 : vector<32x16xf32>
    %11 = vector.extract_strided_slice %7 {offsets = [64, 0], sizes = [32, 16], strides = [1, 1]} : vector<288x16xf32> to vector<32x16xf32>
    %12 = arith.maximumf %10, %11 : vector<32x16xf32>
    %13 = vector.extract_strided_slice %7 {offsets = [96, 0], sizes = [32, 16], strides = [1, 1]} : vector<288x16xf32> to vector<32x16xf32>
    %14 = arith.maximumf %12, %13 : vector<32x16xf32>
    %15 = vector.extract_strided_slice %7 {offsets = [128, 0], sizes = [32, 16], strides = [1, 1]} : vector<288x16xf32> to vector<32x16xf32>
    %16 = arith.maximumf %14, %15 : vector<32x16xf32>
    %17 = vector.extract_strided_slice %7 {offsets = [160, 0], sizes = [32, 16], strides = [1, 1]} : vector<288x16xf32> to vector<32x16xf32>
    %18 = arith.maximumf %16, %17 : vector<32x16xf32>
    %19 = vector.extract_strided_slice %7 {offsets = [192, 0], sizes = [32, 16], strides = [1, 1]} : vector<288x16xf32> to vector<32x16xf32>
    %20 = arith.maximumf %18, %19 : vector<32x16xf32>
    %21 = vector.extract_strided_slice %7 {offsets = [224, 0], sizes = [32, 16], strides = [1, 1]} : vector<288x16xf32> to vector<32x16xf32>
    %22 = arith.maximumf %20, %21 : vector<32x16xf32>
    %23 = vector.extract_strided_slice %7 {offsets = [256, 0], sizes = [32, 16], strides = [1, 1]} : vector<288x16xf32> to vector<32x16xf32>
    %24 = arith.maximumf %22, %23 : vector<32x16xf32>
    %25 = vector.extract_strided_slice %24 {offsets = [0, 0], sizes = [2, 16], strides = [1, 1]} : vector<32x16xf32> to vector<2x16xf32>
    %c0_6 = arith.constant 0 : index
    %c0_7 = arith.constant 0 : index
    %26 = vector.load %arg15[%c0_6, %c0_7] : memref<2x256xf32, #tpu.memory_space<vmem>>, vector<2x16xf32>
    tpu.vector_store %arg15[%c0_6, %c0_7], %25 {strides = array<i32>} : memref<2x256xf32, #tpu.memory_space<vmem>>, vector<2x16xf32>,
    %27 = vector.extract_strided_slice %24 {offsets = [2, 0], sizes = [2, 16], strides = [1, 1]} : vector<32x16xf32> to vector<2x16xf32>
    %c0_8 = arith.constant 0 : index
    %c16 = arith.constant 16 : index
    %28 = vector.load %arg15[%c0_8, %c16] : memref<2x256xf32, #tpu.memory_space<vmem>>, vector<2x16xf32>
    tpu.vector_store %arg15[%c0_8, %c16], %27 {strides = array<i32>} : memref<2x256xf32, #tpu.memory_space<vmem>>, vector<2x16xf32>,
    %29 = vector.extract_strided_slice %24 {offsets = [4, 0], sizes = [2, 16], strides = [1, 1]} : vector<32x16xf32> to vector<2x16xf32>
    %c0_9 = arith.constant 0 : index
    %c32 = arith.constant 32 : index
    %30 = vector.load %arg15[%c0_9, %c32] : memref<2x256xf32, #tpu.memory_space<vmem>>, vector<2x16xf32>
    tpu.vector_store %arg15[%c0_9, %c32], %29 {strides = array<i32>} : memref<2x256xf32, #tpu.memory_space<vmem>>, vector<2x16xf32>,
    %31 = vector.extract_strided_slice %24 {offsets = [6, 0], sizes = [2, 16], strides = [1, 1]} : vector<32x16xf32> to vector<2x16xf32>
    %c0_10 = arith.constant 0 : index
    %c48 = arith.constant 48 : index
    %32 = vector.load %arg15[%c0_10, %c48] : memref<2x256xf32, #tpu.memory_space<vmem>>, vector<2x16xf32>
    tpu.vector_store %arg15[%c0_10, %c48], %31 {strides = array<i32>} : memref<2x256xf32, #tpu.memory_space<vmem>>, vector<2x16xf32>,
    %33 = vector.extract_strided_slice %24 {offsets = [8, 0], sizes = [2, 16], strides = [1, 1]} : vector<32x16xf32> to vector<2x16xf32>
    %c0_11 = arith.constant 0 : index
    %c64 = arith.constant 64 : index
    %34 = vector.load %arg15[%c0_11, %c64] : memref<2x256xf32, #tpu.memory_space<vmem>>, vector<2x16xf32>
    tpu.vector_store %arg15[%c0_11, %c64], %33 {strides = array<i32>} : memref<2x256xf32, #tpu.memory_space<vmem>>, vector<2x16xf32>,
    %35 = vector.extract_strided_slice %24 {offsets = [10, 0], sizes = [2, 16], strides = [1, 1]} : vector<32x16xf32> to vector<2x16xf32>
    %c0_12 = arith.constant 0 : index
    %c80 = arith.constant 80 : index
    %36 = vector.load %arg15[%c0_12, %c80] : memref<2x256xf32, #tpu.memory_space<vmem>>, vector<2x16xf32>
    tpu.vector_store %arg15[%c0_12, %c80], %35 {strides = array<i32>} : memref<2x256xf32, #tpu.memory_space<vmem>>, vector<2x16xf32>,
    %37 = vector.extract_strided_slice %24 {offsets = [12, 0], sizes = [2, 16], strides = [1, 1]} : vector<32x16xf32> to vector<2x16xf32>
    %c0_13 = arith.constant 0 : index
    %c96 = arith.constant 96 : index
    %38 = vector.load %arg15[%c0_13, %c96] : memref<2x256xf32, #tpu.memory_space<vmem>>, vector<2x16xf32>
    tpu.vector_store %arg15[%c0_13, %c96], %37 {strides = array<i32>} : memref<2x256xf32, #tpu.memory_space<vmem>>, vector<2x16xf32>,
    %39 = vector.extract_strided_slice %24 {offsets = [14, 0], sizes = [2, 16], strides = [1, 1]} : vector<32x16xf32> to vector<2x16xf32>
    %c0_14 = arith.constant 0 : index
    %c112 = arith.constant 112 : index
    %40 = vector.load %arg15[%c0_14, %c112] : memref<2x256xf32, #tpu.memory_space<vmem>>, vector<2x16xf32>
    tpu.vector_store %arg15[%c0_14, %c112], %39 {strides = array<i32>} : memref<2x256xf32, #tpu.memory_space<vmem>>, vector<2x16xf32>,
    %41 = vector.extract_strided_slice %24 {offsets = [16, 0], sizes = [2, 16], strides = [1, 1]} : vector<32x16xf32> to vector<2x16xf32>
    %c0_15 = arith.constant 0 : index
    %c128 = arith.constant 128 : index
    %42 = vector.load %arg15[%c0_15, %c128] : memref<2x256xf32, #tpu.memory_space<vmem>>, vector<2x16xf32>
    tpu.vector_store %arg15[%c0_15, %c128], %41 {strides = array<i32>} : memref<2x256xf32, #tpu.memory_space<vmem>>, vector<2x16xf32>,
    %43 = vector.extract_strided_slice %24 {offsets = [18, 0], sizes = [2, 16], strides = [1, 1]} : vector<32x16xf32> to vector<2x16xf32>
    %c0_16 = arith.constant 0 : index
    %c144 = arith.constant 144 : index
    %44 = vector.load %arg15[%c0_16, %c144] : memref<2x256xf32, #tpu.memory_space<vmem>>, vector<2x16xf32>
    tpu.vector_store %arg15[%c0_16, %c144], %43 {strides = array<i32>} : memref<2x256xf32, #tpu.memory_space<vmem>>, vector<2x16xf32>,
    %45 = vector.extract_strided_slice %24 {offsets = [20, 0], sizes = [2, 16], strides = [1, 1]} : vector<32x16xf32> to vector<2x16xf32>
    %c0_17 = arith.constant 0 : index
    %c160 = arith.constant 160 : index
    %46 = vector.load %arg15[%c0_17, %c160] : memref<2x256xf32, #tpu.memory_space<vmem>>, vector<2x16xf32>
    tpu.vector_store %arg15[%c0_17, %c160], %45 {strides = array<i32>} : memref<2x256xf32, #tpu.memory_space<vmem>>, vector<2x16xf32>,
    %47 = vector.extract_strided_slice %24 {offsets = [22, 0], sizes = [2, 16], strides = [1, 1]} : vector<32x16xf32> to vector<2x16xf32>
    %c0_18 = arith.constant 0 : index
    %c176 = arith.constant 176 : index
    %48 = vector.load %arg15[%c0_18, %c176] : memref<2x256xf32, #tpu.memory_space<vmem>>, vector<2x16xf32>
    tpu.vector_store %arg15[%c0_18, %c176], %47 {strides = array<i32>} : memref<2x256xf32, #tpu.memory_space<vmem>>, vector<2x16xf32>,
    %49 = vector.extract_strided_slice %24 {offsets = [24, 0], sizes = [2, 16], strides = [1, 1]} : vector<32x16xf32> to vector<2x16xf32>
    %c0_19 = arith.constant 0 : index
    %c192 = arith.constant 192 : index
    %50 = vector.load %arg15[%c0_19, %c192] : memref<2x256xf32, #tpu.memory_space<vmem>>, vector<2x16xf32>
    tpu.vector_store %arg15[%c0_19, %c192], %49 {strides = array<i32>} : memref<2x256xf32, #tpu.memory_space<vmem>>, vector<2x16xf32>,
    %51 = vector.extract_strided_slice %24 {offsets = [26, 0], sizes = [2, 16], strides = [1, 1]} : vector<32x16xf32> to vector<2x16xf32>
    %c0_20 = arith.constant 0 : index
    %c208 = arith.constant 208 : index
    %52 = vector.load %arg15[%c0_20, %c208] : memref<2x256xf32, #tpu.memory_space<vmem>>, vector<2x16xf32>
    tpu.vector_store %arg15[%c0_20, %c208], %51 {strides = array<i32>} : memref<2x256xf32, #tpu.memory_space<vmem>>, vector<2x16xf32>,
    %53 = vector.extract_strided_slice %24 {offsets = [28, 0], sizes = [2, 16], strides = [1, 1]} : vector<32x16xf32> to vector<2x16xf32>
    %c0_21 = arith.constant 0 : index
    %c224 = arith.constant 224 : index
    %54 = vector.load %arg15[%c0_21, %c224] : memref<2x256xf32, #tpu.memory_space<vmem>>, vector<2x16xf32>
    tpu.vector_store %arg15[%c0_21, %c224], %53 {strides = array<i32>} : memref<2x256xf32, #tpu.memory_space<vmem>>, vector<2x16xf32>,
    %55 = vector.extract_strided_slice %24 {offsets = [30, 0], sizes = [2, 16], strides = [1, 1]} : vector<32x16xf32> to vector<2x16xf32>
    %c0_22 = arith.constant 0 : index
    %c240 = arith.constant 240 : index
    %56 = vector.load %arg15[%c0_22, %c240] : memref<2x256xf32, #tpu.memory_space<vmem>>, vector<2x16xf32>
    tpu.vector_store %arg15[%c0_22, %c240], %55 {strides = array<i32>} : memref<2x256xf32, #tpu.memory_space<vmem>>, vector<2x16xf32>,
    %c0_23 = arith.constant 0 : index
    %c0_24 = arith.constant 0 : index
    %57 = vector.load %arg15[%c0_23, %c0_24] : memref<2x256xf32, #tpu.memory_space<vmem>>, vector<2x256xf32>
    %c0_25 = arith.constant 0 : index
    %c0_26 = arith.constant 0 : index
    %58 = vector.load %arg4[%c0_25, %c0_26] : memref<256x64xf32, #tpu.memory_space<vmem>>, vector<256x64xf32>
    %cst_27 = arith.constant dense<0.000000e+00> : vector<2x64xf32>
    %59 = tpu.matmul %57, %58, %cst_27 {dimension_numbers = #tpu.dot_dimension_numbers<[1], [0], [0], [1], [0, 0, 1, 1], [], []>} : vector<2x256xf32>, vector<256x64xf32>, vector<2x64xf32> -> vector<2x64xf32>
    %c0_28 = arith.constant 0 : index
    %c0_29 = arith.constant 0 : index
    %60 = vector.load %arg5[%c0_28, %c0_29] : memref<1x64xf32, #tpu.memory_space<vmem>>, vector<1x64xf32>
    %61 = vector.broadcast %60 : vector<1x64xf32> to vector<2x64xf32>
    %62 = arith.addf %59, %61 : vector<2x64xf32>
    %cst_30 = arith.constant 0.000000e+00 : f32
    %63 = vector.broadcast %cst_30 : f32 to vector<2x64xf32>
    %64 = arith.maximumf %62, %63 : vector<2x64xf32>
    %c0_31 = arith.constant 0 : index
    %c0_32 = arith.constant 0 : index
    %65 = vector.load %arg6[%c0_31, %c0_32] : memref<64x512xf32, #tpu.memory_space<vmem>>, vector<64x512xf32>
    %cst_33 = arith.constant dense<0.000000e+00> : vector<2x512xf32>
    %66 = tpu.matmul %64, %65, %cst_33 {dimension_numbers = #tpu.dot_dimension_numbers<[1], [0], [0], [1], [0, 0, 1, 1], [], []>} : vector<2x64xf32>, vector<64x512xf32>, vector<2x512xf32> -> vector<2x512xf32>
    %c0_34 = arith.constant 0 : index
    %c0_35 = arith.constant 0 : index
    %67 = vector.load %arg7[%c0_34, %c0_35] : memref<1x512xf32, #tpu.memory_space<vmem>>, vector<1x512xf32>
    %68 = vector.broadcast %67 : vector<1x512xf32> to vector<2x512xf32>
    %69 = arith.addf %66, %68 : vector<2x512xf32>
    %cst_36 = arith.constant 0.000000e+00 : f32
    %70 = vector.broadcast %cst_36 : f32 to vector<2x512xf32>
    %71 = arith.maximumf %69, %70 : vector<2x512xf32>
    %c0_37 = arith.constant 0 : index
    %c0_38 = arith.constant 0 : index
    %72 = vector.load %arg16[%c0_37, %c0_38] : memref<2x640xf32, #tpu.memory_space<vmem>>, vector<2x512xf32>
    tpu.vector_store %arg16[%c0_37, %c0_38], %71 {strides = array<i32>} : memref<2x640xf32, #tpu.memory_space<vmem>>, vector<2x512xf32>,
    %c0_39 = arith.constant 0 : index
    %c0_40 = arith.constant 0 : index
    %73 = vector.load %arg1[%c0_39, %c0_40] : memref<2x128xf32, #tpu.memory_space<vmem>>, vector<2x128xf32>
    %c0_41 = arith.constant 0 : index
    %c512 = arith.constant 512 : index
    %74 = vector.load %arg16[%c0_41, %c512] : memref<2x640xf32, #tpu.memory_space<vmem>>, vector<2x128xf32>
    tpu.vector_store %arg16[%c0_41, %c512], %73 {strides = array<i32>} : memref<2x640xf32, #tpu.memory_space<vmem>>, vector<2x128xf32>,
    %c0_42 = arith.constant 0 : index
    %c0_43 = arith.constant 0 : index
    %75 = vector.load %arg16[%c0_42, %c0_43] : memref<2x640xf32, #tpu.memory_space<vmem>>, vector<2x640xf32>
    %76 = arith.truncf %75 : vector<2x640xf32> to vector<2x640xbf16>
    %c0_44 = arith.constant 0 : index
    %c0_45 = arith.constant 0 : index
    %77 = vector.load %arg8[%c0_44, %c0_45] : memref<640x640xbf16, #tpu.memory_space<vmem>>, vector<640x640xbf16>
    %cst_46 = arith.constant dense<0.000000e+00> : vector<2x640xf32>
    %78 = tpu.matmul %76, %77, %cst_46 {dimension_numbers = #tpu.dot_dimension_numbers<[1], [0], [0], [1], [0, 0, 1, 1], [], []>} : vector<2x640xbf16>, vector<640x640xbf16>, vector<2x640xf32> -> vector<2x640xf32>
    %c0_47 = arith.constant 0 : index
    %c0_48 = arith.constant 0 : index
    %79 = vector.load %arg9[%c0_47, %c0_48] : memref<1x640xf32, #tpu.memory_space<vmem>>, vector<1x640xf32>
    %80 = vector.broadcast %79 : vector<1x640xf32> to vector<2x640xf32>
    %81 = arith.addf %78, %80 : vector<2x640xf32>
    %cst_49 = arith.constant 0.000000e+00 : f32
    %82 = vector.broadcast %cst_49 : f32 to vector<2x640xf32>
    %83 = arith.maximumf %81, %82 : vector<2x640xf32>
    %84 = arith.truncf %83 : vector<2x640xf32> to vector<2x640xbf16>
    %c0_50 = arith.constant 0 : index
    %c0_51 = arith.constant 0 : index
    %85 = vector.load %arg10[%c0_50, %c0_51] : memref<640x640xbf16, #tpu.memory_space<vmem>>, vector<640x640xbf16>
    %cst_52 = arith.constant dense<0.000000e+00> : vector<2x640xf32>
    %86 = tpu.matmul %84, %85, %cst_52 {dimension_numbers = #tpu.dot_dimension_numbers<[1], [0], [0], [1], [0, 0, 1, 1], [], []>} : vector<2x640xbf16>, vector<640x640xbf16>, vector<2x640xf32> -> vector<2x640xf32>
    %c0_53 = arith.constant 0 : index
    %c0_54 = arith.constant 0 : index
    %87 = vector.load %arg11[%c0_53, %c0_54] : memref<1x640xf32, #tpu.memory_space<vmem>>, vector<1x640xf32>
    %88 = vector.broadcast %87 : vector<1x640xf32> to vector<2x640xf32>
    %89 = arith.addf %86, %88 : vector<2x640xf32>
    %cst_55 = arith.constant 0.000000e+00 : f32
    %90 = vector.broadcast %cst_55 : f32 to vector<2x640xf32>
    %91 = arith.maximumf %89, %90 : vector<2x640xf32>
    %92 = arith.truncf %91 : vector<2x640xf32> to vector<2x640xbf16>
    %c0_56 = arith.constant 0 : index
    %c0_57 = arith.constant 0 : index
    %93 = vector.load %arg12[%c0_56, %c0_57] : memref<640x128xbf16, #tpu.memory_space<vmem>>, vector<640x128xbf16>
    %cst_58 = arith.constant dense<0.000000e+00> : vector<2x128xf32>
    %94 = tpu.matmul %92, %93, %cst_58 {dimension_numbers = #tpu.dot_dimension_numbers<[1], [0], [0], [1], [0, 0, 1, 1], [], []>} : vector<2x640xbf16>, vector<640x128xbf16>, vector<2x128xf32> -> vector<2x128xf32>
    %c0_59 = arith.constant 0 : index
    %c0_60 = arith.constant 0 : index
    %95 = vector.load %arg13[%c0_59, %c0_60] : memref<1x128xf32, #tpu.memory_space<vmem>>, vector<1x128xf32>
    %96 = vector.broadcast %95 : vector<1x128xf32> to vector<2x128xf32>
    %97 = arith.addf %94, %96 : vector<2x128xf32>
    %c0_61 = arith.constant 0 : index
    %c0_62 = arith.constant 0 : index
    %98 = vector.load %arg14[%c0_61, %c0_62] : memref<2x128xf32, #tpu.memory_space<vmem>>, vector<2x128xf32>
    tpu.vector_store %arg14[%c0_61, %c0_62], %97 {strides = array<i32>} : memref<2x128xf32, #tpu.memory_space<vmem>>, vector<2x128xf32>,
    return
  }
}

</mosaic_0001>

<llo_original>
// kernel: critic_forward.1
$region0: #{critic_forward.1}
  #allocation0 [shape = 'u32[]', space=smem, size = 0x4, offset = 0x4, fixed_abs, tag = 'smem constant byte address 0x4 - core index']
  #allocation1 [shape = 'u32[144,128]{1,0:T(1,128)}', space=vmem, size = 0x12000, scoped, tag = 'internal scratch']
  #allocation2 [shape = 'f32[2,256]{1,0:T(2,128)}', space=vmem, size = 0x800, scoped, tag = 'scratch operand']
  #allocation3 [shape = 'f32[2,640]{1,0:T(2,128)}', space=vmem, size = 0x1400, scoped, tag = 'scratch operand']
  %s0 = inlined_call_operand.vmem [shape: f32[288,128], index: 0, kind: input, shape index: {}]
  %s1 = inlined_call_operand.vmem [shape: f32[2,128], index: 1, kind: input, shape index: {}]
  %s2 = inlined_call_operand.vmem [shape: f32[128,16], index: 2, kind: input, shape index: {}]
  %s3 = inlined_call_operand.vmem [shape: f32[1,16], index: 3, kind: input, shape index: {}]
  %s4 = inlined_call_operand.vmem [shape: f32[256,64], index: 4, kind: input, shape index: {}]
  %s5 = inlined_call_operand.vmem [shape: f32[1,64], index: 5, kind: input, shape index: {}]
  %s6 = inlined_call_operand.vmem [shape: f32[64,512], index: 6, kind: input, shape index: {}]
  %s7 = inlined_call_operand.vmem [shape: f32[1,512], index: 7, kind: input, shape index: {}]
  %s8 = inlined_call_operand.vmem [shape: bf16[640,640], index: 8, kind: input, shape index: {}]
  %s9 = inlined_call_operand.vmem [shape: f32[1,640], index: 9, kind: input, shape index: {}]
  %s10 = inlined_call_operand.vmem [shape: bf16[640,640], index: 10, kind: input, shape index: {}]
  %s11 = inlined_call_operand.vmem [shape: f32[1,640], index: 11, kind: input, shape index: {}]
  %s12 = inlined_call_operand.vmem [shape: bf16[640,128], index: 12, kind: input, shape index: {}]
  %s13 = inlined_call_operand.vmem [shape: f32[1,128], index: 13, kind: input, shape index: {}]
  %s14 = inlined_call_operand.hbm [shape: f32[2,128], index: 14, kind: output, shape index: {}]
  %s15 = sld [smem:[#allocation0]]
  $region66: #{critic_forward.1} parent=0
    _
  %s17 = ssub.s32 1, %s15
  %s18 = scalar_select 0, %s17, %s15
  $region1: #{critic_forward.1} parent=0
    #allocation4 [shape = 'u8[1024]{0}', space=vmem, size = 0x400, scoped, tag = 'output window, operand 0, single buffered']
    #allocation5 [shape = 's32[1]{0}', space=sflag, size = 0x4, scoped, tag = 'scoped memory for critic_forward.1']
    %19 = vsyncpa [#allocation5], 0
    // Predicated region
    $region2: #{critic_forward.1} parent=1 // pred_check
      _
    $region3: #{critic_forward.1} parent=1 // pred_check_branch
      %21 = sbr.rel (0) target = $region5
    $region4: #{critic_forward.1} parent=1 // pred_region
      _
    $region5: #{critic_forward.1} parent=1 // pred_fallthru
      _
    // Predicated region
    $region6: #{critic_forward.1} parent=1 // pred_check
      _
    $region7: #{critic_forward.1} parent=1 // pred_check_branch
      %23 = sbr.rel (0) target = $region9
    $region8: #{critic_forward.1} parent=1 // pred_region
      _
    $region9: #{critic_forward.1} parent=1 // pred_fallthru
      _
    // Predicated region
    $region10: #{critic_forward.1} parent=1 // pred_check
      _
    $region11: #{critic_forward.1} parent=1 // pred_check_branch
      %25 = sbr.rel (0) target = $region13
    $region12: #{critic_forward.1} parent=1 // pred_region
      _
    $region13: #{critic_forward.1} parent=1 // pred_fallthru
      _
    // Predicated region
    $region14: #{critic_forward.1} parent=1 // pred_check
      _
    $region15: #{critic_forward.1} parent=1 // pred_check_branch
      %27 = sbr.rel (0) target = $region17
    $region16: #{critic_forward.1} parent=1 // pred_region
      _
    $region17: #{critic_forward.1} parent=1 // pred_fallthru
      _
    // Predicated region
    $region18: #{critic_forward.1} parent=1 // pred_check
      _
    $region19: #{critic_forward.1} parent=1 // pred_check_branch
      %29 = sbr.rel (0) target = $region21
    $region20: #{critic_forward.1} parent=1 // pred_region
      _
    $region21: #{critic_forward.1} parent=1 // pred_fallthru
      _
    // Predicated region
    $region22: #{critic_forward.1} parent=1 // pred_check
      _
    $region23: #{critic_forward.1} parent=1 // pred_check_branch
      %31 = sbr.rel (0) target = $region25
    $region24: #{critic_forward.1} parent=1 // pred_region
      _
    $region25: #{critic_forward.1} parent=1 // pred_fallthru
      _
    // Predicated region
    $region26: #{critic_forward.1} parent=1 // pred_check
      _
    $region27: #{critic_forward.1} parent=1 // pred_check_branch
      %33 = sbr.rel (0) target = $region29
    $region28: #{critic_forward.1} parent=1 // pred_region
      _
    $region29: #{critic_forward.1} parent=1 // pred_fallthru
      _
    // Predicated region
    $region30: #{critic_forward.1} parent=1 // pred_check
      _
    $region31: #{critic_forward.1} parent=1 // pred_check_branch
      %35 = sbr.rel (0) target = $region33
    $region32: #{critic_forward.1} parent=1 // pred_region
      _
    $region33: #{critic_forward.1} parent=1 // pred_fallthru
      _
    // Predicated region
    $region34: #{critic_forward.1} parent=1 // pred_check
      _
    $region35: #{critic_forward.1} parent=1 // pred_check_branch
      %37 = sbr.rel (0) target = $region37
    $region36: #{critic_forward.1} parent=1 // pred_region
      _
    $region37: #{critic_forward.1} parent=1 // pred_fallthru
      _
    // Predicated region
    $region38: #{critic_forward.1} parent=1 // pred_check
      _
    $region39: #{critic_forward.1} parent=1 // pred_check_branch
      %39 = sbr.rel (0) target = $region41
    $region40: #{critic_forward.1} parent=1 // pred_region
      _
    $region41: #{critic_forward.1} parent=1 // pred_fallthru
      _
    // Predicated region
    $region42: #{critic_forward.1} parent=1 // pred_check
      _
    $region43: #{critic_forward.1} parent=1 // pred_check_branch
      %41 = sbr.rel (0) target = $region45
    $region44: #{critic_forward.1} parent=1 // pred_region
      _
    $region45: #{critic_forward.1} parent=1 // pred_fallthru
      _
    // Predicated region
    $region46: #{critic_forward.1} parent=1 // pred_check
      _
    $region47: #{critic_forward.1} parent=1 // pred_check_branch
      %43 = sbr.rel (0) target = $region49
    $region48: #{critic_forward.1} parent=1 // pred_region
      _
    $region49: #{critic_forward.1} parent=1 // pred_fallthru
      _
    // Predicated region
    $region50: #{critic_forward.1} parent=1 // pred_check
      _
    $region51: #{critic_forward.1} parent=1 // pred_check_branch
      %45 = sbr.rel (0) target = $region53
    $region52: #{critic_forward.1} parent=1 // pred_region
      _
    $region53: #{critic_forward.1} parent=1 // pred_fallthru
      _
    // Predicated region
    $region54: #{critic_forward.1} parent=1 // pred_check
      _
    $region55: #{critic_forward.1} parent=1 // pred_check_branch
      %47 = sbr.rel (0) target = $region57
    $region56: #{critic_forward.1} parent=1 // pred_region
      _
    $region57: #{critic_forward.1} parent=1 // pred_fallthru
      _
    %v49 = vld [vmem:[%s0] sm:$0xff]
    %v50 = vld [vmem:[%s0 + $0x8] sm:$0xff]
    %v51 = vld [vmem:[%s0 + $0x10] sm:$0xff]
    %v52 = vld [vmem:[%s0 + $0x18] sm:$0xff]
    %v53 = vld [vmem:[%s0 + $0x20] sm:$0xff]
    %v54 = vld [vmem:[%s0 + $0x28] sm:$0xff]
    %v55 = vld [vmem:[%s0 + $0x30] sm:$0xff]
    %v56 = vld [vmem:[%s0 + $0x38] sm:$0xff]
    %v57 = vld [vmem:[%s0 + $0x40] sm:$0xff]
    %v58 = vld [vmem:[%s0 + $0x48] sm:$0xff]
    %v59 = vld [vmem:[%s0 + $0x50] sm:$0xff]
    %v60 = vld [vmem:[%s0 + $0x58] sm:$0xff]
    %v61 = vld [vmem:[%s0 + $0x60] sm:$0xff]
    %v62 = vld [vmem:[%s0 + $0x68] sm:$0xff]
    %v63 = vld [vmem:[%s0 + $0x70] sm:$0xff]
    %v64 = vld [vmem:[%s0 + $0x78] sm:$0xff]
    %v65 = vld [vmem:[%s0 + $0x80] sm:$0xff]
    %v66 = vld [vmem:[%s0 + $0x88] sm:$0xff]
    %v67 = vld [vmem:[%s0 + $0x90] sm:$0xff]
    %v68 = vld [vmem:[%s0 + $0x98] sm:$0xff]
    %v69 = vld [vmem:[%s0 + $0xa0] sm:$0xff]
    %v70 = vld [vmem:[%s0 + $0xa8] sm:$0xff]
    %v71 = vld [vmem:[%s0 + $0xb0] sm:$0xff]
    %v72 = vld [vmem:[%s0 + $0xb8] sm:$0xff]
    %v73 = vld [vmem:[%s0 + $0xc0] sm:$0xff]
    %v74 = vld [vmem:[%s0 + $0xc8] sm:$0xff]
    %v75 = vld [vmem:[%s0 + $0xd0] sm:$0xff]
    %v76 = vld [vmem:[%s0 + $0xd8] sm:$0xff]
    %v77 = vld [vmem:[%s0 + $0xe0] sm:$0xff]
    %v78 = vld [vmem:[%s0 + $0xe8] sm:$0xff]
    %v79 = vld [vmem:[%s0 + $0xf0] sm:$0xff]
    %v80 = vld [vmem:[%s0 + $0xf8] sm:$0xff]
    %v81 = vld [vmem:[%s0 + $0x100] sm:$0xff]
    %v82 = vld [vmem:[%s0 + $0x108] sm:$0xff]
    %v83 = vld [vmem:[%s0 + $0x110] sm:$0xff]
    %v84 = vld [vmem:[%s0 + $0x118] sm:$0xff]
    %v85 = vld [vmem:[%s2] sm:$0xff]
    %v86 = vld [vmem:[%s2 + $0x8] sm:$0xff]
    %v87 = vld [vmem:[%s2 + $0x10] sm:$0xff]
    %v88 = vld [vmem:[%s2 + $0x18] sm:$0xff]
    %v89 = vld [vmem:[%s2 + $0x20] sm:$0xff]
    %v90 = vld [vmem:[%s2 + $0x28] sm:$0xff]
    %v91 = vld [vmem:[%s2 + $0x30] sm:$0xff]
    %v92 = vld [vmem:[%s2 + $0x38] sm:$0xff]
    %v93 = vld [vmem:[%s2 + $0x40] sm:$0xff]
    %v94 = vld [vmem:[%s2 + $0x48] sm:$0xff]
    %v95 = vld [vmem:[%s2 + $0x50] sm:$0xff]
    %v96 = vld [vmem:[%s2 + $0x58] sm:$0xff]
    %v97 = vld [vmem:[%s2 + $0x60] sm:$0xff]
    %v98 = vld [vmem:[%s2 + $0x68] sm:$0xff]
    %v99 = vld [vmem:[%s2 + $0x70] sm:$0xff]
    %v100 = vld [vmem:[%s2 + $0x78] sm:$0xff]
    %v101 = vld [vmem:[%s3] sm:$0x1]
    %v103 = vlaneseq
    %v104 = vshrl.u32 %v103, 7
    %v105 = vsub.s32 0, %v104
    %v106 = vrot.slane %v101, %v105
    %108 = vmatprep.subr.mxu0 0.0
    %109 = vmatpush1.msra.mxu0 %v100
    %110 = vmatprep.subr.mxu0 0.0
    %111 = vmatpush1.msra.mxu0 %v99
    %112 = vmatprep.subr.mxu0 0.0
    %113 = vmatpush1.msra.mxu0 %v98
    %114 = vmatprep.subr.mxu0 0.0
    %115 = vmatpush1.msra.mxu0 %v97
    %116 = vmatprep.subr.mxu0 0.0
    %117 = vmatpush1.msra.mxu0 %v96
    %118 = vmatprep.subr.mxu0 0.0
    %119 = vmatpush1.msra.mxu0 %v95
    %120 = vmatprep.subr.mxu0 0.0
    %121 = vmatpush1.msra.mxu0 %v94
    %122 = vmatprep.subr.mxu0 0.0
    %123 = vmatpush1.msra.mxu0 %v93
    %124 = vmatprep.subr.mxu0 0.0
    %125 = vmatpush1.msra.mxu0 %v92
    %126 = vmatprep.subr.mxu0 0.0
    %127 = vmatpush1.msra.mxu0 %v91
    %128 = vmatprep.subr.mxu0 0.0
    %129 = vmatpush1.msra.mxu0 %v90
    %130 = vmatprep.subr.mxu0 0.0
    %131 = vmatpush1.msra.mxu0 %v89
    %132 = vmatprep.subr.mxu0 0.0
    %133 = vmatpush1.msra.mxu0 %v88
    %134 = vmatprep.subr.mxu0 0.0
    %135 = vmatpush1.msra.mxu0 %v87
    %136 = vmatprep.subr.mxu0 0.0
    %137 = vmatpush1.msra.mxu0 %v86
    %138 = vmatprep.subr.mxu0 0.0
    %139 = vmatpush1.msra.mxu0 %v85
    %140 = vmatprep.subr.mxu0 0.0
    %141 = vmatpush2.msra.mxu0 0.0
    %142 = vmatprep.subr.mxu0 0.0
    %143 = vmatpush2.msra.mxu0 0.0
    %144 = vmatprep.subr.mxu0 0.0
    %145 = vmatpush2.msra.mxu0 0.0
    %146 = vmatprep.subr.mxu0 0.0
    %147 = vmatpush2.msra.mxu0 0.0
    %148 = vmatprep.subr.mxu0 0.0
    %149 = vmatpush2.msra.mxu0 0.0
    %150 = vmatprep.subr.mxu0 0.0
    %151 = vmatpush2.msra.mxu0 0.0
    %152 = vmatprep.subr.mxu0 0.0
    %153 = vmatpush2.msra.mxu0 0.0
    %154 = vmatprep.subr.mxu0 0.0
    %155 = vmatpush2.msra.mxu0 0.0
    %156 = vmatprep.subr.mxu0 0.0
    %157 = vmatpush2.msra.mxu0 0.0
    %158 = vmatprep.subr.mxu0 0.0
    %159 = vmatpush2.msra.mxu0 0.0
    %160 = vmatprep.subr.mxu0 0.0
    %161 = vmatpush2.msra.mxu0 0.0
    %162 = vmatprep.subr.mxu0 0.0
    %163 = vmatpush2.msra.mxu0 0.0
    %164 = vmatprep.subr.mxu0 0.0
    %165 = vmatpush2.msra.mxu0 0.0
    %166 = vmatprep.subr.mxu0 0.0
    %167 = vmatpush2.msra.mxu0 0.0
    %168 = vmatprep.subr.mxu0 0.0
    %169 = vmatpush2.msra.mxu0 0.0
    %170 = vmatprep.subr.mxu0 0.0
    %171 = vmatpush2.msra.mxu0 0.0
    %172 = vmatprep.mubr.f32.mxu0 0.0
    %173 = vmatmul.mubr.f32.gmra.mxu0 %v49
    %v174 = vpop.f32.mrf.mxu0
    %v175 = vadd.f32 %v106, %v174
    %v176 = vpop.f32.mrf.mxu0
    %177 = vmatprep.mubr.f32.mxu0 0.0
    %178 = vmatmul.mubr.f32.gmra.mxu0 %v50
    %v179 = vpop.f32.mrf.mxu0
    %v180 = vadd.f32 %v106, %v179
    %v181 = vpop.f32.mrf.mxu0
    %182 = vmatprep.mubr.f32.mxu0 0.0
    %183 = vmatmul.mubr.f32.gmra.mxu0 %v51
    %v184 = vpop.f32.mrf.mxu0
    %v185 = vadd.f32 %v106, %v184
    %v186 = vpop.f32.mrf.mxu0
    %187 = vmatprep.mubr.f32.mxu0 0.0
    %188 = vmatmul.mubr.f32.gmra.mxu0 %v52
    %v189 = vpop.f32.mrf.mxu0
    %v190 = vadd.f32 %v106, %v189
    %v191 = vpop.f32.mrf.mxu0
    %192 = vmatprep.mubr.f32.mxu0 0.0
    %193 = vmatmul.mubr.f32.gmra.mxu0 %v53
    %v194 = vpop.f32.mrf.mxu0
    %v195 = vadd.f32 %v106, %v194
    %v196 = vpop.f32.mrf.mxu0
    %197 = vmatprep.mubr.f32.mxu0 0.0
    %198 = vmatmul.mubr.f32.gmra.mxu0 %v54
    %v199 = vpop.f32.mrf.mxu0
    %v200 = vadd.f32 %v106, %v199
    %v201 = vpop.f32.mrf.mxu0
    %202 = vmatprep.mubr.f32.mxu0 0.0
    %203 = vmatmul.mubr.f32.gmra.mxu0 %v55
    %v204 = vpop.f32.mrf.mxu0
    %v205 = vadd.f32 %v106, %v204
    %v206 = vpop.f32.mrf.mxu0
    %207 = vmatprep.mubr.f32.mxu0 0.0
    %208 = vmatmul.mubr.f32.gmra.mxu0 %v56
    %v209 = vpop.f32.mrf.mxu0
    %v210 = vadd.f32 %v106, %v209
    %v211 = vpop.f32.mrf.mxu0
    %212 = vmatprep.mubr.f32.mxu0 0.0
    %213 = vmatmul.mubr.f32.gmra.mxu0 %v57
    %v214 = vpop.f32.mrf.mxu0
    %v215 = vadd.f32 %v106, %v214
    %v216 = vpop.f32.mrf.mxu0
    %217 = vmatprep.mubr.f32.mxu0 0.0
    %218 = vmatmul.mubr.f32.gmra.mxu0 %v58
    %v219 = vpop.f32.mrf.mxu0
    %v220 = vadd.f32 %v106, %v219
    %v221 = vpop.f32.mrf.mxu0
    %222 = vmatprep.mubr.f32.mxu0 0.0
    %223 = vmatmul.mubr.f32.gmra.mxu0 %v59
    %v224 = vpop.f32.mrf.mxu0
    %v225 = vadd.f32 %v106, %v224
    %v226 = vpop.f32.mrf.mxu0
    %227 = vmatprep.mubr.f32.mxu0 0.0
    %228 = vmatmul.mubr.f32.gmra.mxu0 %v60
    %v229 = vpop.f32.mrf.mxu0
    %v230 = vadd.f32 %v106, %v229
    %v231 = vpop.f32.mrf.mxu0
    %232 = vmatprep.mubr.f32.mxu0 0.0
    %233 = vmatmul.mubr.f32.gmra.mxu0 %v61
    %v234 = vpop.f32.mrf.mxu0
    %v235 = vadd.f32 %v106, %v234
    %v236 = vpop.f32.mrf.mxu0
    %237 = vmatprep.mubr.f32.mxu0 0.0
    %238 = vmatmul.mubr.f32.gmra.mxu0 %v62
    %v239 = vpop.f32.mrf.mxu0
    %v240 = vadd.f32 %v106, %v239
    %v241 = vpop.f32.mrf.mxu0
    %242 = vmatprep.mubr.f32.mxu0 0.0
    %243 = vmatmul.mubr.f32.gmra.mxu0 %v63
    %v244 = vpop.f32.mrf.mxu0
    %v245 = vadd.f32 %v106, %v244
    %v246 = vpop.f32.mrf.mxu0
    %247 = vmatprep.mubr.f32.mxu0 0.0
    %248 = vmatmul.mubr.f32.gmra.mxu0 %v64
    %v249 = vpop.f32.mrf.mxu0
    %v250 = vadd.f32 %v106, %v249
    %v251 = vpop.f32.mrf.mxu0
    %252 = vmatprep.mubr.f32.mxu0 0.0
    %253 = vmatmul.mubr.f32.gmra.mxu0 %v65
    %v254 = vpop.f32.mrf.mxu0
    %v255 = vadd.f32 %v106, %v254
    %v256 = vpop.f32.mrf.mxu0
    %257 = vmatprep.mubr.f32.mxu0 0.0
    %258 = vmatmul.mubr.f32.gmra.mxu0 %v66
    %v259 = vpop.f32.mrf.mxu0
    %v260 = vadd.f32 %v106, %v259
    %v261 = vpop.f32.mrf.mxu0
    %262 = vmatprep.mubr.f32.mxu0 0.0
    %263 = vmatmul.mubr.f32.gmra.mxu0 %v67
    %v264 = vpop.f32.mrf.mxu0
    %v265 = vadd.f32 %v106, %v264
    %v266 = vpop.f32.mrf.mxu0
    %267 = vmatprep.mubr.f32.mxu0 0.0
    %268 = vmatmul.mubr.f32.gmra.mxu0 %v68
    %v269 = vpop.f32.mrf.mxu0
    %v270 = vadd.f32 %v106, %v269
    %v271 = vpop.f32.mrf.mxu0
    %272 = vmatprep.mubr.f32.mxu0 0.0
    %273 = vmatmul.mubr.f32.gmra.mxu0 %v69
    %v274 = vpop.f32.mrf.mxu0
    %v275 = vadd.f32 %v106, %v274
    %v276 = vpop.f32.mrf.mxu0
    %277 = vmatprep.mubr.f32.mxu0 0.0
    %278 = vmatmul.mubr.f32.gmra.mxu0 %v70
    %v279 = vpop.f32.mrf.mxu0
    %v280 = vadd.f32 %v106, %v279
    %v281 = vpop.f32.mrf.mxu0
    %282 = vmatprep.mubr.f32.mxu0 0.0
    %283 = vmatmul.mubr.f32.gmra.mxu0 %v71
    %v284 = vpop.f32.mrf.mxu0
    %v285 = vadd.f32 %v106, %v284
    %v286 = vpop.f32.mrf.mxu0
    %287 = vmatprep.mubr.f32.mxu0 0.0
    %288 = vmatmul.mubr.f32.gmra.mxu0 %v72
    %v289 = vpop.f32.mrf.mxu0
    %v290 = vadd.f32 %v106, %v289
    %v291 = vpop.f32.mrf.mxu0
    %292 = vmatprep.mubr.f32.mxu0 0.0
    %293 = vmatmul.mubr.f32.gmra.mxu0 %v73
    %v294 = vpop.f32.mrf.mxu0
    %v295 = vadd.f32 %v106, %v294
    %v296 = vpop.f32.mrf.mxu0
    %297 = vmatprep.mubr.f32.mxu0 0.0
    %298 = vmatmul.mubr.f32.gmra.mxu0 %v74
    %v299 = vpop.f32.mrf.mxu0
    %v300 = vadd.f32 %v106, %v299
    %v301 = vpop.f32.mrf.mxu0
    %302 = vmatprep.mubr.f32.mxu0 0.0
    %303 = vmatmul.mubr.f32.gmra.mxu0 %v75
    %v304 = vpop.f32.mrf.mxu0
    %v305 = vadd.f32 %v106, %v304
    %v306 = vpop.f32.mrf.mxu0
    %307 = vmatprep.mubr.f32.mxu0 0.0
    %308 = vmatmul.mubr.f32.gmra.mxu0 %v76
    %v309 = vpop.f32.mrf.mxu0
    %v310 = vadd.f32 %v106, %v309
    %v311 = vpop.f32.mrf.mxu0
    %312 = vmatprep.mubr.f32.mxu0 0.0
    %313 = vmatmul.mubr.f32.gmra.mxu0 %v77
    %v314 = vpop.f32.mrf.mxu0
    %v315 = vadd.f32 %v106, %v314
    %v316 = vpop.f32.mrf.mxu0
    %317 = vmatprep.mubr.f32.mxu0 0.0
    %318 = vmatmul.mubr.f32.gmra.mxu0 %v78
    %v319 = vpop.f32.mrf.mxu0
    %v320 = vadd.f32 %v106, %v319
    %v321 = vpop.f32.mrf.mxu0
    %322 = vmatprep.mubr.f32.mxu0 0.0
    %323 = vmatmul.mubr.f32.gmra.mxu0 %v79
    %v324 = vpop.f32.mrf.mxu0
    %v325 = vadd.f32 %v106, %v324
    %v326 = vpop.f32.mrf.mxu0
    %327 = vmatprep.mubr.f32.mxu0 0.0
    %328 = vmatmul.mubr.f32.gmra.mxu0 %v80
    %v329 = vpop.f32.mrf.mxu0
    %v330 = vadd.f32 %v106, %v329
    %v331 = vpop.f32.mrf.mxu0
    %332 = vmatprep.mubr.f32.mxu0 0.0
    %333 = vmatmul.mubr.f32.gmra.mxu0 %v81
    %v334 = vpop.f32.mrf.mxu0
    %v335 = vadd.f32 %v106, %v334
    %v336 = vpop.f32.mrf.mxu0
    %337 = vmatprep.mubr.f32.mxu0 0.0
    %338 = vmatmul.mubr.f32.gmra.mxu0 %v82
    %v339 = vpop.f32.mrf.mxu0
    %v340 = vadd.f32 %v106, %v339
    %v341 = vpop.f32.mrf.mxu0
    %342 = vmatprep.mubr.f32.mxu0 0.0
    %343 = vmatmul.mubr.f32.gmra.mxu0 %v83
    %v344 = vpop.f32.mrf.mxu0
    %v345 = vadd.f32 %v106, %v344
    %v346 = vpop.f32.mrf.mxu0
    %347 = vmatprep.mubr.f32.mxu0 0.0
    %348 = vmatmul.mubr.f32.gmra.mxu0 %v84
    %v349 = vpop.f32.mrf.mxu0
    %v350 = vadd.f32 %v106, %v349
    %v351 = vpop.f32.mrf.mxu0
    %352 = vdwg.mxu0
    %v353 = vmax.f32 %v175, 0.0
    %v354 = vmax.f32 %v180, 0.0
    %v355 = vmax.f32 %v185, 0.0
    %v356 = vmax.f32 %v190, 0.0
    %v357 = vmax.f32 %v195, 0.0
    %v358 = vmax.f32 %v200, 0.0
    %v359 = vmax.f32 %v205, 0.0
    %v360 = vmax.f32 %v210, 0.0
    %v361 = vmax.f32 %v215, 0.0
    %v362 = vmax.f32 %v220, 0.0
    %v363 = vmax.f32 %v225, 0.0
    %v364 = vmax.f32 %v230, 0.0
    %v365 = vmax.f32 %v235, 0.0
    %v366 = vmax.f32 %v240, 0.0
    %v367 = vmax.f32 %v245, 0.0
    %v368 = vmax.f32 %v250, 0.0
    %v369 = vmax.f32 %v255, 0.0
    %v370 = vmax.f32 %v260, 0.0
    %v371 = vmax.f32 %v265, 0.0
    %v372 = vmax.f32 %v270, 0.0
    %v373 = vmax.f32 %v275, 0.0
    %v374 = vmax.f32 %v280, 0.0
    %v375 = vmax.f32 %v285, 0.0
    %v376 = vmax.f32 %v290, 0.0
    %v377 = vmax.f32 %v295, 0.0
    %v378 = vmax.f32 %v300, 0.0
    %v379 = vmax.f32 %v305, 0.0
    %v380 = vmax.f32 %v310, 0.0
    %v381 = vmax.f32 %v315, 0.0
    %v382 = vmax.f32 %v320, 0.0
    %v383 = vmax.f32 %v325, 0.0
    %v384 = vmax.f32 %v330, 0.0
    %v385 = vmax.f32 %v335, 0.0
    %v386 = vmax.f32 %v340, 0.0
    %v387 = vmax.f32 %v345, 0.0
    %v388 = vmax.f32 %v350, 0.0
    %v389 = vmax.f32 %v353, %v357
    %v390 = vmax.f32 %v354, %v358
    %v391 = vmax.f32 %v355, %v359
    %v392 = vmax.f32 %v356, %v360
    %v393 = vmax.f32 %v389, %v361
    %v394 = vmax.f32 %v390, %v362
    %v395 = vmax.f32 %v391, %v363
    %v396 = vmax.f32 %v392, %v364
    %v397 = vmax.f32 %v393, %v365
    %v398 = vmax.f32 %v394, %v366
    %v399 = vmax.f32 %v395, %v367
    %v400 = vmax.f32 %v396, %v368
    %v401 = vmax.f32 %v397, %v369
    %v402 = vmax.f32 %v398, %v370
    %v403 = vmax.f32 %v399, %v371
    %v404 = vmax.f32 %v400, %v372
    %v405 = vmax.f32 %v401, %v373
    %v406 = vmax.f32 %v402, %v374
    %v407 = vmax.f32 %v403, %v375
    %v408 = vmax.f32 %v404, %v376
    %v409 = vmax.f32 %v405, %v377
    %v410 = vmax.f32 %v406, %v378
    %v411 = vmax.f32 %v407, %v379
    %v412 = vmax.f32 %v408, %v380
    %v413 = vmax.f32 %v409, %v381
    %v414 = vmax.f32 %v410, %v382
    %v415 = vmax.f32 %v411, %v383
    %v416 = vmax.f32 %v412, %v384
    %v417 = vmax.f32 %v413, %v385
    %v418 = vmax.f32 %v414, %v386
    %v419 = vmax.f32 %v415, %v387
    %v420 = vmax.f32 %v416, %v388
    %vm421 = vcmask 123904
    %422 = vst.msk [vmem:[#allocation2] sm:$0x3] %vm421, %v417
    %v425 = vunpack.c.l.s4 1983009808
    %v426 = vunpack.c.0.s8 %v425
    %v427 = vlaneseq
    %v428 = vshrl.u32 %v427, 7
    %v429 = vsub.s32 %v426, %v428
    %v430 = vrot.slane %v417, %v429
    %v431 = vcombine.high %v430, %v430
    %432 = vrot.lane.b32.xlu0 %v431, 16
    %v433 = vpop.permute.xlu0 %432
    %vm435 = vcmask 255104
    %436 = vst.msk [vmem:[#allocation2] sm:$0x3] %vm435, %v433
    %v437 = vcombine.high %v417, %v417
    %v439 = vunpack.c.l.s4 1983009808
    %v440 = vunpack.c.0.s8 %v439
    %v441 = vlaneseq
    %v442 = vshrl.u32 %v441, 7
    %v443 = vsub.s32 %v440, %v442
    %v444 = vrot.slane %v437, %v443
    %445 = vrot.lane.b32.xlu0 %v444, 32
    %v446 = vpop.permute.xlu0 %445
    %vm448 = vcmask 386304
    %449 = vst.msk [vmem:[#allocation2] sm:$0x3] %vm448, %v446
    %v450 = vcombine.high %v444, %v444
    %451 = vrot.lane.b32.xlu0 %v450, 48
    %v452 = vpop.permute.xlu0 %451
    %vm454 = vcmask 517504
    %455 = vst.msk [vmem:[#allocation2] sm:$0x3] %vm454, %v452
    %v458 = vunpack.c.l.s4 1983009808
    %v459 = vunpack.c.0.s8 %v458
    %v460 = vlaneseq
    %v461 = vshrl.u32 %v460, 7
    %v462 = vsub.s32 %v459, %v461
    %v463 = vrot.slane %v418, %v462
    %464 = vrot.lane.b32.xlu0 %v463, 64
    %v465 = vpop.permute.xlu0 %464
    %vm467 = vcmask 648704
    %468 = vst.msk [vmem:[#allocation2] sm:$0x3] %vm467, %v465
    %v469 = vcombine.high %v463, %v463
    %470 = vrot.lane.b32.xlu0 %v469, 80
    %v471 = vpop.permute.xlu0 %470
    %vm473 = vcmask 779904
    %474 = vst.msk [vmem:[#allocation2] sm:$0x3] %vm473, %v471
    %v475 = vcombine.high %v418, %v418
    %v477 = vunpack.c.l.s4 1983009808
    %v478 = vunpack.c.0.s8 %v477
    %v479 = vlaneseq
    %v480 = vshrl.u32 %v479, 7
    %v481 = vsub.s32 %v478, %v480
    %v482 = vrot.slane %v475, %v481
    %483 = vrot.lane.b32.xlu0 %v482, 96
    %v484 = vpop.permute.xlu0 %483
    %vm486 = vcmask 911104
    %487 = vst.msk [vmem:[#allocation2] sm:$0x3] %vm486, %v484
    %v488 = vcombine.high %v482, %v482
    %489 = vrot.lane.b32.xlu0 %v488, 112
    %v490 = vpop.permute.xlu0 %489
    %vm492 = vcmask 1042304
    %493 = vst.msk [vmem:[#allocation2] sm:$0x3] %vm492, %v490
    %494 = vst.msk [vmem:[#allocation2 + $0x2] sm:$0x3] %vm421, %v419
    %v497 = vunpack.c.l.s4 1983009808
    %v498 = vunpack.c.0.s8 %v497
    %v499 = vlaneseq
    %v500 = vshrl.u32 %v499, 7
    %v501 = vsub.s32 %v498, %v500
    %v502 = vrot.slane %v419, %v501
    %v503 = vcombine.high %v502, %v502
    %504 = vrot.lane.b32.xlu0 %v503, 16
    %v505 = vpop.permute.xlu0 %504
    %507 = vst.msk [vmem:[#allocation2 + $0x2] sm:$0x3] %vm435, %v505
    %v508 = vcombine.high %v419, %v419
    %v510 = vunpack.c.l.s4 1983009808
    %v511 = vunpack.c.0.s8 %v510
    %v512 = vlaneseq
    %v513 = vshrl.u32 %v512, 7
    %v514 = vsub.s32 %v511, %v513
    %v515 = vrot.slane %v508, %v514
    %516 = vrot.lane.b32.xlu0 %v515, 32
    %v517 = vpop.permute.xlu0 %516
    %519 = vst.msk [vmem:[#allocation2 + $0x2] sm:$0x3] %vm448, %v517
    %v520 = vcombine.high %v515, %v515
    %521 = vrot.lane.b32.xlu0 %v520, 48
    %v522 = vpop.permute.xlu0 %521
    %524 = vst.msk [vmem:[#allocation2 + $0x2] sm:$0x3] %vm454, %v522
    %v527 = vunpack.c.l.s4 1983009808
    %v528 = vunpack.c.0.s8 %v527
    %v529 = vlaneseq
    %v530 = vshrl.u32 %v529, 7
    %v531 = vsub.s32 %v528, %v530
    %v532 = vrot.slane %v420, %v531
    %533 = vrot.lane.b32.xlu0 %v532, 64
    %v534 = vpop.permute.xlu0 %533
    %536 = vst.msk [vmem:[#allocation2 + $0x2] sm:$0x3] %vm467, %v534
    %v537 = vcombine.high %v532, %v532
    %538 = vrot.lane.b32.xlu0 %v537, 80
    %v539 = vpop.permute.xlu0 %538
    %541 = vst.msk [vmem:[#allocation2 + $0x2] sm:$0x3] %vm473, %v539
    %v542 = vcombine.high %v420, %v420
    %v544 = vunpack.c.l.s4 1983009808
    %v545 = vunpack.c.0.s8 %v544
    %v546 = vlaneseq
    %v547 = vshrl.u32 %v546, 7
    %v548 = vsub.s32 %v545, %v547
    %v549 = vrot.slane %v542, %v548
    %550 = vrot.lane.b32.xlu0 %v549, 96
    %v551 = vpop.permute.xlu0 %550
    %553 = vst.msk [vmem:[#allocation2 + $0x2] sm:$0x3] %vm486, %v551
    %v554 = vcombine.high %v549, %v549
    %555 = vrot.lane.b32.xlu0 %v554, 112
    %v556 = vpop.permute.xlu0 %555
    %558 = vst.msk [vmem:[#allocation2 + $0x2] sm:$0x3] %vm492, %v556
    %v559 = vld [vmem:[#allocation2] sm:$0xf]
    %v560 = vld [vmem:[%s4] sm:$0xff]
    %v561 = vld [vmem:[%s4 + $0x8] sm:$0xff]
    %v562 = vld [vmem:[%s4 + $0x10] sm:$0xff]
    %v563 = vld [vmem:[%s4 + $0x18] sm:$0xff]
    %v564 = vld [vmem:[%s4 + $0x20] sm:$0xff]
    %v565 = vld [vmem:[%s4 + $0x28] sm:$0xff]
    %v566 = vld [vmem:[%s4 + $0x30] sm:$0xff]
    %v567 = vld [vmem:[%s4 + $0x38] sm:$0xff]
    %v568 = vld [vmem:[%s4 + $0x40] sm:$0xff]
    %v569 = vld [vmem:[%s4 + $0x48] sm:$0xff]
    %v570 = vld [vmem:[%s4 + $0x50] sm:$0xff]
    %v571 = vld [vmem:[%s4 + $0x58] sm:$0xff]
    %v572 = vld [vmem:[%s4 + $0x60] sm:$0xff]
    %v573 = vld [vmem:[%s4 + $0x68] sm:$0xff]
    %v574 = vld [vmem:[%s4 + $0x70] sm:$0xff]
    %v575 = vld [vmem:[%s4 + $0x78] sm:$0xff]
    %v576 = vld [vmem:[%s4 + $0x80] sm:$0xff]
    %v577 = vld [vmem:[%s4 + $0x88] sm:$0xff]
    %v578 = vld [vmem:[%s4 + $0x90] sm:$0xff]
    %v579 = vld [vmem:[%s4 + $0x98] sm:$0xff]
    %v580 = vld [vmem:[%s4 + $0xa0] sm:$0xff]
    %v581 = vld [vmem:[%s4 + $0xa8] sm:$0xff]
    %v582 = vld [vmem:[%s4 + $0xb0] sm:$0xff]
    %v583 = vld [vmem:[%s4 + $0xb8] sm:$0xff]
    %v584 = vld [vmem:[%s4 + $0xc0] sm:$0xff]
    %v585 = vld [vmem:[%s4 + $0xc8] sm:$0xff]
    %v586 = vld [vmem:[%s4 + $0xd0] sm:$0xff]
    %v587 = vld [vmem:[%s4 + $0xd8] sm:$0xff]
    %v588 = vld [vmem:[%s4 + $0xe0] sm:$0xff]
    %v589 = vld [vmem:[%s4 + $0xe8] sm:$0xff]
    %v590 = vld [vmem:[%s4 + $0xf0] sm:$0xff]
    %v591 = vld [vmem:[%s4 + $0xf8] sm:$0xff]
    %v592 = vld [vmem:[%s5] sm:$0x1]
    %v594 = vlaneseq
    %v595 = vshrl.u32 %v594, 7
    %v596 = vsub.s32 0, %v595
    %v597 = vrot.slane %v592, %v596
    %v601 = vunpack.c.l.s4 1983009808
    %v602 = vunpack.c.0.s8 %v601
    %v603 = vlaneseq
    %v604 = vshrl.u32 %v603, 7
    %v605 = vsub.s32 %v602, %v604
    %v606 = vrot.slane %v559, %v605
    %v607 = vcombine.high %v606, %v606
    %610 = vmatprep.subr.mxu0 0.0
    %611 = vmatpush1.msra.mxu0 %v575
    %612 = vmatprep.subr.mxu0 0.0
    %613 = vmatpush1.msra.mxu0 %v574
    %614 = vmatprep.subr.mxu0 0.0
    %615 = vmatpush1.msra.mxu0 %v573
    %616 = vmatprep.subr.mxu0 0.0
    %617 = vmatpush1.msra.mxu0 %v572
    %618 = vmatprep.subr.mxu0 0.0
    %619 = vmatpush1.msra.mxu0 %v571
    %620 = vmatprep.subr.mxu0 0.0
    %621 = vmatpush1.msra.mxu0 %v570
    %622 = vmatprep.subr.mxu0 0.0
    %623 = vmatpush1.msra.mxu0 %v569
    %624 = vmatprep.subr.mxu0 0.0
    %625 = vmatpush1.msra.mxu0 %v568
    %626 = vmatprep.subr.mxu0 0.0
    %627 = vmatpush1.msra.mxu0 %v567
    %628 = vmatprep.subr.mxu0 0.0
    %629 = vmatpush1.msra.mxu0 %v566
    %630 = vmatprep.subr.mxu0 0.0
    %631 = vmatpush1.msra.mxu0 %v565
    %632 = vmatprep.subr.mxu0 0.0
    %633 = vmatpush1.msra.mxu0 %v564
    %634 = vmatprep.subr.mxu0 0.0
    %635 = vmatpush1.msra.mxu0 %v563
    %636 = vmatprep.subr.mxu0 0.0
    %637 = vmatpush1.msra.mxu0 %v562
    %638 = vmatprep.subr.mxu0 0.0
    %639 = vmatpush1.msra.mxu0 %v561
    %640 = vmatprep.subr.mxu0 0.0
    %641 = vmatpush1.msra.mxu0 %v560
    %642 = vmatprep.subr.mxu0 0.0
    %643 = vmatpush2.msra.mxu0 %v591
    %644 = vmatprep.subr.mxu0 0.0
    %645 = vmatpush2.msra.mxu0 %v590
    %646 = vmatprep.subr.mxu0 0.0
    %647 = vmatpush2.msra.mxu0 %v589
    %648 = vmatprep.subr.mxu0 0.0
    %649 = vmatpush2.msra.mxu0 %v588
    %650 = vmatprep.subr.mxu0 0.0
    %651 = vmatpush2.msra.mxu0 %v587
    %652 = vmatprep.subr.mxu0 0.0
    %653 = vmatpush2.msra.mxu0 %v586
    %654 = vmatprep.subr.mxu0 0.0
    %655 = vmatpush2.msra.mxu0 %v585
    %656 = vmatprep.subr.mxu0 0.0
    %657 = vmatpush2.msra.mxu0 %v584
    %658 = vmatprep.subr.mxu0 0.0
    %659 = vmatpush2.msra.mxu0 %v583
    %660 = vmatprep.subr.mxu0 0.0
    %661 = vmatpush2.msra.mxu0 %v582
    %662 = vmatprep.subr.mxu0 0.0
    %663 = vmatpush2.msra.mxu0 %v581
    %664 = vmatprep.subr.mxu0 0.0
    %665 = vmatpush2.msra.mxu0 %v580
    %666 = vmatprep.subr.mxu0 0.0
    %667 = vmatpush2.msra.mxu0 %v579
    %668 = vmatprep.subr.mxu0 0.0
    %669 = vmatpush2.msra.mxu0 %v578
    %670 = vmatprep.subr.mxu0 0.0
    %671 = vmatpush2.msra.mxu0 %v577
    %672 = vmatprep.subr.mxu0 0.0
    %673 = vmatpush2.msra.mxu0 %v576
    %674 = vmatprep.mubr.f32.mxu0 %v607
    %675 = vmatmul.mubr.f32.gmra.mxu0 %v606
    %v676 = vpop.f32.mrf.mxu0
    %v677 = vadd.f32 %v597, %v676
    %v678 = vpop.f32.mrf.mxu0
    %679 = vdwg.mxu0
    %v680 = vmax.f32 %v677, 0.0
    %v681 = vld [vmem:[%s6] sm:$0xff]
    %v682 = vld [vmem:[%s6 + $0x8] sm:$0xff]
    %v683 = vld [vmem:[%s6 + $0x10] sm:$0xff]
    %v684 = vld [vmem:[%s6 + $0x18] sm:$0xff]
    %v685 = vld [vmem:[%s6 + $0x20] sm:$0xff]
    %v686 = vld [vmem:[%s6 + $0x28] sm:$0xff]
    %v687 = vld [vmem:[%s6 + $0x30] sm:$0xff]
    %v688 = vld [vmem:[%s6 + $0x38] sm:$0xff]
    %v689 = vld [vmem:[%s6 + $0x40] sm:$0xff]
    %v690 = vld [vmem:[%s6 + $0x48] sm:$0xff]
    %v691 = vld [vmem:[%s6 + $0x50] sm:$0xff]
    %v692 = vld [vmem:[%s6 + $0x58] sm:$0xff]
    %v693 = vld [vmem:[%s6 + $0x60] sm:$0xff]
    %v694 = vld [vmem:[%s6 + $0x68] sm:$0xff]
    %v695 = vld [vmem:[%s6 + $0x70] sm:$0xff]
    %v696 = vld [vmem:[%s6 + $0x78] sm:$0xff]
    %v697 = vld [vmem:[%s6 + $0x80] sm:$0xff]
    %v698 = vld [vmem:[%s6 + $0x88] sm:$0xff]
    %v699 = vld [vmem:[%s6 + $0x90] sm:$0xff]
    %v700 = vld [vmem:[%s6 + $0x98] sm:$0xff]
    %v701 = vld [vmem:[%s6 + $0xa0] sm:$0xff]
    %v702 = vld [vmem:[%s6 + $0xa8] sm:$0xff]
    %v703 = vld [vmem:[%s6 + $0xb0] sm:$0xff]
    %v704 = vld [vmem:[%s6 + $0xb8] sm:$0xff]
    %v705 = vld [vmem:[%s6 + $0xc0] sm:$0xff]
    %v706 = vld [vmem:[%s6 + $0xc8] sm:$0xff]
    %v707 = vld [vmem:[%s6 + $0xd0] sm:$0xff]
    %v708 = vld [vmem:[%s6 + $0xd8] sm:$0xff]
    %v709 = vld [vmem:[%s6 + $0xe0] sm:$0xff]
    %v710 = vld [vmem:[%s6 + $0xe8] sm:$0xff]
    %v711 = vld [vmem:[%s6 + $0xf0] sm:$0xff]
    %v712 = vld [vmem:[%s6 + $0xf8] sm:$0xff]
    %v713 = vld [vmem:[%s7] sm:$0xf]
    %v715 = vlaneseq
    %v716 = vshrl.u32 %v715, 7
    %v717 = vsub.s32 0, %v716
    %v718 = vrot.slane %v713, %v717
    %v719 = vlaneseq
    %v720 = vshrl.u32 %v719, 7
    %v721 = vsub.s32 1, %v720
    %v722 = vrot.slane %v713, %v721
    %v723 = vlaneseq
    %v724 = vshrl.u32 %v723, 7
    %v725 = vsub.s32 2, %v724
    %v726 = vrot.slane %v713, %v725
    %v727 = vlaneseq
    %v728 = vshrl.u32 %v727, 7
    %v729 = vsub.s32 3, %v728
    %v730 = vrot.slane %v713, %v729
    %vm735 = vcmask 523264
    %v737 = vsel %vm735, %v680, 0
    %739 = vmatprep.subr.mxu0 0.0
    %740 = vmatpush1.msra.mxu0 0.0
    %741 = vmatprep.subr.mxu0 0.0
    %742 = vmatpush1.msra.mxu0 0.0
    %743 = vmatprep.subr.mxu0 0.0
    %744 = vmatpush1.msra.mxu0 0.0
    %745 = vmatprep.subr.mxu0 0.0
    %746 = vmatpush1.msra.mxu0 0.0
    %747 = vmatprep.subr.mxu0 0.0
    %748 = vmatpush1.msra.mxu0 0.0
    %749 = vmatprep.subr.mxu0 0.0
    %750 = vmatpush1.msra.mxu0 0.0
    %751 = vmatprep.subr.mxu0 0.0
    %752 = vmatpush1.msra.mxu0 0.0
    %753 = vmatprep.subr.mxu0 0.0
    %754 = vmatpush1.msra.mxu0 0.0
    %755 = vmatprep.subr.mxu0 %v710
    %756 = vmatpush1.msra.mxu0 %v709
    %757 = vmatprep.subr.mxu0 %v706
    %758 = vmatpush1.msra.mxu0 %v705
    %759 = vmatprep.subr.mxu0 %v702
    %760 = vmatpush1.msra.mxu0 %v701
    %761 = vmatprep.subr.mxu0 %v698
    %762 = vmatpush1.msra.mxu0 %v697
    %763 = vmatprep.subr.mxu0 %v694
    %764 = vmatpush1.msra.mxu0 %v693
    %765 = vmatprep.subr.mxu0 %v690
    %766 = vmatpush1.msra.mxu0 %v689
    %767 = vmatprep.subr.mxu0 %v686
    %768 = vmatpush1.msra.mxu0 %v685
    %769 = vmatprep.subr.mxu0 %v682
    %770 = vmatpush1.msra.mxu0 %v681
    %771 = vmatprep.subr.mxu0 0.0
    %772 = vmatpush2.msra.mxu0 0.0
    %773 = vmatprep.subr.mxu0 0.0
    %774 = vmatpush2.msra.mxu0 0.0
    %775 = vmatprep.subr.mxu0 0.0
    %776 = vmatpush2.msra.mxu0 0.0
    %777 = vmatprep.subr.mxu0 0.0
    %778 = vmatpush2.msra.mxu0 0.0
    %779 = vmatprep.subr.mxu0 0.0
    %780 = vmatpush2.msra.mxu0 0.0
    %781 = vmatprep.subr.mxu0 0.0
    %782 = vmatpush2.msra.mxu0 0.0
    %783 = vmatprep.subr.mxu0 0.0
    %784 = vmatpush2.msra.mxu0 0.0
    %785 = vmatprep.subr.mxu0 0.0
    %786 = vmatpush2.msra.mxu0 0.0
    %787 = vmatprep.subr.mxu0 0.0
    %788 = vmatpush2.msra.mxu0 0.0
    %789 = vmatprep.subr.mxu0 0.0
    %790 = vmatpush2.msra.mxu0 0.0
    %791 = vmatprep.subr.mxu0 0.0
    %792 = vmatpush2.msra.mxu0 0.0
    %793 = vmatprep.subr.mxu0 0.0
    %794 = vmatpush2.msra.mxu0 0.0
    %795 = vmatprep.subr.mxu0 0.0
    %796 = vmatpush2.msra.mxu0 0.0
    %797 = vmatprep.subr.mxu0 0.0
    %798 = vmatpush2.msra.mxu0 0.0
    %799 = vmatprep.subr.mxu0 0.0
    %800 = vmatpush2.msra.mxu0 0.0
    %801 = vmatprep.subr.mxu0 0.0
    %802 = vmatpush2.msra.mxu0 0.0
    %803 = vmatprep.mubr.f32.mxu0 0.0
    %804 = vmatmul.mubr.f32.gmra.mxu0 %v737
    %v805 = vpop.f32.mrf.mxu0
    %v806 = vadd.f32 %v718, %v805
    %v807 = vpop.f32.mrf.mxu0
    %v808 = vadd.f32 %v722, %v807
    %809 = vdwg.mxu0
    %810 = vmatprep.subr.mxu0 0.0
    %811 = vmatpush1.msra.mxu0 0.0
    %812 = vmatprep.subr.mxu0 0.0
    %813 = vmatpush1.msra.mxu0 0.0
    %814 = vmatprep.subr.mxu0 0.0
    %815 = vmatpush1.msra.mxu0 0.0
    %816 = vmatprep.subr.mxu0 0.0
    %817 = vmatpush1.msra.mxu0 0.0
    %818 = vmatprep.subr.mxu0 0.0
    %819 = vmatpush1.msra.mxu0 0.0
    %820 = vmatprep.subr.mxu0 0.0
    %821 = vmatpush1.msra.mxu0 0.0
    %822 = vmatprep.subr.mxu0 0.0
    %823 = vmatpush1.msra.mxu0 0.0
    %824 = vmatprep.subr.mxu0 0.0
    %825 = vmatpush1.msra.mxu0 0.0
    %826 = vmatprep.subr.mxu0 %v712
    %827 = vmatpush1.msra.mxu0 %v711
    %828 = vmatprep.subr.mxu0 %v708
    %829 = vmatpush1.msra.mxu0 %v707
    %830 = vmatprep.subr.mxu0 %v704
    %831 = vmatpush1.msra.mxu0 %v703
    %832 = vmatprep.subr.mxu0 %v700
    %833 = vmatpush1.msra.mxu0 %v699
    %834 = vmatprep.subr.mxu0 %v696
    %835 = vmatpush1.msra.mxu0 %v695
    %836 = vmatprep.subr.mxu0 %v692
    %837 = vmatpush1.msra.mxu0 %v691
    %838 = vmatprep.subr.mxu0 %v688
    %839 = vmatpush1.msra.mxu0 %v687
    %840 = vmatprep.subr.mxu0 %v684
    %841 = vmatpush1.msra.mxu0 %v683
    %842 = vmatprep.subr.mxu0 0.0
    %843 = vmatpush2.msra.mxu0 0.0
    %844 = vmatprep.subr.mxu0 0.0
    %845 = vmatpush2.msra.mxu0 0.0
    %846 = vmatprep.subr.mxu0 0.0
    %847 = vmatpush2.msra.mxu0 0.0
    %848 = vmatprep.subr.mxu0 0.0
    %849 = vmatpush2.msra.mxu0 0.0
    %850 = vmatprep.subr.mxu0 0.0
    %851 = vmatpush2.msra.mxu0 0.0
    %852 = vmatprep.subr.mxu0 0.0
    %853 = vmatpush2.msra.mxu0 0.0
    %854 = vmatprep.subr.mxu0 0.0
    %855 = vmatpush2.msra.mxu0 0.0
    %856 = vmatprep.subr.mxu0 0.0
    %857 = vmatpush2.msra.mxu0 0.0
    %858 = vmatprep.subr.mxu0 0.0
    %859 = vmatpush2.msra.mxu0 0.0
    %860 = vmatprep.subr.mxu0 0.0
    %861 = vmatpush2.msra.mxu0 0.0
    %862 = vmatprep.subr.mxu0 0.0
    %863 = vmatpush2.msra.mxu0 0.0
    %864 = vmatprep.subr.mxu0 0.0
    %865 = vmatpush2.msra.mxu0 0.0
    %866 = vmatprep.subr.mxu0 0.0
    %867 = vmatpush2.msra.mxu0 0.0
    %868 = vmatprep.subr.mxu0 0.0
    %869 = vmatpush2.msra.mxu0 0.0
    %870 = vmatprep.subr.mxu0 0.0
    %871 = vmatpush2.msra.mxu0 0.0
    %872 = vmatprep.subr.mxu0 0.0
    %873 = vmatpush2.msra.mxu0 0.0
    %874 = vmatprep.mubr.f32.mxu0 0.0
    %875 = vmatmul.mubr.f32.gmra.mxu0 %v737
    %v876 = vpop.f32.mrf.mxu0
    %v877 = vadd.f32 %v726, %v876
    %v878 = vpop.f32.mrf.mxu0
    %v879 = vadd.f32 %v730, %v878
    %880 = vdwg.mxu0
    %v881 = vmax.f32 %v806, 0.0
    %v882 = vmax.f32 %v808, 0.0
    %v883 = vmax.f32 %v877, 0.0
    %v884 = vmax.f32 %v879, 0.0
    %v889 = vcombine.low %v881, %v882
    %v890 = vcombine.low %v883, %v884
    %v892 = vunpack.c.l.s4 1983009808
    %v893 = vunpack.c.0.s8 %v892
    %v894 = vlaneseq
    %v895 = vshrl.u32 %v894, 7
    %v896 = vsub.s32 %v893, %v895
    %v897 = vrot.slane %v889, %v896
    %v899 = vunpack.c.l.s4 1983009808
    %v900 = vunpack.c.0.s8 %v899
    %v901 = vlaneseq
    %v902 = vshrl.u32 %v901, 7
    %v903 = vsub.s32 %v900, %v902
    %v904 = vrot.slane %v890, %v903
    %v905 = vcombine.low %v897, %v904
    %907 = vst [vmem:[#allocation3] sm:$0xff] %v905
    %v908 = vld [vmem:[%s1] sm:$0x3]
    %909 = vst [vmem:[#allocation3 + $0x8] sm:$0x3] %v908
    %v910 = vld [vmem:[#allocation3] sm:$0xff]
    %v911 = vld [vmem:[#allocation3 + $0x8] sm:$0x3]
    %v914 = vcombine.high %v910, %v910
    %v916 = vunpack.c.l.s4 1983009808
    %v917 = vunpack.c.0.s8 %v916
    %v918 = vlaneseq
    %v919 = vshrl.u32 %v918, 7
    %v920 = vsub.s32 %v917, %v919
    %v921 = vrot.slane %v910, %v920
    %v923 = vunpack.c.l.s4 1983009808
    %v924 = vunpack.c.0.s8 %v923
    %v925 = vlaneseq
    %v926 = vshrl.u32 %v925, 7
    %v927 = vsub.s32 %v924, %v926
    %v928 = vrot.slane %v914, %v927
    %v929 = vcombine.high %v921, %v921
    %v930 = vcombine.high %v928, %v928
    %v932 = vunpack.c.l.s4 1983009808
    %v933 = vunpack.c.0.s8 %v932
    %v934 = vlaneseq
    %v935 = vshrl.u32 %v934, 7
    %v936 = vsub.s32 %v933, %v935
    %v937 = vrot.slane %v911, %v936
    %v943 = vpack.c.bf16 %v921, %v921
    %v944 = vpack.c.bf16 %v929, %v929
    %v945 = vpack.c.bf16 %v928, %v928
    %v946 = vpack.c.bf16 %v930, %v930
    %v947 = vpack.c.bf16 %v937, %v937
    %v948 = vld [vmem:[%s8] sm:$0xff]
    %v949 = vld [vmem:[%s8 + $0x8] sm:$0xff]
    %v950 = vld [vmem:[%s8 + $0x10] sm:$0xf]
    %v951 = vld [vmem:[%s8 + $0x14] sm:$0xff]
    %v952 = vld [vmem:[%s8 + $0x1c] sm:$0xff]
    %v953 = vld [vmem:[%s8 + $0x24] sm:$0xf]
    %v954 = vld [vmem:[%s8 + $0x28] sm:$0xff]
    %v955 = vld [vmem:[%s8 + $0x30] sm:$0xff]
    %v956 = vld [vmem:[%s8 + $0x38] sm:$0xf]
    %v957 = vld [vmem:[%s8 + $0x3c] sm:$0xff]
    %v958 = vld [vmem:[%s8 + $0x44] sm:$0xff]
    %v959 = vld [vmem:[%s8 + $0x4c] sm:$0xf]
    %v960 = vld [vmem:[%s8 + $0x50] sm:$0xff]
    %v961 = vld [vmem:[%s8 + $0x58] sm:$0xff]
    %v962 = vld [vmem:[%s8 + $0x60] sm:$0xf]
    %v963 = vld [vmem:[%s8 + $0x64] sm:$0xff]
    %v964 = vld [vmem:[%s8 + $0x6c] sm:$0xff]
    %v965 = vld [vmem:[%s8 + $0x74] sm:$0xf]
    %v966 = vld [vmem:[%s8 + $0x78] sm:$0xff]
    %v967 = vld [vmem:[%s8 + $0x80] sm:$0xff]
    %v968 = vld [vmem:[%s8 + $0x88] sm:$0xf]
    %v969 = vld [vmem:[%s8 + $0x8c] sm:$0xff]
    %v970 = vld [vmem:[%s8 + $0x94] sm:$0xff]
    %v971 = vld [vmem:[%s8 + $0x9c] sm:$0xf]
    %v972 = vld [vmem:[%s8 + $0xa0] sm:$0xff]
    %v973 = vld [vmem:[%s8 + $0xa8] sm:$0xff]
    %v974 = vld [vmem:[%s8 + $0xb0] sm:$0xf]
    %v975 = vld [vmem:[%s8 + $0xb4] sm:$0xff]
    %v976 = vld [vmem:[%s8 + $0xbc] sm:$0xff]
    %v977 = vld [vmem:[%s8 + $0xc4] sm:$0xf]
    %v978 = vld [vmem:[%s8 + $0xc8] sm:$0xff]
    %v979 = vld [vmem:[%s8 + $0xd0] sm:$0xff]
    %v980 = vld [vmem:[%s8 + $0xd8] sm:$0xf]
    %v981 = vld [vmem:[%s8 + $0xdc] sm:$0xff]
    %v982 = vld [vmem:[%s8 + $0xe4] sm:$0xff]
    %v983 = vld [vmem:[%s8 + $0xec] sm:$0xf]
    %v984 = vld [vmem:[%s8 + $0xf0] sm:$0xff]
    %v985 = vld [vmem:[%s8 + $0xf8] sm:$0xff]
    %v986 = vld [vmem:[%s8 + $0x100] sm:$0xf]
    %v987 = vld [vmem:[%s8 + $0x104] sm:$0xff]
    %v988 = vld [vmem:[%s8 + $0x10c] sm:$0xff]
    %v989 = vld [vmem:[%s8 + $0x114] sm:$0xf]
    %v990 = vld [vmem:[%s8 + $0x118] sm:$0xff]
    %v991 = vld [vmem:[%s8 + $0x120] sm:$0xff]
    %v992 = vld [vmem:[%s8 + $0x128] sm:$0xf]
    %v993 = vld [vmem:[%s8 + $0x12c] sm:$0xff]
    %v994 = vld [vmem:[%s8 + $0x134] sm:$0xff]
    %v995 = vld [vmem:[%s8 + $0x13c] sm:$0xf]
    %v996 = vld [vmem:[%s8 + $0x140] sm:$0xff]
    %v997 = vld [vmem:[%s8 + $0x148] sm:$0xff]
    %v998 = vld [vmem:[%s8 + $0x150] sm:$0xf]
    %v999 = vld [vmem:[%s8 + $0x154] sm:$0xff]
    %v1000 = vld [vmem:[%s8 + $0x15c] sm:$0xff]
    %v1001 = vld [vmem:[%s8 + $0x164] sm:$0xf]
    %v1002 = vld [vmem:[%s8 + $0x168] sm:$0xff]
    %v1003 = vld [vmem:[%s8 + $0x170] sm:$0xff]
    %v1004 = vld [vmem:[%s8 + $0x178] sm:$0xf]
    %v1005 = vld [vmem:[%s8 + $0x17c] sm:$0xff]
    %v1006 = vld [vmem:[%s8 + $0x184] sm:$0xff]
    %v1007 = vld [vmem:[%s8 + $0x18c] sm:$0xf]
    %v1008 = vld [vmem:[%s8 + $0x190] sm:$0xff]
    %v1009 = vld [vmem:[%s8 + $0x198] sm:$0xff]
    %v1010 = vld [vmem:[%s8 + $0x1a0] sm:$0xf]
    %v1011 = vld [vmem:[%s8 + $0x1a4] sm:$0xff]
    %v1012 = vld [vmem:[%s8 + $0x1ac] sm:$0xff]
    %v1013 = vld [vmem:[%s8 + $0x1b4] sm:$0xf]
    %v1014 = vld [vmem:[%s8 + $0x1b8] sm:$0xff]
    %v1015 = vld [vmem:[%s8 + $0x1c0] sm:$0xff]
    %v1016 = vld [vmem:[%s8 + $0x1c8] sm:$0xf]
    %v1017 = vld [vmem:[%s8 + $0x1cc] sm:$0xff]
    %v1018 = vld [vmem:[%s8 + $0x1d4] sm:$0xff]
    %v1019 = vld [vmem:[%s8 + $0x1dc] sm:$0xf]
    %v1020 = vld [vmem:[%s8 + $0x1e0] sm:$0xff]
    %v1021 = vld [vmem:[%s8 + $0x1e8] sm:$0xff]
    %v1022 = vld [vmem:[%s8 + $0x1f0] sm:$0xf]
    %v1023 = vld [vmem:[%s8 + $0x1f4] sm:$0xff]
    %v1024 = vld [vmem:[%s8 + $0x1fc] sm:$0xff]
    %v1025 = vld [vmem:[%s8 + $0x204] sm:$0xf]
    %v1026 = vld [vmem:[%s8 + $0x208] sm:$0xff]
    %v1027 = vld [vmem:[%s8 + $0x210] sm:$0xff]
    %v1028 = vld [vmem:[%s8 + $0x218] sm:$0xf]
    %v1029 = vld [vmem:[%s8 + $0x21c] sm:$0xff]
    %v1030 = vld [vmem:[%s8 + $0x224] sm:$0xff]
    %v1031 = vld [vmem:[%s8 + $0x22c] sm:$0xf]
    %v1032 = vld [vmem:[%s8 + $0x230] sm:$0xff]
    %v1033 = vld [vmem:[%s8 + $0x238] sm:$0xff]
    %v1034 = vld [vmem:[%s8 + $0x240] sm:$0xf]
    %v1035 = vld [vmem:[%s8 + $0x244] sm:$0xff]
    %v1036 = vld [vmem:[%s8 + $0x24c] sm:$0xff]
    %v1037 = vld [vmem:[%s8 + $0x254] sm:$0xf]
    %v1038 = vld [vmem:[%s8 + $0x258] sm:$0xff]
    %v1039 = vld [vmem:[%s8 + $0x260] sm:$0xff]
    %v1040 = vld [vmem:[%s8 + $0x268] sm:$0xf]
    %v1041 = vld [vmem:[%s8 + $0x26c] sm:$0xff]
    %v1042 = vld [vmem:[%s8 + $0x274] sm:$0xff]
    %v1043 = vld [vmem:[%s8 + $0x27c] sm:$0xf]
    %v1044 = vld [vmem:[%s8 + $0x280] sm:$0xff]
    %v1045 = vld [vmem:[%s8 + $0x288] sm:$0xff]
    %v1046 = vld [vmem:[%s8 + $0x290] sm:$0xf]
    %v1047 = vld [vmem:[%s8 + $0x294] sm:$0xff]
    %v1048 = vld [vmem:[%s8 + $0x29c] sm:$0xff]
    %v1049 = vld [vmem:[%s8 + $0x2a4] sm:$0xf]
    %v1050 = vld [vmem:[%s8 + $0x2a8] sm:$0xff]
    %v1051 = vld [vmem:[%s8 + $0x2b0] sm:$0xff]
    %v1052 = vld [vmem:[%s8 + $0x2b8] sm:$0xf]
    %v1053 = vld [vmem:[%s8 + $0x2bc] sm:$0xff]
    %v1054 = vld [vmem:[%s8 + $0x2c4] sm:$0xff]
    %v1055 = vld [vmem:[%s8 + $0x2cc] sm:$0xf]
    %v1056 = vld [vmem:[%s8 + $0x2d0] sm:$0xff]
    %v1057 = vld [vmem:[%s8 + $0x2d8] sm:$0xff]
    %v1058 = vld [vmem:[%s8 + $0x2e0] sm:$0xf]
    %v1059 = vld [vmem:[%s8 + $0x2e4] sm:$0xff]
    %v1060 = vld [vmem:[%s8 + $0x2ec] sm:$0xff]
    %v1061 = vld [vmem:[%s8 + $0x2f4] sm:$0xf]
    %v1062 = vld [vmem:[%s8 + $0x2f8] sm:$0xff]
    %v1063 = vld [vmem:[%s8 + $0x300] sm:$0xff]
    %v1064 = vld [vmem:[%s8 + $0x308] sm:$0xf]
    %v1065 = vld [vmem:[%s8 + $0x30c] sm:$0xff]
    %v1066 = vld [vmem:[%s8 + $0x314] sm:$0xff]
    %v1067 = vld [vmem:[%s8 + $0x31c] sm:$0xf]
    %v1068 = vld [vmem:[%s8 + $0x320] sm:$0xff]
    %v1069 = vld [vmem:[%s8 + $0x328] sm:$0xff]
    %v1070 = vld [vmem:[%s8 + $0x330] sm:$0xf]
    %v1071 = vld [vmem:[%s8 + $0x334] sm:$0xff]
    %v1072 = vld [vmem:[%s8 + $0x33c] sm:$0xff]
    %v1073 = vld [vmem:[%s8 + $0x344] sm:$0xf]
    %v1074 = vld [vmem:[%s8 + $0x348] sm:$0xff]
    %v1075 = vld [vmem:[%s8 + $0x350] sm:$0xff]
    %v1076 = vld [vmem:[%s8 + $0x358] sm:$0xf]
    %v1077 = vld [vmem:[%s8 + $0x35c] sm:$0xff]
    %v1078 = vld [vmem:[%s8 + $0x364] sm:$0xff]
    %v1079 = vld [vmem:[%s8 + $0x36c] sm:$0xf]
    %v1080 = vld [vmem:[%s8 + $0x370] sm:$0xff]
    %v1081 = vld [vmem:[%s8 + $0x378] sm:$0xff]
    %v1082 = vld [vmem:[%s8 + $0x380] sm:$0xf]
    %v1083 = vld [vmem:[%s8 + $0x384] sm:$0xff]
    %v1084 = vld [vmem:[%s8 + $0x38c] sm:$0xff]
    %v1085 = vld [vmem:[%s8 + $0x394] sm:$0xf]
    %v1086 = vld [vmem:[%s8 + $0x398] sm:$0xff]
    %v1087 = vld [vmem:[%s8 + $0x3a0] sm:$0xff]
    %v1088 = vld [vmem:[%s8 + $0x3a8] sm:$0xf]
    %v1089 = vld [vmem:[%s8 + $0x3ac] sm:$0xff]
    %v1090 = vld [vmem:[%s8 + $0x3b4] sm:$0xff]
    %v1091 = vld [vmem:[%s8 + $0x3bc] sm:$0xf]
    %v1092 = vld [vmem:[%s8 + $0x3c0] sm:$0xff]
    %v1093 = vld [vmem:[%s8 + $0x3c8] sm:$0xff]
    %v1094 = vld [vmem:[%s8 + $0x3d0] sm:$0xf]
    %v1095 = vld [vmem:[%s8 + $0x3d4] sm:$0xff]
    %v1096 = vld [vmem:[%s8 + $0x3dc] sm:$0xff]
    %v1097 = vld [vmem:[%s8 + $0x3e4] sm:$0xf]
    %v1098 = vld [vmem:[%s8 + $0x3e8] sm:$0xff]
    %v1099 = vld [vmem:[%s8 + $0x3f0] sm:$0xff]
    %v1100 = vld [vmem:[%s8 + $0x3f8] sm:$0xf]
    %v1101 = vld [vmem:[%s8 + $0x3fc] sm:$0xff]
    %v1102 = vld [vmem:[%s8 + $0x404] sm:$0xff]
    %v1103 = vld [vmem:[%s8 + $0x40c] sm:$0xf]
    %v1104 = vld [vmem:[%s8 + $0x410] sm:$0xff]
    %v1105 = vld [vmem:[%s8 + $0x418] sm:$0xff]
    %v1106 = vld [vmem:[%s8 + $0x420] sm:$0xf]
    %v1107 = vld [vmem:[%s8 + $0x424] sm:$0xff]
    %v1108 = vld [vmem:[%s8 + $0x42c] sm:$0xff]
    %v1109 = vld [vmem:[%s8 + $0x434] sm:$0xf]
    %v1110 = vld [vmem:[%s8 + $0x438] sm:$0xff]
    %v1111 = vld [vmem:[%s8 + $0x440] sm:$0xff]
    %v1112 = vld [vmem:[%s8 + $0x448] sm:$0xf]
    %v1113 = vld [vmem:[%s8 + $0x44c] sm:$0xff]
    %v1114 = vld [vmem:[%s8 + $0x454] sm:$0xff]
    %v1115 = vld [vmem:[%s8 + $0x45c] sm:$0xf]
    %v1116 = vld [vmem:[%s8 + $0x460] sm:$0xff]
    %v1117 = vld [vmem:[%s8 + $0x468] sm:$0xff]
    %v1118 = vld [vmem:[%s8 + $0x470] sm:$0xf]
    %v1119 = vld [vmem:[%s8 + $0x474] sm:$0xff]
    %v1120 = vld [vmem:[%s8 + $0x47c] sm:$0xff]
    %v1121 = vld [vmem:[%s8 + $0x484] sm:$0xf]
    %v1122 = vld [vmem:[%s8 + $0x488] sm:$0xff]
    %v1123 = vld [vmem:[%s8 + $0x490] sm:$0xff]
    %v1124 = vld [vmem:[%s8 + $0x498] sm:$0xf]
    %v1125 = vld [vmem:[%s8 + $0x49c] sm:$0xff]
    %v1126 = vld [vmem:[%s8 + $0x4a4] sm:$0xff]
    %v1127 = vld [vmem:[%s8 + $0x4ac] sm:$0xf]
    %v1128 = vld [vmem:[%s8 + $0x4b0] sm:$0xff]
    %v1129 = vld [vmem:[%s8 + $0x4b8] sm:$0xff]
    %v1130 = vld [vmem:[%s8 + $0x4c0] sm:$0xf]
    %v1131 = vld [vmem:[%s8 + $0x4c4] sm:$0xff]
    %v1132 = vld [vmem:[%s8 + $0x4cc] sm:$0xff]
    %v1133 = vld [vmem:[%s8 + $0x4d4] sm:$0xf]
    %v1134 = vld [vmem:[%s8 + $0x4d8] sm:$0xff]
    %v1135 = vld [vmem:[%s8 + $0x4e0] sm:$0xff]
    %v1136 = vld [vmem:[%s8 + $0x4e8] sm:$0xf]
    %v1137 = vld [vmem:[%s8 + $0x4ec] sm:$0xff]
    %v1138 = vld [vmem:[%s8 + $0x4f4] sm:$0xff]
    %v1139 = vld [vmem:[%s8 + $0x4fc] sm:$0xf]
    %v1140 = vld [vmem:[%s8 + $0x500] sm:$0xff]
    %v1141 = vld [vmem:[%s8 + $0x508] sm:$0xff]
    %v1142 = vld [vmem:[%s8 + $0x510] sm:$0xf]
    %v1143 = vld [vmem:[%s8 + $0x514] sm:$0xff]
    %v1144 = vld [vmem:[%s8 + $0x51c] sm:$0xff]
    %v1145 = vld [vmem:[%s8 + $0x524] sm:$0xf]
    %v1146 = vld [vmem:[%s8 + $0x528] sm:$0xff]
    %v1147 = vld [vmem:[%s8 + $0x530] sm:$0xff]
    %v1148 = vld [vmem:[%s8 + $0x538] sm:$0xf]
    %v1149 = vld [vmem:[%s8 + $0x53c] sm:$0xff]
    %v1150 = vld [vmem:[%s8 + $0x544] sm:$0xff]
    %v1151 = vld [vmem:[%s8 + $0x54c] sm:$0xf]
    %v1152 = vld [vmem:[%s8 + $0x550] sm:$0xff]
    %v1153 = vld [vmem:[%s8 + $0x558] sm:$0xff]
    %v1154 = vld [vmem:[%s8 + $0x560] sm:$0xf]
    %v1155 = vld [vmem:[%s8 + $0x564] sm:$0xff]
    %v1156 = vld [vmem:[%s8 + $0x56c] sm:$0xff]
    %v1157 = vld [vmem:[%s8 + $0x574] sm:$0xf]
    %v1158 = vld [vmem:[%s8 + $0x578] sm:$0xff]
    %v1159 = vld [vmem:[%s8 + $0x580] sm:$0xff]
    %v1160 = vld [vmem:[%s8 + $0x588] sm:$0xf]
    %v1161 = vld [vmem:[%s8 + $0x58c] sm:$0xff]
    %v1162 = vld [vmem:[%s8 + $0x594] sm:$0xff]
    %v1163 = vld [vmem:[%s8 + $0x59c] sm:$0xf]
    %v1164 = vld [vmem:[%s8 + $0x5a0] sm:$0xff]
    %v1165 = vld [vmem:[%s8 + $0x5a8] sm:$0xff]
    %v1166 = vld [vmem:[%s8 + $0x5b0] sm:$0xf]
    %v1167 = vld [vmem:[%s8 + $0x5b4] sm:$0xff]
    %v1168 = vld [vmem:[%s8 + $0x5bc] sm:$0xff]
    %v1169 = vld [vmem:[%s8 + $0x5c4] sm:$0xf]
    %v1170 = vld [vmem:[%s8 + $0x5c8] sm:$0xff]
    %v1171 = vld [vmem:[%s8 + $0x5d0] sm:$0xff]
    %v1172 = vld [vmem:[%s8 + $0x5d8] sm:$0xf]
    %v1173 = vld [vmem:[%s8 + $0x5dc] sm:$0xff]
    %v1174 = vld [vmem:[%s8 + $0x5e4] sm:$0xff]
    %v1175 = vld [vmem:[%s8 + $0x5ec] sm:$0xf]
    %v1176 = vld [vmem:[%s8 + $0x5f0] sm:$0xff]
    %v1177 = vld [vmem:[%s8 + $0x5f8] sm:$0xff]
    %v1178 = vld [vmem:[%s8 + $0x600] sm:$0xf]
    %v1179 = vld [vmem:[%s8 + $0x604] sm:$0xff]
    %v1180 = vld [vmem:[%s8 + $0x60c] sm:$0xff]
    %v1181 = vld [vmem:[%s8 + $0x614] sm:$0xf]
    %v1182 = vld [vmem:[%s8 + $0x618] sm:$0xff]
    %v1183 = vld [vmem:[%s8 + $0x620] sm:$0xff]
    %v1184 = vld [vmem:[%s8 + $0x628] sm:$0xf]
    %v1185 = vld [vmem:[%s8 + $0x62c] sm:$0xff]
    %v1186 = vld [vmem:[%s8 + $0x634] sm:$0xff]
    %v1187 = vld [vmem:[%s8 + $0x63c] sm:$0xf]
    %v1188 = vld [vmem:[%s9] sm:$0x1f]
    %v1190 = vlaneseq
    %v1191 = vshrl.u32 %v1190, 7
    %v1192 = vsub.s32 0, %v1191
    %v1193 = vrot.slane %v1188, %v1192
    %v1194 = vlaneseq
    %v1195 = vshrl.u32 %v1194, 7
    %v1196 = vsub.s32 1, %v1195
    %v1197 = vrot.slane %v1188, %v1196
    %v1198 = vlaneseq
    %v1199 = vshrl.u32 %v1198, 7
    %v1200 = vsub.s32 2, %v1199
    %v1201 = vrot.slane %v1188, %v1200
    %v1202 = vlaneseq
    %v1203 = vshrl.u32 %v1202, 7
    %v1204 = vsub.s32 3, %v1203
    %v1205 = vrot.slane %v1188, %v1204
    %v1206 = vlaneseq
    %v1207 = vshrl.u32 %v1206, 7
    %v1208 = vsub.s32 4, %v1207
    %v1209 = vrot.slane %v1188, %v1208
    %v1455 = vunpack.c.l.b16 %v948
    %v1456 = vunpack.c.h.b16 %v948
    %v1457 = vunpack.c.l.b16 %v949
    %v1458 = vunpack.c.h.b16 %v949
    %v1459 = vunpack.c.l.b16 %v950
    %v1460 = vunpack.c.l.b16 %v951
    %v1461 = vunpack.c.h.b16 %v951
    %v1462 = vunpack.c.l.b16 %v952
    %v1463 = vunpack.c.h.b16 %v952
    %v1464 = vunpack.c.l.b16 %v953
    %v1465 = vunpack.c.l.b16 %v954
    %v1466 = vunpack.c.h.b16 %v954
    %v1467 = vunpack.c.l.b16 %v955
    %v1468 = vunpack.c.h.b16 %v955
    %v1469 = vunpack.c.l.b16 %v956
    %v1470 = vunpack.c.l.b16 %v957
    %v1471 = vunpack.c.h.b16 %v957
    %v1472 = vunpack.c.l.b16 %v958
    %v1473 = vunpack.c.h.b16 %v958
    %v1474 = vunpack.c.l.b16 %v959
    %v1475 = vunpack.c.l.b16 %v960
    %v1476 = vunpack.c.h.b16 %v960
    %v1477 = vunpack.c.l.b16 %v961
    %v1478 = vunpack.c.h.b16 %v961
    %v1479 = vunpack.c.l.b16 %v962
    %v1480 = vunpack.c.l.b16 %v963
    %v1481 = vunpack.c.h.b16 %v963
    %v1482 = vunpack.c.l.b16 %v964
    %v1483 = vunpack.c.h.b16 %v964
    %v1484 = vunpack.c.l.b16 %v965
    %v1485 = vunpack.c.l.b16 %v966
    %v1486 = vunpack.c.h.b16 %v966
    %v1487 = vunpack.c.l.b16 %v967
    %v1488 = vunpack.c.h.b16 %v967
    %v1489 = vunpack.c.l.b16 %v968
    %v1490 = vunpack.c.l.b16 %v969
    %v1491 = vunpack.c.h.b16 %v969
    %v1492 = vunpack.c.l.b16 %v970
    %v1493 = vunpack.c.h.b16 %v970
    %v1494 = vunpack.c.l.b16 %v971
    %v1495 = vunpack.c.l.b16 %v972
    %v1496 = vunpack.c.h.b16 %v972
    %v1497 = vunpack.c.l.b16 %v973
    %v1498 = vunpack.c.h.b16 %v973
    %v1499 = vunpack.c.l.b16 %v974
    %v1500 = vunpack.c.l.b16 %v975
    %v1501 = vunpack.c.h.b16 %v975
    %v1502 = vunpack.c.l.b16 %v976
    %v1503 = vunpack.c.h.b16 %v976
    %v1504 = vunpack.c.l.b16 %v977
    %v1505 = vunpack.c.l.b16 %v978
    %v1506 = vunpack.c.h.b16 %v978
    %v1507 = vunpack.c.l.b16 %v979
    %v1508 = vunpack.c.h.b16 %v979
    %v1509 = vunpack.c.l.b16 %v980
    %v1510 = vunpack.c.l.b16 %v981
    %v1511 = vunpack.c.h.b16 %v981
    %v1512 = vunpack.c.l.b16 %v982
    %v1513 = vunpack.c.h.b16 %v982
    %v1514 = vunpack.c.l.b16 %v983
    %v1515 = vunpack.c.l.b16 %v984
    %v1516 = vunpack.c.h.b16 %v984
    %v1517 = vunpack.c.l.b16 %v985
    %v1518 = vunpack.c.h.b16 %v985
    %v1519 = vunpack.c.l.b16 %v986
    %v1520 = vunpack.c.l.b16 %v987
    %v1521 = vunpack.c.h.b16 %v987
    %v1522 = vunpack.c.l.b16 %v988
    %v1523 = vunpack.c.h.b16 %v988
    %v1524 = vunpack.c.l.b16 %v989
    %v1525 = vunpack.c.l.b16 %v990
    %v1526 = vunpack.c.h.b16 %v990
    %v1527 = vunpack.c.l.b16 %v991
    %v1528 = vunpack.c.h.b16 %v991
    %v1529 = vunpack.c.l.b16 %v992
    %v1530 = vunpack.c.l.b16 %v993
    %v1531 = vunpack.c.h.b16 %v993
    %v1532 = vunpack.c.l.b16 %v994
    %v1533 = vunpack.c.h.b16 %v994
    %v1534 = vunpack.c.l.b16 %v995
    %v1535 = vunpack.c.l.b16 %v996
    %v1536 = vunpack.c.h.b16 %v996
    %v1537 = vunpack.c.l.b16 %v997
    %v1538 = vunpack.c.h.b16 %v997
    %v1539 = vunpack.c.l.b16 %v998
    %v1540 = vunpack.c.l.b16 %v999
    %v1541 = vunpack.c.h.b16 %v999
    %v1542 = vunpack.c.l.b16 %v1000
    %v1543 = vunpack.c.h.b16 %v1000
    %v1544 = vunpack.c.l.b16 %v1001
    %v1545 = vunpack.c.l.b16 %v1002
    %v1546 = vunpack.c.h.b16 %v1002
    %v1547 = vunpack.c.l.b16 %v1003
    %v1548 = vunpack.c.h.b16 %v1003
    %v1549 = vunpack.c.l.b16 %v1004
    %v1550 = vunpack.c.l.b16 %v1005
    %v1551 = vunpack.c.h.b16 %v1005
    %v1552 = vunpack.c.l.b16 %v1006
    %v1553 = vunpack.c.h.b16 %v1006
    %v1554 = vunpack.c.l.b16 %v1007
    %v1555 = vunpack.c.l.b16 %v1008
    %v1556 = vunpack.c.h.b16 %v1008
    %v1557 = vunpack.c.l.b16 %v1009
    %v1558 = vunpack.c.h.b16 %v1009
    %v1559 = vunpack.c.l.b16 %v1010
    %v1560 = vunpack.c.l.b16 %v1011
    %v1561 = vunpack.c.h.b16 %v1011
    %v1562 = vunpack.c.l.b16 %v1012
    %v1563 = vunpack.c.h.b16 %v1012
    %v1564 = vunpack.c.l.b16 %v1013
    %v1565 = vunpack.c.l.b16 %v1014
    %v1566 = vunpack.c.h.b16 %v1014
    %v1567 = vunpack.c.l.b16 %v1015
    %v1568 = vunpack.c.h.b16 %v1015
    %v1569 = vunpack.c.l.b16 %v1016
    %v1570 = vunpack.c.l.b16 %v1017
    %v1571 = vunpack.c.h.b16 %v1017
    %v1572 = vunpack.c.l.b16 %v1018
    %v1573 = vunpack.c.h.b16 %v1018
    %v1574 = vunpack.c.l.b16 %v1019
    %v1575 = vunpack.c.l.b16 %v1020
    %v1576 = vunpack.c.h.b16 %v1020
    %v1577 = vunpack.c.l.b16 %v1021
    %v1578 = vunpack.c.h.b16 %v1021
    %v1579 = vunpack.c.l.b16 %v1022
    %v1580 = vunpack.c.l.b16 %v1023
    %v1581 = vunpack.c.h.b16 %v1023
    %v1582 = vunpack.c.l.b16 %v1024
    %v1583 = vunpack.c.h.b16 %v1024
    %v1584 = vunpack.c.l.b16 %v1025
    %v1585 = vunpack.c.l.b16 %v1026
    %v1586 = vunpack.c.h.b16 %v1026
    %v1587 = vunpack.c.l.b16 %v1027
    %v1588 = vunpack.c.h.b16 %v1027
    %v1589 = vunpack.c.l.b16 %v1028
    %v1590 = vunpack.c.l.b16 %v1029
    %v1591 = vunpack.c.h.b16 %v1029
    %v1592 = vunpack.c.l.b16 %v1030
    %v1593 = vunpack.c.h.b16 %v1030
    %v1594 = vunpack.c.l.b16 %v1031
    %v1595 = vunpack.c.l.b16 %v1032
    %v1596 = vunpack.c.h.b16 %v1032
    %v1597 = vunpack.c.l.b16 %v1033
    %v1598 = vunpack.c.h.b16 %v1033
    %v1599 = vunpack.c.l.b16 %v1034
    %v1600 = vunpack.c.l.b16 %v1035
    %v1601 = vunpack.c.h.b16 %v1035
    %v1602 = vunpack.c.l.b16 %v1036
    %v1603 = vunpack.c.h.b16 %v1036
    %v1604 = vunpack.c.l.b16 %v1037
    %v1605 = vunpack.c.l.b16 %v1038
    %v1606 = vunpack.c.h.b16 %v1038
    %v1607 = vunpack.c.l.b16 %v1039
    %v1608 = vunpack.c.h.b16 %v1039
    %v1609 = vunpack.c.l.b16 %v1040
    %v1610 = vunpack.c.l.b16 %v1041
    %v1611 = vunpack.c.h.b16 %v1041
    %v1612 = vunpack.c.l.b16 %v1042
    %v1613 = vunpack.c.h.b16 %v1042
    %v1614 = vunpack.c.l.b16 %v1043
    %v1615 = vunpack.c.l.b16 %v1044
    %v1616 = vunpack.c.h.b16 %v1044
    %v1617 = vunpack.c.l.b16 %v1045
    %v1618 = vunpack.c.h.b16 %v1045
    %v1619 = vunpack.c.l.b16 %v1046
    %v1620 = vunpack.c.l.b16 %v1047
    %v1621 = vunpack.c.h.b16 %v1047
    %v1622 = vunpack.c.l.b16 %v1048
    %v1623 = vunpack.c.h.b16 %v1048
    %v1624 = vunpack.c.l.b16 %v1049
    %v1625 = vunpack.c.l.b16 %v1050
    %v1626 = vunpack.c.h.b16 %v1050
    %v1627 = vunpack.c.l.b16 %v1051
    %v1628 = vunpack.c.h.b16 %v1051
    %v1629 = vunpack.c.l.b16 %v1052
    %v1630 = vunpack.c.l.b16 %v1053
    %v1631 = vunpack.c.h.b16 %v1053
    %v1632 = vunpack.c.l.b16 %v1054
    %v1633 = vunpack.c.h.b16 %v1054
    %v1634 = vunpack.c.l.b16 %v1055
    %v1635 = vunpack.c.l.b16 %v1056
    %v1636 = vunpack.c.h.b16 %v1056
    %v1637 = vunpack.c.l.b16 %v1057
    %v1638 = vunpack.c.h.b16 %v1057
    %v1639 = vunpack.c.l.b16 %v1058
    %v1640 = vunpack.c.l.b16 %v1059
    %v1641 = vunpack.c.h.b16 %v1059
    %v1642 = vunpack.c.l.b16 %v1060
    %v1643 = vunpack.c.h.b16 %v1060
    %v1644 = vunpack.c.l.b16 %v1061
    %v1645 = vunpack.c.l.b16 %v1062
    %v1646 = vunpack.c.h.b16 %v1062
    %v1647 = vunpack.c.l.b16 %v1063
    %v1648 = vunpack.c.h.b16 %v1063
    %v1649 = vunpack.c.l.b16 %v1064
    %v1650 = vunpack.c.l.b16 %v1065
    %v1651 = vunpack.c.h.b16 %v1065
    %v1652 = vunpack.c.l.b16 %v1066
    %v1653 = vunpack.c.h.b16 %v1066
    %v1654 = vunpack.c.l.b16 %v1067
    %v1655 = vunpack.c.l.b16 %v1068
    %v1656 = vunpack.c.h.b16 %v1068
    %v1657 = vunpack.c.l.b16 %v1069
    %v1658 = vunpack.c.h.b16 %v1069
    %v1659 = vunpack.c.l.b16 %v1070
    %v1660 = vunpack.c.l.b16 %v1071
    %v1661 = vunpack.c.h.b16 %v1071
    %v1662 = vunpack.c.l.b16 %v1072
    %v1663 = vunpack.c.h.b16 %v1072
    %v1664 = vunpack.c.l.b16 %v1073
    %v1665 = vunpack.c.l.b16 %v1074
    %v1666 = vunpack.c.h.b16 %v1074
    %v1667 = vunpack.c.l.b16 %v1075
    %v1668 = vunpack.c.h.b16 %v1075
    %v1669 = vunpack.c.l.b16 %v1076
    %v1670 = vunpack.c.l.b16 %v1077
    %v1671 = vunpack.c.h.b16 %v1077
    %v1672 = vunpack.c.l.b16 %v1078
    %v1673 = vunpack.c.h.b16 %v1078
    %v1674 = vunpack.c.l.b16 %v1079
    %v1675 = vunpack.c.l.b16 %v1080
    %v1676 = vunpack.c.h.b16 %v1080
    %v1677 = vunpack.c.l.b16 %v1081
    %v1678 = vunpack.c.h.b16 %v1081
    %v1679 = vunpack.c.l.b16 %v1082
    %v1680 = vunpack.c.l.b16 %v1083
    %v1681 = vunpack.c.h.b16 %v1083
    %v1682 = vunpack.c.l.b16 %v1084
    %v1683 = vunpack.c.h.b16 %v1084
    %v1684 = vunpack.c.l.b16 %v1085
    %v1685 = vunpack.c.l.b16 %v1086
    %v1686 = vunpack.c.h.b16 %v1086
    %v1687 = vunpack.c.l.b16 %v1087
    %v1688 = vunpack.c.h.b16 %v1087
    %v1689 = vunpack.c.l.b16 %v1088
    %v1690 = vunpack.c.l.b16 %v1089
    %v1691 = vunpack.c.h.b16 %v1089
    %v1692 = vunpack.c.l.b16 %v1090
    %v1693 = vunpack.c.h.b16 %v1090
    %v1694 = vunpack.c.l.b16 %v1091
    %v1695 = vunpack.c.l.b16 %v1092
    %v1696 = vunpack.c.h.b16 %v1092
    %v1697 = vunpack.c.l.b16 %v1093
    %v1698 = vunpack.c.h.b16 %v1093
    %v1699 = vunpack.c.l.b16 %v1094
    %v1700 = vunpack.c.l.b16 %v1095
    %v1701 = vunpack.c.h.b16 %v1095
    %v1702 = vunpack.c.l.b16 %v1096
    %v1703 = vunpack.c.h.b16 %v1096
    %v1704 = vunpack.c.l.b16 %v1097
    %v1705 = vunpack.c.l.b16 %v1098
    %v1706 = vunpack.c.h.b16 %v1098
    %v1707 = vunpack.c.l.b16 %v1099
    %v1708 = vunpack.c.h.b16 %v1099
    %v1709 = vunpack.c.l.b16 %v1100
    %v1710 = vunpack.c.l.b16 %v1101
    %v1711 = vunpack.c.h.b16 %v1101
    %v1712 = vunpack.c.l.b16 %v1102
    %v1713 = vunpack.c.h.b16 %v1102
    %v1714 = vunpack.c.l.b16 %v1103
    %v1715 = vunpack.c.l.b16 %v1104
    %v1716 = vunpack.c.h.b16 %v1104
    %v1717 = vunpack.c.l.b16 %v1105
    %v1718 = vunpack.c.h.b16 %v1105
    %v1719 = vunpack.c.l.b16 %v1106
    %v1720 = vunpack.c.l.b16 %v1107
    %v1721 = vunpack.c.h.b16 %v1107
    %v1722 = vunpack.c.l.b16 %v1108
    %v1723 = vunpack.c.h.b16 %v1108
    %v1724 = vunpack.c.l.b16 %v1109
    %v1725 = vunpack.c.l.b16 %v1110
    %v1726 = vunpack.c.h.b16 %v1110
    %v1727 = vunpack.c.l.b16 %v1111
    %v1728 = vunpack.c.h.b16 %v1111
    %v1729 = vunpack.c.l.b16 %v1112
    %v1730 = vunpack.c.l.b16 %v1113
    %v1731 = vunpack.c.h.b16 %v1113
    %v1732 = vunpack.c.l.b16 %v1114
    %v1733 = vunpack.c.h.b16 %v1114
    %v1734 = vunpack.c.l.b16 %v1115
    %v1735 = vunpack.c.l.b16 %v1116
    %v1736 = vunpack.c.h.b16 %v1116
    %v1737 = vunpack.c.l.b16 %v1117
    %v1738 = vunpack.c.h.b16 %v1117
    %v1739 = vunpack.c.l.b16 %v1118
    %v1740 = vunpack.c.l.b16 %v1119
    %v1741 = vunpack.c.h.b16 %v1119
    %v1742 = vunpack.c.l.b16 %v1120
    %v1743 = vunpack.c.h.b16 %v1120
    %v1744 = vunpack.c.l.b16 %v1121
    %v1745 = vunpack.c.l.b16 %v1122
    %v1746 = vunpack.c.h.b16 %v1122
    %v1747 = vunpack.c.l.b16 %v1123
    %v1748 = vunpack.c.h.b16 %v1123
    %v1749 = vunpack.c.l.b16 %v1124
    %v1750 = vunpack.c.l.b16 %v1125
    %v1751 = vunpack.c.h.b16 %v1125
    %v1752 = vunpack.c.l.b16 %v1126
    %v1753 = vunpack.c.h.b16 %v1126
    %v1754 = vunpack.c.l.b16 %v1127
    %v1755 = vunpack.c.l.b16 %v1128
    %v1756 = vunpack.c.h.b16 %v1128
    %v1757 = vunpack.c.l.b16 %v1129
    %v1758 = vunpack.c.h.b16 %v1129
    %v1759 = vunpack.c.l.b16 %v1130
    %v1760 = vunpack.c.l.b16 %v1131
    %v1761 = vunpack.c.h.b16 %v1131
    %v1762 = vunpack.c.l.b16 %v1132
    %v1763 = vunpack.c.h.b16 %v1132
    %v1764 = vunpack.c.l.b16 %v1133
    %v1765 = vunpack.c.l.b16 %v1134
    %v1766 = vunpack.c.h.b16 %v1134
    %v1767 = vunpack.c.l.b16 %v1135
    %v1768 = vunpack.c.h.b16 %v1135
    %v1769 = vunpack.c.l.b16 %v1136
    %v1770 = vunpack.c.l.b16 %v1137
    %v1771 = vunpack.c.h.b16 %v1137
    %v1772 = vunpack.c.l.b16 %v1138
    %v1773 = vunpack.c.h.b16 %v1138
    %v1774 = vunpack.c.l.b16 %v1139
    %v1775 = vunpack.c.l.b16 %v1140
    %v1776 = vunpack.c.h.b16 %v1140
    %v1777 = vunpack.c.l.b16 %v1141
    %v1778 = vunpack.c.h.b16 %v1141
    %v1779 = vunpack.c.l.b16 %v1142
    %v1780 = vunpack.c.l.b16 %v1143
    %v1781 = vunpack.c.h.b16 %v1143
    %v1782 = vunpack.c.l.b16 %v1144
    %v1783 = vunpack.c.h.b16 %v1144
    %v1784 = vunpack.c.l.b16 %v1145
    %v1785 = vunpack.c.l.b16 %v1146
    %v1786 = vunpack.c.h.b16 %v1146
    %v1787 = vunpack.c.l.b16 %v1147
    %v1788 = vunpack.c.h.b16 %v1147
    %v1789 = vunpack.c.l.b16 %v1148
    %v1790 = vunpack.c.l.b16 %v1149
    %v1791 = vunpack.c.h.b16 %v1149
    %v1792 = vunpack.c.l.b16 %v1150
    %v1793 = vunpack.c.h.b16 %v1150
    %v1794 = vunpack.c.l.b16 %v1151
    %v1795 = vunpack.c.l.b16 %v1152
    %v1796 = vunpack.c.h.b16 %v1152
    %v1797 = vunpack.c.l.b16 %v1153
    %v1798 = vunpack.c.h.b16 %v1153
    %v1799 = vunpack.c.l.b16 %v1154
    %v1800 = vunpack.c.l.b16 %v1155
    %v1801 = vunpack.c.h.b16 %v1155
    %v1802 = vunpack.c.l.b16 %v1156
    %v1803 = vunpack.c.h.b16 %v1156
    %v1804 = vunpack.c.l.b16 %v1157
    %v1805 = vunpack.c.l.b16 %v1158
    %v1806 = vunpack.c.h.b16 %v1158
    %v1807 = vunpack.c.l.b16 %v1159
    %v1808 = vunpack.c.h.b16 %v1159
    %v1809 = vunpack.c.l.b16 %v1160
    %v1810 = vunpack.c.l.b16 %v1161
    %v1811 = vunpack.c.h.b16 %v1161
    %v1812 = vunpack.c.l.b16 %v1162
    %v1813 = vunpack.c.h.b16 %v1162
    %v1814 = vunpack.c.l.b16 %v1163
    %v1815 = vunpack.c.l.b16 %v1164
    %v1816 = vunpack.c.h.b16 %v1164
    %v1817 = vunpack.c.l.b16 %v1165
    %v1818 = vunpack.c.h.b16 %v1165
    %v1819 = vunpack.c.l.b16 %v1166
    %v1820 = vunpack.c.l.b16 %v1167
    %v1821 = vunpack.c.h.b16 %v1167
    %v1822 = vunpack.c.l.b16 %v1168
    %v1823 = vunpack.c.h.b16 %v1168
    %v1824 = vunpack.c.l.b16 %v1169
    %v1825 = vunpack.c.l.b16 %v1170
    %v1826 = vunpack.c.h.b16 %v1170
    %v1827 = vunpack.c.l.b16 %v1171
    %v1828 = vunpack.c.h.b16 %v1171
    %v1829 = vunpack.c.l.b16 %v1172
    %v1830 = vunpack.c.l.b16 %v1173
    %v1831 = vunpack.c.h.b16 %v1173
    %v1832 = vunpack.c.l.b16 %v1174
    %v1833 = vunpack.c.h.b16 %v1174
    %v1834 = vunpack.c.l.b16 %v1175
    %v1835 = vunpack.c.l.b16 %v1176
    %v1836 = vunpack.c.h.b16 %v1176
    %v1837 = vunpack.c.l.b16 %v1177
    %v1838 = vunpack.c.h.b16 %v1177
    %v1839 = vunpack.c.l.b16 %v1178
    %v1840 = vunpack.c.l.b16 %v1179
    %v1841 = vunpack.c.h.b16 %v1179
    %v1842 = vunpack.c.l.b16 %v1180
    %v1843 = vunpack.c.h.b16 %v1180
    %v1844 = vunpack.c.l.b16 %v1181
    %v1845 = vunpack.c.l.b16 %v1182
    %v1846 = vunpack.c.h.b16 %v1182
    %v1847 = vunpack.c.l.b16 %v1183
    %v1848 = vunpack.c.h.b16 %v1183
    %v1849 = vunpack.c.l.b16 %v1184
    %v1850 = vunpack.c.l.b16 %v1185
    %v1851 = vunpack.c.h.b16 %v1185
    %v1852 = vunpack.c.l.b16 %v1186
    %v1853 = vunpack.c.h.b16 %v1186
    %v1854 = vunpack.c.l.b16 %v1187
    %v1855 = vpack.c.b16 %v1460, %v1455
    %v1856 = vpack.c.b16 %v1461, %v1456
    %v1857 = vpack.c.b16 %v1462, %v1457
    %v1858 = vpack.c.b16 %v1463, %v1458
    %v1859 = vpack.c.b16 %v1464, %v1459
    %v1860 = vpack.c.b16 %v1470, %v1465
    %v1861 = vpack.c.b16 %v1471, %v1466
    %v1862 = vpack.c.b16 %v1472, %v1467
    %v1863 = vpack.c.b16 %v1473, %v1468
    %v1864 = vpack.c.b16 %v1474, %v1469
    %v1865 = vpack.c.b16 %v1480, %v1475
    %v1866 = vpack.c.b16 %v1481, %v1476
    %v1867 = vpack.c.b16 %v1482, %v1477
    %v1868 = vpack.c.b16 %v1483, %v1478
    %v1869 = vpack.c.b16 %v1484, %v1479
    %v1870 = vpack.c.b16 %v1490, %v1485
    %v1871 = vpack.c.b16 %v1491, %v1486
    %v1872 = vpack.c.b16 %v1492, %v1487
    %v1873 = vpack.c.b16 %v1493, %v1488
    %v1874 = vpack.c.b16 %v1494, %v1489
    %v1875 = vpack.c.b16 %v1500, %v1495
    %v1876 = vpack.c.b16 %v1501, %v1496
    %v1877 = vpack.c.b16 %v1502, %v1497
    %v1878 = vpack.c.b16 %v1503, %v1498
    %v1879 = vpack.c.b16 %v1504, %v1499
    %v1880 = vpack.c.b16 %v1510, %v1505
    %v1881 = vpack.c.b16 %v1511, %v1506
    %v1882 = vpack.c.b16 %v1512, %v1507
    %v1883 = vpack.c.b16 %v1513, %v1508
    %v1884 = vpack.c.b16 %v1514, %v1509
    %v1885 = vpack.c.b16 %v1520, %v1515
    %v1886 = vpack.c.b16 %v1521, %v1516
    %v1887 = vpack.c.b16 %v1522, %v1517
    %v1888 = vpack.c.b16 %v1523, %v1518
    %v1889 = vpack.c.b16 %v1524, %v1519
    %v1890 = vpack.c.b16 %v1530, %v1525
    %v1891 = vpack.c.b16 %v1531, %v1526
    %v1892 = vpack.c.b16 %v1532, %v1527
    %v1893 = vpack.c.b16 %v1533, %v1528
    %v1894 = vpack.c.b16 %v1534, %v1529
    %v1895 = vpack.c.b16 %v1540, %v1535
    %v1896 = vpack.c.b16 %v1541, %v1536
    %v1897 = vpack.c.b16 %v1542, %v1537
    %v1898 = vpack.c.b16 %v1543, %v1538
    %v1899 = vpack.c.b16 %v1544, %v1539
    %v1900 = vpack.c.b16 %v1550, %v1545
    %v1901 = vpack.c.b16 %v1551, %v1546
    %v1902 = vpack.c.b16 %v1552, %v1547
    %v1903 = vpack.c.b16 %v1553, %v1548
    %v1904 = vpack.c.b16 %v1554, %v1549
    %v1905 = vpack.c.b16 %v1560, %v1555
    %v1906 = vpack.c.b16 %v1561, %v1556
    %v1907 = vpack.c.b16 %v1562, %v1557
    %v1908 = vpack.c.b16 %v1563, %v1558
    %v1909 = vpack.c.b16 %v1564, %v1559
    %v1910 = vpack.c.b16 %v1570, %v1565
    %v1911 = vpack.c.b16 %v1571, %v1566
    %v1912 = vpack.c.b16 %v1572, %v1567
    %v1913 = vpack.c.b16 %v1573, %v1568
    %v1914 = vpack.c.b16 %v1574, %v1569
    %v1915 = vpack.c.b16 %v1580, %v1575
    %v1916 = vpack.c.b16 %v1581, %v1576
    %v1917 = vpack.c.b16 %v1582, %v1577
    %v1918 = vpack.c.b16 %v1583, %v1578
    %v1919 = vpack.c.b16 %v1584, %v1579
    %v1920 = vpack.c.b16 %v1590, %v1585
    %v1921 = vpack.c.b16 %v1591, %v1586
    %v1922 = vpack.c.b16 %v1592, %v1587
    %v1923 = vpack.c.b16 %v1593, %v1588
    %v1924 = vpack.c.b16 %v1594, %v1589
    %v1925 = vpack.c.b16 %v1600, %v1595
    %v1926 = vpack.c.b16 %v1601, %v1596
    %v1927 = vpack.c.b16 %v1602, %v1597
    %v1928 = vpack.c.b16 %v1603, %v1598
    %v1929 = vpack.c.b16 %v1604, %v1599
    %v1930 = vpack.c.b16 %v1610, %v1605
    %v1931 = vpack.c.b16 %v1611, %v1606
    %v1932 = vpack.c.b16 %v1612, %v1607
    %v1933 = vpack.c.b16 %v1613, %v1608
    %v1934 = vpack.c.b16 %v1614, %v1609
    %v1935 = vpack.c.b16 %v1620, %v1615
    %v1936 = vpack.c.b16 %v1621, %v1616
    %v1937 = vpack.c.b16 %v1622, %v1617
    %v1938 = vpack.c.b16 %v1623, %v1618
    %v1939 = vpack.c.b16 %v1624, %v1619
    %v1940 = vpack.c.b16 %v1630, %v1625
    %v1941 = vpack.c.b16 %v1631, %v1626
    %v1942 = vpack.c.b16 %v1632, %v1627
    %v1943 = vpack.c.b16 %v1633, %v1628
    %v1944 = vpack.c.b16 %v1634, %v1629
    %v1945 = vpack.c.b16 %v1640, %v1635
    %v1946 = vpack.c.b16 %v1641, %v1636
    %v1947 = vpack.c.b16 %v1642, %v1637
    %v1948 = vpack.c.b16 %v1643, %v1638
    %v1949 = vpack.c.b16 %v1644, %v1639
    %v1950 = vpack.c.b16 %v1650, %v1645
    %v1951 = vpack.c.b16 %v1651, %v1646
    %v1952 = vpack.c.b16 %v1652, %v1647
    %v1953 = vpack.c.b16 %v1653, %v1648
    %v1954 = vpack.c.b16 %v1654, %v1649
    %v1955 = vpack.c.b16 %v1660, %v1655
    %v1956 = vpack.c.b16 %v1661, %v1656
    %v1957 = vpack.c.b16 %v1662, %v1657
    %v1958 = vpack.c.b16 %v1663, %v1658
    %v1959 = vpack.c.b16 %v1664, %v1659
    %v1960 = vpack.c.b16 %v1670, %v1665
    %v1961 = vpack.c.b16 %v1671, %v1666
    %v1962 = vpack.c.b16 %v1672, %v1667
    %v1963 = vpack.c.b16 %v1673, %v1668
    %v1964 = vpack.c.b16 %v1674, %v1669
    %v1965 = vpack.c.b16 %v1680, %v1675
    %v1966 = vpack.c.b16 %v1681, %v1676
    %v1967 = vpack.c.b16 %v1682, %v1677
    %v1968 = vpack.c.b16 %v1683, %v1678
    %v1969 = vpack.c.b16 %v1684, %v1679
    %v1970 = vpack.c.b16 %v1690, %v1685
    %v1971 = vpack.c.b16 %v1691, %v1686
    %v1972 = vpack.c.b16 %v1692, %v1687
    %v1973 = vpack.c.b16 %v1693, %v1688
    %v1974 = vpack.c.b16 %v1694, %v1689
    %v1975 = vpack.c.b16 %v1700, %v1695
    %v1976 = vpack.c.b16 %v1701, %v1696
    %v1977 = vpack.c.b16 %v1702, %v1697
    %v1978 = vpack.c.b16 %v1703, %v1698
    %v1979 = vpack.c.b16 %v1704, %v1699
    %v1980 = vpack.c.b16 %v1710, %v1705
    %v1981 = vpack.c.b16 %v1711, %v1706
    %v1982 = vpack.c.b16 %v1712, %v1707
    %v1983 = vpack.c.b16 %v1713, %v1708
    %v1984 = vpack.c.b16 %v1714, %v1709
    %v1985 = vpack.c.b16 %v1720, %v1715
    %v1986 = vpack.c.b16 %v1721, %v1716
    %v1987 = vpack.c.b16 %v1722, %v1717
    %v1988 = vpack.c.b16 %v1723, %v1718
    %v1989 = vpack.c.b16 %v1724, %v1719
    %v1990 = vpack.c.b16 %v1730, %v1725
    %v1991 = vpack.c.b16 %v1731, %v1726
    %v1992 = vpack.c.b16 %v1732, %v1727
    %v1993 = vpack.c.b16 %v1733, %v1728
    %v1994 = vpack.c.b16 %v1734, %v1729
    %v1995 = vpack.c.b16 %v1740, %v1735
    %v1996 = vpack.c.b16 %v1741, %v1736
    %v1997 = vpack.c.b16 %v1742, %v1737
    %v1998 = vpack.c.b16 %v1743, %v1738
    %v1999 = vpack.c.b16 %v1744, %v1739
    %v2000 = vpack.c.b16 %v1750, %v1745
    %v2001 = vpack.c.b16 %v1751, %v1746
    %v2002 = vpack.c.b16 %v1752, %v1747
    %v2003 = vpack.c.b16 %v1753, %v1748
    %v2004 = vpack.c.b16 %v1754, %v1749
    %v2005 = vpack.c.b16 %v1760, %v1755
    %v2006 = vpack.c.b16 %v1761, %v1756
    %v2007 = vpack.c.b16 %v1762, %v1757
    %v2008 = vpack.c.b16 %v1763, %v1758
    %v2009 = vpack.c.b16 %v1764, %v1759
    %v2010 = vpack.c.b16 %v1770, %v1765
    %v2011 = vpack.c.b16 %v1771, %v1766
    %v2012 = vpack.c.b16 %v1772, %v1767
    %v2013 = vpack.c.b16 %v1773, %v1768
    %v2014 = vpack.c.b16 %v1774, %v1769
    %v2015 = vpack.c.b16 %v1780, %v1775
    %v2016 = vpack.c.b16 %v1781, %v1776
    %v2017 = vpack.c.b16 %v1782, %v1777
    %v2018 = vpack.c.b16 %v1783, %v1778
    %v2019 = vpack.c.b16 %v1784, %v1779
    %v2020 = vpack.c.b16 %v1790, %v1785
    %v2021 = vpack.c.b16 %v1791, %v1786
    %v2022 = vpack.c.b16 %v1792, %v1787
    %v2023 = vpack.c.b16 %v1793, %v1788
    %v2024 = vpack.c.b16 %v1794, %v1789
    %v2025 = vpack.c.b16 %v1800, %v1795
    %v2026 = vpack.c.b16 %v1801, %v1796
    %v2027 = vpack.c.b16 %v1802, %v1797
    %v2028 = vpack.c.b16 %v1803, %v1798
    %v2029 = vpack.c.b16 %v1804, %v1799
    %v2030 = vpack.c.b16 %v1810, %v1805
    %v2031 = vpack.c.b16 %v1811, %v1806
    %v2032 = vpack.c.b16 %v1812, %v1807
    %v2033 = vpack.c.b16 %v1813, %v1808
    %v2034 = vpack.c.b16 %v1814, %v1809
    %v2035 = vpack.c.b16 %v1820, %v1815
    %v2036 = vpack.c.b16 %v1821, %v1816
    %v2037 = vpack.c.b16 %v1822, %v1817
    %v2038 = vpack.c.b16 %v1823, %v1818
    %v2039 = vpack.c.b16 %v1824, %v1819
    %v2040 = vpack.c.b16 %v1830, %v1825
    %v2041 = vpack.c.b16 %v1831, %v1826
    %v2042 = vpack.c.b16 %v1832, %v1827
    %v2043 = vpack.c.b16 %v1833, %v1828
    %v2044 = vpack.c.b16 %v1834, %v1829
    %v2045 = vpack.c.b16 %v1840, %v1835
    %v2046 = vpack.c.b16 %v1841, %v1836
    %v2047 = vpack.c.b16 %v1842, %v1837
    %v2048 = vpack.c.b16 %v1843, %v1838
    %v2049 = vpack.c.b16 %v1844, %v1839
    %v2050 = vpack.c.b16 %v1850, %v1845
    %v2051 = vpack.c.b16 %v1851, %v1846
    %v2052 = vpack.c.b16 %v1852, %v1847
    %v2053 = vpack.c.b16 %v1853, %v1848
    %v2054 = vpack.c.b16 %v1854, %v1849
    %2255 = vmatprep.subr.bf16.mxu0 %v1891
    %2256 = vmatpush1.bf16.msra.mxu0 %v1890
    %2257 = vmatprep.subr.bf16.mxu0 %v1886
    %2258 = vmatpush1.bf16.msra.mxu0 %v1885
    %2259 = vmatprep.subr.bf16.mxu0 %v1881
    %2260 = vmatpush1.bf16.msra.mxu0 %v1880
    %2261 = vmatprep.subr.bf16.mxu0 %v1876
    %2262 = vmatpush1.bf16.msra.mxu0 %v1875
    %2263 = vmatprep.subr.bf16.mxu0 %v1871
    %2264 = vmatpush1.bf16.msra.mxu0 %v1870
    %2265 = vmatprep.subr.bf16.mxu0 %v1866
    %2266 = vmatpush1.bf16.msra.mxu0 %v1865
    %2267 = vmatprep.subr.bf16.mxu0 %v1861
    %2268 = vmatpush1.bf16.msra.mxu0 %v1860
    %2269 = vmatprep.subr.bf16.mxu0 %v1856
    %2270 = vmatpush1.bf16.msra.mxu0 %v1855
    %2271 = vmatprep.subr.bf16.mxu0 %v1931
    %2272 = vmatpush2.bf16.msra.mxu0 %v1930
    %2273 = vmatprep.subr.bf16.mxu0 %v1926
    %2274 = vmatpush2.bf16.msra.mxu0 %v1925
    %2275 = vmatprep.subr.bf16.mxu0 %v1921
    %2276 = vmatpush2.bf16.msra.mxu0 %v1920
    %2277 = vmatprep.subr.bf16.mxu0 %v1916
    %2278 = vmatpush2.bf16.msra.mxu0 %v1915
    %2279 = vmatprep.subr.bf16.mxu0 %v1911
    %2280 = vmatpush2.bf16.msra.mxu0 %v1910
    %2281 = vmatprep.subr.bf16.mxu0 %v1906
    %2282 = vmatpush2.bf16.msra.mxu0 %v1905
    %2283 = vmatprep.subr.bf16.mxu0 %v1901
    %2284 = vmatpush2.bf16.msra.mxu0 %v1900
    %2285 = vmatprep.subr.bf16.mxu0 %v1896
    %2286 = vmatpush2.bf16.msra.mxu0 %v1895
    %2287 = vmatprep.mubr.bf16.mxu0 %v944
    %2288 = vmatmul.mubr.bf16.gmra.mxu0 %v943
    %v2289 = vpop.f32.mrf.mxu0
    %v2290 = vadd.f32 %v1193, %v2289
    %v2291 = vpop.f32.mrf.mxu0
    %v2292 = vadd.f32 %v1197, %v2291
    %v2293 = vpop.f32.mrf.mxu0
    %v2294 = vpop.f32.mrf.mxu0
    %2295 = vdwg.mxu0
    %2296 = vmatprep.subr.bf16.mxu0 %v1971
    %2297 = vmatpush1.bf16.msra.mxu0 %v1970
    %2298 = vmatprep.subr.bf16.mxu0 %v1966
    %2299 = vmatpush1.bf16.msra.mxu0 %v1965
    %2300 = vmatprep.subr.bf16.mxu0 %v1961
    %2301 = vmatpush1.bf16.msra.mxu0 %v1960
    %2302 = vmatprep.subr.bf16.mxu0 %v1956
    %2303 = vmatpush1.bf16.msra.mxu0 %v1955
    %2304 = vmatprep.subr.bf16.mxu0 %v1951
    %2305 = vmatpush1.bf16.msra.mxu0 %v1950
    %2306 = vmatprep.subr.bf16.mxu0 %v1946
    %2307 = vmatpush1.bf16.msra.mxu0 %v1945
    %2308 = vmatprep.subr.bf16.mxu0 %v1941
    %2309 = vmatpush1.bf16.msra.mxu0 %v1940
    %2310 = vmatprep.subr.bf16.mxu0 %v1936
    %2311 = vmatpush1.bf16.msra.mxu0 %v1935
    %2312 = vmatprep.subr.bf16.mxu0 %v2011
    %2313 = vmatpush2.bf16.msra.mxu0 %v2010
    %2314 = vmatprep.subr.bf16.mxu0 %v2006
    %2315 = vmatpush2.bf16.msra.mxu0 %v2005
    %2316 = vmatprep.subr.bf16.mxu0 %v2001
    %2317 = vmatpush2.bf16.msra.mxu0 %v2000
    %2318 = vmatprep.subr.bf16.mxu0 %v1996
    %2319 = vmatpush2.bf16.msra.mxu0 %v1995
    %2320 = vmatprep.subr.bf16.mxu0 %v1991
    %2321 = vmatpush2.bf16.msra.mxu0 %v1990
    %2322 = vmatprep.subr.bf16.mxu0 %v1986
    %2323 = vmatpush2.bf16.msra.mxu0 %v1985
    %2324 = vmatprep.subr.bf16.mxu0 %v1981
    %2325 = vmatpush2.bf16.msra.mxu0 %v1980
    %2326 = vmatprep.subr.bf16.mxu0 %v1976
    %2327 = vmatpush2.bf16.msra.mxu0 %v1975
    %2328 = vmatprep.mubr.bf16.mxu0 %v946
    %2329 = vmatmul.mubr.bf16.gmra.mxu0 %v945
    %v2330 = vpop.f32.mrf.mxu0
    %v2331 = vadd.f32 %v2290, %v2330
    %v2332 = vpop.f32.mrf.mxu0
    %v2333 = vadd.f32 %v2292, %v2332
    %v2334 = vpop.f32.mrf.mxu0
    %v2335 = vpop.f32.mrf.mxu0
    %2336 = vdwg.mxu0
    %2337 = vmatprep.subr.bf16.mxu0 %v2051
    %2338 = vmatpush1.bf16.msra.mxu0 %v2050
    %2339 = vmatprep.subr.bf16.mxu0 %v2046
    %2340 = vmatpush1.bf16.msra.mxu0 %v2045
    %2341 = vmatprep.subr.bf16.mxu0 %v2041
    %2342 = vmatpush1.bf16.msra.mxu0 %v2040
    %2343 = vmatprep.subr.bf16.mxu0 %v2036
    %2344 = vmatpush1.bf16.msra.mxu0 %v2035
    %2345 = vmatprep.subr.bf16.mxu0 %v2031
    %2346 = vmatpush1.bf16.msra.mxu0 %v2030
    %2347 = vmatprep.subr.bf16.mxu0 %v2026
    %2348 = vmatpush1.bf16.msra.mxu0 %v2025
    %2349 = vmatprep.subr.bf16.mxu0 %v2021
    %2350 = vmatpush1.bf16.msra.mxu0 %v2020
    %2351 = vmatprep.subr.bf16.mxu0 %v2016
    %2352 = vmatpush1.bf16.msra.mxu0 %v2015
    %2353 = vmatprep.subr.bf16.mxu0 0
    %2354 = vmatpush2.bf16.msra.mxu0 0
    %2355 = vmatprep.subr.bf16.mxu0 0
    %2356 = vmatpush2.bf16.msra.mxu0 0
    %2357 = vmatprep.subr.bf16.mxu0 0
    %2358 = vmatpush2.bf16.msra.mxu0 0
    %2359 = vmatprep.subr.bf16.mxu0 0
    %2360 = vmatpush2.bf16.msra.mxu0 0
    %2361 = vmatprep.subr.bf16.mxu0 0
    %2362 = vmatpush2.bf16.msra.mxu0 0
    %2363 = vmatprep.subr.bf16.mxu0 0
    %2364 = vmatpush2.bf16.msra.mxu0 0
    %2365 = vmatprep.subr.bf16.mxu0 0
    %2366 = vmatpush2.bf16.msra.mxu0 0
    %2367 = vmatprep.subr.bf16.mxu0 0
    %2368 = vmatpush2.bf16.msra.mxu0 0
    %2369 = vmatprep.mubr.bf16.mxu0 0
    %2370 = vmatmul.mubr.bf16.gmra.mxu0 %v947
    %v2371 = vpop.f32.mrf.mxu0
    %v2372 = vadd.f32 %v2331, %v2371
    %v2373 = vpop.f32.mrf.mxu0
    %v2374 = vadd.f32 %v2333, %v2373
    %v2375 = vpop.f32.mrf.mxu0
    %v2376 = vpop.f32.mrf.mxu0
    %2377 = vdwg.mxu0
    %2378 = vmatprep.subr.bf16.mxu0 %v1893
    %2379 = vmatpush1.bf16.msra.mxu0 %v1892
    %2380 = vmatprep.subr.bf16.mxu0 %v1888
    %2381 = vmatpush1.bf16.msra.mxu0 %v1887
    %2382 = vmatprep.subr.bf16.mxu0 %v1883
    %2383 = vmatpush1.bf16.msra.mxu0 %v1882
    %2384 = vmatprep.subr.bf16.mxu0 %v1878
    %2385 = vmatpush1.bf16.msra.mxu0 %v1877
    %2386 = vmatprep.subr.bf16.mxu0 %v1873
    %2387 = vmatpush1.bf16.msra.mxu0 %v1872
    %2388 = vmatprep.subr.bf16.mxu0 %v1868
    %2389 = vmatpush1.bf16.msra.mxu0 %v1867
    %2390 = vmatprep.subr.bf16.mxu0 %v1863
    %2391 = vmatpush1.bf16.msra.mxu0 %v1862
    %2392 = vmatprep.subr.bf16.mxu0 %v1858
    %2393 = vmatpush1.bf16.msra.mxu0 %v1857
    %2394 = vmatprep.subr.bf16.mxu0 %v1933
    %2395 = vmatpush2.bf16.msra.mxu0 %v1932
    %2396 = vmatprep.subr.bf16.mxu0 %v1928
    %2397 = vmatpush2.bf16.msra.mxu0 %v1927
    %2398 = vmatprep.subr.bf16.mxu0 %v1923
    %2399 = vmatpush2.bf16.msra.mxu0 %v1922
    %2400 = vmatprep.subr.bf16.mxu0 %v1918
    %2401 = vmatpush2.bf16.msra.mxu0 %v1917
    %2402 = vmatprep.subr.bf16.mxu0 %v1913
    %2403 = vmatpush2.bf16.msra.mxu0 %v1912
    %2404 = vmatprep.subr.bf16.mxu0 %v1908
    %2405 = vmatpush2.bf16.msra.mxu0 %v1907
    %2406 = vmatprep.subr.bf16.mxu0 %v1903
    %2407 = vmatpush2.bf16.msra.mxu0 %v1902
    %2408 = vmatprep.subr.bf16.mxu0 %v1898
    %2409 = vmatpush2.bf16.msra.mxu0 %v1897
    %2410 = vmatprep.mubr.bf16.mxu0 %v944
    %2411 = vmatmul.mubr.bf16.gmra.mxu0 %v943
    %v2412 = vpop.f32.mrf.mxu0
    %v2413 = vadd.f32 %v1201, %v2412
    %v2414 = vpop.f32.mrf.mxu0
    %v2415 = vadd.f32 %v1205, %v2414
    %v2416 = vpop.f32.mrf.mxu0
    %v2417 = vpop.f32.mrf.mxu0
    %2418 = vdwg.mxu0
    %2419 = vmatprep.subr.bf16.mxu0 %v1973
    %2420 = vmatpush1.bf16.msra.mxu0 %v1972
    %2421 = vmatprep.subr.bf16.mxu0 %v1968
    %2422 = vmatpush1.bf16.msra.mxu0 %v1967
    %2423 = vmatprep.subr.bf16.mxu0 %v1963
    %2424 = vmatpush1.bf16.msra.mxu0 %v1962
    %2425 = vmatprep.subr.bf16.mxu0 %v1958
    %2426 = vmatpush1.bf16.msra.mxu0 %v1957
    %2427 = vmatprep.subr.bf16.mxu0 %v1953
    %2428 = vmatpush1.bf16.msra.mxu0 %v1952
    %2429 = vmatprep.subr.bf16.mxu0 %v1948
    %2430 = vmatpush1.bf16.msra.mxu0 %v1947
    %2431 = vmatprep.subr.bf16.mxu0 %v1943
    %2432 = vmatpush1.bf16.msra.mxu0 %v1942
    %2433 = vmatprep.subr.bf16.mxu0 %v1938
    %2434 = vmatpush1.bf16.msra.mxu0 %v1937
    %2435 = vmatprep.subr.bf16.mxu0 %v2013
    %2436 = vmatpush2.bf16.msra.mxu0 %v2012
    %2437 = vmatprep.subr.bf16.mxu0 %v2008
    %2438 = vmatpush2.bf16.msra.mxu0 %v2007
    %2439 = vmatprep.subr.bf16.mxu0 %v2003
    %2440 = vmatpush2.bf16.msra.mxu0 %v2002
    %2441 = vmatprep.subr.bf16.mxu0 %v1998
    %2442 = vmatpush2.bf16.msra.mxu0 %v1997
    %2443 = vmatprep.subr.bf16.mxu0 %v1993
    %2444 = vmatpush2.bf16.msra.mxu0 %v1992
    %2445 = vmatprep.subr.bf16.mxu0 %v1988
    %2446 = vmatpush2.bf16.msra.mxu0 %v1987
    %2447 = vmatprep.subr.bf16.mxu0 %v1983
    %2448 = vmatpush2.bf16.msra.mxu0 %v1982
    %2449 = vmatprep.subr.bf16.mxu0 %v1978
    %2450 = vmatpush2.bf16.msra.mxu0 %v1977
    %2451 = vmatprep.mubr.bf16.mxu0 %v946
    %2452 = vmatmul.mubr.bf16.gmra.mxu0 %v945
    %v2453 = vpop.f32.mrf.mxu0
    %v2454 = vadd.f32 %v2413, %v2453
    %v2455 = vpop.f32.mrf.mxu0
    %v2456 = vadd.f32 %v2415, %v2455
    %v2457 = vpop.f32.mrf.mxu0
    %v2458 = vpop.f32.mrf.mxu0
    %2459 = vdwg.mxu0
    %2460 = vmatprep.subr.bf16.mxu0 %v2053
    %2461 = vmatpush1.bf16.msra.mxu0 %v2052
    %2462 = vmatprep.subr.bf16.mxu0 %v2048
    %2463 = vmatpush1.bf16.msra.mxu0 %v2047
    %2464 = vmatprep.subr.bf16.mxu0 %v2043
    %2465 = vmatpush1.bf16.msra.mxu0 %v2042
    %2466 = vmatprep.subr.bf16.mxu0 %v2038
    %2467 = vmatpush1.bf16.msra.mxu0 %v2037
    %2468 = vmatprep.subr.bf16.mxu0 %v2033
    %2469 = vmatpush1.bf16.msra.mxu0 %v2032
    %2470 = vmatprep.subr.bf16.mxu0 %v2028
    %2471 = vmatpush1.bf16.msra.mxu0 %v2027
    %2472 = vmatprep.subr.bf16.mxu0 %v2023
    %2473 = vmatpush1.bf16.msra.mxu0 %v2022
    %2474 = vmatprep.subr.bf16.mxu0 %v2018
    %2475 = vmatpush1.bf16.msra.mxu0 %v2017
    %2476 = vmatprep.subr.bf16.mxu0 0
    %2477 = vmatpush2.bf16.msra.mxu0 0
    %2478 = vmatprep.subr.bf16.mxu0 0
    %2479 = vmatpush2.bf16.msra.mxu0 0
    %2480 = vmatprep.subr.bf16.mxu0 0
    %2481 = vmatpush2.bf16.msra.mxu0 0
    %2482 = vmatprep.subr.bf16.mxu0 0
    %2483 = vmatpush2.bf16.msra.mxu0 0
    %2484 = vmatprep.subr.bf16.mxu0 0
    %2485 = vmatpush2.bf16.msra.mxu0 0
    %2486 = vmatprep.subr.bf16.mxu0 0
    %2487 = vmatpush2.bf16.msra.mxu0 0
    %2488 = vmatprep.subr.bf16.mxu0 0
    %2489 = vmatpush2.bf16.msra.mxu0 0
    %2490 = vmatprep.subr.bf16.mxu0 0
    %2491 = vmatpush2.bf16.msra.mxu0 0
    %2492 = vmatprep.mubr.bf16.mxu0 0
    %2493 = vmatmul.mubr.bf16.gmra.mxu0 %v947
    %v2494 = vpop.f32.mrf.mxu0
    %v2495 = vadd.f32 %v2454, %v2494
    %v2496 = vpop.f32.mrf.mxu0
    %v2497 = vadd.f32 %v2456, %v2496
    %v2498 = vpop.f32.mrf.mxu0
    %v2499 = vpop.f32.mrf.mxu0
    %2500 = vdwg.mxu0
    %2501 = vmatprep.subr.bf16.mxu0 0
    %2502 = vmatpush1.bf16.msra.mxu0 %v1894
    %2503 = vmatprep.subr.bf16.mxu0 0
    %2504 = vmatpush1.bf16.msra.mxu0 %v1889
    %2505 = vmatprep.subr.bf16.mxu0 0
    %2506 = vmatpush1.bf16.msra.mxu0 %v1884
    %2507 = vmatprep.subr.bf16.mxu0 0
    %2508 = vmatpush1.bf16.msra.mxu0 %v1879
    %2509 = vmatprep.subr.bf16.mxu0 0
    %2510 = vmatpush1.bf16.msra.mxu0 %v1874
    %2511 = vmatprep.subr.bf16.mxu0 0
    %2512 = vmatpush1.bf16.msra.mxu0 %v1869
    %2513 = vmatprep.subr.bf16.mxu0 0
    %2514 = vmatpush1.bf16.msra.mxu0 %v1864
    %2515 = vmatprep.subr.bf16.mxu0 0
    %2516 = vmatpush1.bf16.msra.mxu0 %v1859
    %2517 = vmatprep.subr.bf16.mxu0 0
    %2518 = vmatpush2.bf16.msra.mxu0 %v1934
    %2519 = vmatprep.subr.bf16.mxu0 0
    %2520 = vmatpush2.bf16.msra.mxu0 %v1929
    %2521 = vmatprep.subr.bf16.mxu0 0
    %2522 = vmatpush2.bf16.msra.mxu0 %v1924
    %2523 = vmatprep.subr.bf16.mxu0 0
    %2524 = vmatpush2.bf16.msra.mxu0 %v1919
    %2525 = vmatprep.subr.bf16.mxu0 0
    %2526 = vmatpush2.bf16.msra.mxu0 %v1914
    %2527 = vmatprep.subr.bf16.mxu0 0
    %2528 = vmatpush2.bf16.msra.mxu0 %v1909
    %2529 = vmatprep.subr.bf16.mxu0 0
    %2530 = vmatpush2.bf16.msra.mxu0 %v1904
    %2531 = vmatprep.subr.bf16.mxu0 0
    %2532 = vmatpush2.bf16.msra.mxu0 %v1899
    %2533 = vmatprep.mubr.bf16.mxu0 %v944
    %2534 = vmatmul.mubr.bf16.gmra.mxu0 %v943
    %v2535 = vpop.f32.mrf.mxu0
    %v2536 = vadd.f32 %v1209, %v2535
    %v2537 = vpop.f32.mrf.mxu0
    %v2538 = vpop.f32.mrf.mxu0
    %v2539 = vpop.f32.mrf.mxu0
    %2540 = vdwg.mxu0
    %2541 = vmatprep.subr.bf16.mxu0 0
    %2542 = vmatpush1.bf16.msra.mxu0 %v1974
    %2543 = vmatprep.subr.bf16.mxu0 0
    %2544 = vmatpush1.bf16.msra.mxu0 %v1969
    %2545 = vmatprep.subr.bf16.mxu0 0
    %2546 = vmatpush1.bf16.msra.mxu0 %v1964
    %2547 = vmatprep.subr.bf16.mxu0 0
    %2548 = vmatpush1.bf16.msra.mxu0 %v1959
    %2549 = vmatprep.subr.bf16.mxu0 0
    %2550 = vmatpush1.bf16.msra.mxu0 %v1954
    %2551 = vmatprep.subr.bf16.mxu0 0
    %2552 = vmatpush1.bf16.msra.mxu0 %v1949
    %2553 = vmatprep.subr.bf16.mxu0 0
    %2554 = vmatpush1.bf16.msra.mxu0 %v1944
    %2555 = vmatprep.subr.bf16.mxu0 0
    %2556 = vmatpush1.bf16.msra.mxu0 %v1939
    %2557 = vmatprep.subr.bf16.mxu0 0
    %2558 = vmatpush2.bf16.msra.mxu0 %v2014
    %2559 = vmatprep.subr.bf16.mxu0 0
    %2560 = vmatpush2.bf16.msra.mxu0 %v2009
    %2561 = vmatprep.subr.bf16.mxu0 0
    %2562 = vmatpush2.bf16.msra.mxu0 %v2004
    %2563 = vmatprep.subr.bf16.mxu0 0
    %2564 = vmatpush2.bf16.msra.mxu0 %v1999
    %2565 = vmatprep.subr.bf16.mxu0 0
    %2566 = vmatpush2.bf16.msra.mxu0 %v1994
    %2567 = vmatprep.subr.bf16.mxu0 0
    %2568 = vmatpush2.bf16.msra.mxu0 %v1989
    %2569 = vmatprep.subr.bf16.mxu0 0
    %2570 = vmatpush2.bf16.msra.mxu0 %v1984
    %2571 = vmatprep.subr.bf16.mxu0 0
    %2572 = vmatpush2.bf16.msra.mxu0 %v1979
    %2573 = vmatprep.mubr.bf16.mxu0 %v946
    %2574 = vmatmul.mubr.bf16.gmra.mxu0 %v945
    %v2575 = vpop.f32.mrf.mxu0
    %v2576 = vadd.f32 %v2536, %v2575
    %v2577 = vpop.f32.mrf.mxu0
    %v2578 = vpop.f32.mrf.mxu0
    %v2579 = vpop.f32.mrf.mxu0
    %2580 = vdwg.mxu0
    %2581 = vmatprep.subr.bf16.mxu0 0
    %2582 = vmatpush1.bf16.msra.mxu0 %v2054
    %2583 = vmatprep.subr.bf16.mxu0 0
    %2584 = vmatpush1.bf16.msra.mxu0 %v2049
    %2585 = vmatprep.subr.bf16.mxu0 0
    %2586 = vmatpush1.bf16.msra.mxu0 %v2044
    %2587 = vmatprep.subr.bf16.mxu0 0
    %2588 = vmatpush1.bf16.msra.mxu0 %v2039
    %2589 = vmatprep.subr.bf16.mxu0 0
    %2590 = vmatpush1.bf16.msra.mxu0 %v2034
    %2591 = vmatprep.subr.bf16.mxu0 0
    %2592 = vmatpush1.bf16.msra.mxu0 %v2029
    %2593 = vmatprep.subr.bf16.mxu0 0
    %2594 = vmatpush1.bf16.msra.mxu0 %v2024
    %2595 = vmatprep.subr.bf16.mxu0 0
    %2596 = vmatpush1.bf16.msra.mxu0 %v2019
    %2597 = vmatprep.subr.bf16.mxu0 0
    %2598 = vmatpush2.bf16.msra.mxu0 0
    %2599 = vmatprep.subr.bf16.mxu0 0
    %2600 = vmatpush2.bf16.msra.mxu0 0
    %2601 = vmatprep.subr.bf16.mxu0 0
    %2602 = vmatpush2.bf16.msra.mxu0 0
    %2603 = vmatprep.subr.bf16.mxu0 0
    %2604 = vmatpush2.bf16.msra.mxu0 0
    %2605 = vmatprep.subr.bf16.mxu0 0
    %2606 = vmatpush2.bf16.msra.mxu0 0
    %2607 = vmatprep.subr.bf16.mxu0 0
    %2608 = vmatpush2.bf16.msra.mxu0 0
    %2609 = vmatprep.subr.bf16.mxu0 0
    %2610 = vmatpush2.bf16.msra.mxu0 0
    %2611 = vmatprep.subr.bf16.mxu0 0
    %2612 = vmatpush2.bf16.msra.mxu0 0
    %2613 = vmatprep.mubr.bf16.mxu0 0
    %2614 = vmatmul.mubr.bf16.gmra.mxu0 %v947
    %v2615 = vpop.f32.mrf.mxu0
    %v2616 = vadd.f32 %v2576, %v2615
    %v2617 = vpop.f32.mrf.mxu0
    %v2618 = vpop.f32.mrf.mxu0
    %v2619 = vpop.f32.mrf.mxu0
    %2620 = vdwg.mxu0
    %v2621 = vmax.f32 %v2372, 0.0
    %v2622 = vmax.f32 %v2374, 0.0
    %v2623 = vmax.f32 %v2495, 0.0
    %v2624 = vmax.f32 %v2497, 0.0
    %v2625 = vmax.f32 %v2616, 0.0
    %v2626 = vpack.c.bf16 %v2621, %v2621
    %v2627 = vpack.c.bf16 %v2622, %v2622
    %v2628 = vpack.c.bf16 %v2623, %v2623
    %v2629 = vpack.c.bf16 %v2624, %v2624
    %v2630 = vpack.c.bf16 %v2625, %v2625
    %v2631 = vld [vmem:[%s10] sm:$0xff]
    %v2632 = vld [vmem:[%s10 + $0x8] sm:$0xff]
    %v2633 = vld [vmem:[%s10 + $0x10] sm:$0xf]
    %v2634 = vld [vmem:[%s10 + $0x14] sm:$0xff]
    %v2635 = vld [vmem:[%s10 + $0x1c] sm:$0xff]
    %v2636 = vld [vmem:[%s10 + $0x24] sm:$0xf]
    %v2637 = vld [vmem:[%s10 + $0x28] sm:$0xff]
    %v2638 = vld [vmem:[%s10 + $0x30] sm:$0xff]
    %v2639 = vld [vmem:[%s10 + $0x38] sm:$0xf]
    %v2640 = vld [vmem:[%s10 + $0x3c] sm:$0xff]
    %v2641 = vld [vmem:[%s10 + $0x44] sm:$0xff]
    %v2642 = vld [vmem:[%s10 + $0x4c] sm:$0xf]
    %v2643 = vld [vmem:[%s10 + $0x50] sm:$0xff]
    %v2644 = vld [vmem:[%s10 + $0x58] sm:$0xff]
    %v2645 = vld [vmem:[%s10 + $0x60] sm:$0xf]
    %v2646 = vld [vmem:[%s10 + $0x64] sm:$0xff]
    %v2647 = vld [vmem:[%s10 + $0x6c] sm:$0xff]
    %v2648 = vld [vmem:[%s10 + $0x74] sm:$0xf]
    %v2649 = vld [vmem:[%s10 + $0x78] sm:$0xff]
    %v2650 = vld [vmem:[%s10 + $0x80] sm:$0xff]
    %v2651 = vld [vmem:[%s10 + $0x88] sm:$0xf]
    %v2652 = vld [vmem:[%s10 + $0x8c] sm:$0xff]
    %v2653 = vld [vmem:[%s10 + $0x94] sm:$0xff]
    %v2654 = vld [vmem:[%s10 + $0x9c] sm:$0xf]
    %v2655 = vld [vmem:[%s10 + $0xa0] sm:$0xff]
    %v2656 = vld [vmem:[%s10 + $0xa8] sm:$0xff]
    %v2657 = vld [vmem:[%s10 + $0xb0] sm:$0xf]
    %v2658 = vld [vmem:[%s10 + $0xb4] sm:$0xff]
    %v2659 = vld [vmem:[%s10 + $0xbc] sm:$0xff]
    %v2660 = vld [vmem:[%s10 + $0xc4] sm:$0xf]
    %v2661 = vld [vmem:[%s10 + $0xc8] sm:$0xff]
    %v2662 = vld [vmem:[%s10 + $0xd0] sm:$0xff]
    %v2663 = vld [vmem:[%s10 + $0xd8] sm:$0xf]
    %v2664 = vld [vmem:[%s10 + $0xdc] sm:$0xff]
    %v2665 = vld [vmem:[%s10 + $0xe4] sm:$0xff]
    %v2666 = vld [vmem:[%s10 + $0xec] sm:$0xf]
    %v2667 = vld [vmem:[%s10 + $0xf0] sm:$0xff]
    %v2668 = vld [vmem:[%s10 + $0xf8] sm:$0xff]
    %v2669 = vld [vmem:[%s10 + $0x100] sm:$0xf]
    %v2670 = vld [vmem:[%s10 + $0x104] sm:$0xff]
    %v2671 = vld [vmem:[%s10 + $0x10c] sm:$0xff]
    %v2672 = vld [vmem:[%s10 + $0x114] sm:$0xf]
    %v2673 = vld [vmem:[%s10 + $0x118] sm:$0xff]
    %v2674 = vld [vmem:[%s10 + $0x120] sm:$0xff]
    %v2675 = vld [vmem:[%s10 + $0x128] sm:$0xf]
    %v2676 = vld [vmem:[%s10 + $0x12c] sm:$0xff]
    %v2677 = vld [vmem:[%s10 + $0x134] sm:$0xff]
    %v2678 = vld [vmem:[%s10 + $0x13c] sm:$0xf]
    %v2679 = vld [vmem:[%s10 + $0x140] sm:$0xff]
    %v2680 = vld [vmem:[%s10 + $0x148] sm:$0xff]
    %v2681 = vld [vmem:[%s10 + $0x150] sm:$0xf]
    %v2682 = vld [vmem:[%s10 + $0x154] sm:$0xff]
    %v2683 = vld [vmem:[%s10 + $0x15c] sm:$0xff]
    %v2684 = vld [vmem:[%s10 + $0x164] sm:$0xf]
    %v2685 = vld [vmem:[%s10 + $0x168] sm:$0xff]
    %v2686 = vld [vmem:[%s10 + $0x170] sm:$0xff]
    %v2687 = vld [vmem:[%s10 + $0x178] sm:$0xf]
    %v2688 = vld [vmem:[%s10 + $0x17c] sm:$0xff]
    %v2689 = vld [vmem:[%s10 + $0x184] sm:$0xff]
    %v2690 = vld [vmem:[%s10 + $0x18c] sm:$0xf]
    %v2691 = vld [vmem:[%s10 + $0x190] sm:$0xff]
    %v2692 = vld [vmem:[%s10 + $0x198] sm:$0xff]
    %v2693 = vld [vmem:[%s10 + $0x1a0] sm:$0xf]
    %v2694 = vld [vmem:[%s10 + $0x1a4] sm:$0xff]
    %v2695 = vld [vmem:[%s10 + $0x1ac] sm:$0xff]
    %v2696 = vld [vmem:[%s10 + $0x1b4] sm:$0xf]
    %v2697 = vld [vmem:[%s10 + $0x1b8] sm:$0xff]
    %v2698 = vld [vmem:[%s10 + $0x1c0] sm:$0xff]
    %v2699 = vld [vmem:[%s10 + $0x1c8] sm:$0xf]
    %v2700 = vld [vmem:[%s10 + $0x1cc] sm:$0xff]
    %v2701 = vld [vmem:[%s10 + $0x1d4] sm:$0xff]
    %v2702 = vld [vmem:[%s10 + $0x1dc] sm:$0xf]
    %v2703 = vld [vmem:[%s10 + $0x1e0] sm:$0xff]
    %v2704 = vld [vmem:[%s10 + $0x1e8] sm:$0xff]
    %v2705 = vld [vmem:[%s10 + $0x1f0] sm:$0xf]
    %v2706 = vld [vmem:[%s10 + $0x1f4] sm:$0xff]
    %v2707 = vld [vmem:[%s10 + $0x1fc] sm:$0xff]
    %v2708 = vld [vmem:[%s10 + $0x204] sm:$0xf]
    %v2709 = vld [vmem:[%s10 + $0x208] sm:$0xff]
    %v2710 = vld [vmem:[%s10 + $0x210] sm:$0xff]
    %v2711 = vld [vmem:[%s10 + $0x218] sm:$0xf]
    %v2712 = vld [vmem:[%s10 + $0x21c] sm:$0xff]
    %v2713 = vld [vmem:[%s10 + $0x224] sm:$0xff]
    %v2714 = vld [vmem:[%s10 + $0x22c] sm:$0xf]
    %v2715 = vld [vmem:[%s10 + $0x230] sm:$0xff]
    %v2716 = vld [vmem:[%s10 + $0x238] sm:$0xff]
    %v2717 = vld [vmem:[%s10 + $0x240] sm:$0xf]
    %v2718 = vld [vmem:[%s10 + $0x244] sm:$0xff]
    %v2719 = vld [vmem:[%s10 + $0x24c] sm:$0xff]
    %v2720 = vld [vmem:[%s10 + $0x254] sm:$0xf]
    %v2721 = vld [vmem:[%s10 + $0x258] sm:$0xff]
    %v2722 = vld [vmem:[%s10 + $0x260] sm:$0xff]
    %v2723 = vld [vmem:[%s10 + $0x268] sm:$0xf]
    %v2724 = vld [vmem:[%s10 + $0x26c] sm:$0xff]
    %v2725 = vld [vmem:[%s10 + $0x274] sm:$0xff]
    %v2726 = vld [vmem:[%s10 + $0x27c] sm:$0xf]
    %v2727 = vld [vmem:[%s10 + $0x280] sm:$0xff]
    %v2728 = vld [vmem:[%s10 + $0x288] sm:$0xff]
    %v2729 = vld [vmem:[%s10 + $0x290] sm:$0xf]
    %v2730 = vld [vmem:[%s10 + $0x294] sm:$0xff]
    %v2731 = vld [vmem:[%s10 + $0x29c] sm:$0xff]
    %v2732 = vld [vmem:[%s10 + $0x2a4] sm:$0xf]
    %v2733 = vld [vmem:[%s10 + $0x2a8] sm:$0xff]
    %v2734 = vld [vmem:[%s10 + $0x2b0] sm:$0xff]
    %v2735 = vld [vmem:[%s10 + $0x2b8] sm:$0xf]
    %v2736 = vld [vmem:[%s10 + $0x2bc] sm:$0xff]
    %v2737 = vld [vmem:[%s10 + $0x2c4] sm:$0xff]
    %v2738 = vld [vmem:[%s10 + $0x2cc] sm:$0xf]
    %v2739 = vld [vmem:[%s10 + $0x2d0] sm:$0xff]
    %v2740 = vld [vmem:[%s10 + $0x2d8] sm:$0xff]
    %v2741 = vld [vmem:[%s10 + $0x2e0] sm:$0xf]
    %v2742 = vld [vmem:[%s10 + $0x2e4] sm:$0xff]
    %v2743 = vld [vmem:[%s10 + $0x2ec] sm:$0xff]
    %v2744 = vld [vmem:[%s10 + $0x2f4] sm:$0xf]
    %v2745 = vld [vmem:[%s10 + $0x2f8] sm:$0xff]
    %v2746 = vld [vmem:[%s10 + $0x300] sm:$0xff]
    %v2747 = vld [vmem:[%s10 + $0x308] sm:$0xf]
    %v2748 = vld [vmem:[%s10 + $0x30c] sm:$0xff]
    %v2749 = vld [vmem:[%s10 + $0x314] sm:$0xff]
    %v2750 = vld [vmem:[%s10 + $0x31c] sm:$0xf]
    %v2751 = vld [vmem:[%s10 + $0x320] sm:$0xff]
    %v2752 = vld [vmem:[%s10 + $0x328] sm:$0xff]
    %v2753 = vld [vmem:[%s10 + $0x330] sm:$0xf]
    %v2754 = vld [vmem:[%s10 + $0x334] sm:$0xff]
    %v2755 = vld [vmem:[%s10 + $0x33c] sm:$0xff]
    %v2756 = vld [vmem:[%s10 + $0x344] sm:$0xf]
    %v2757 = vld [vmem:[%s10 + $0x348] sm:$0xff]
    %v2758 = vld [vmem:[%s10 + $0x350] sm:$0xff]
    %v2759 = vld [vmem:[%s10 + $0x358] sm:$0xf]
    %v2760 = vld [vmem:[%s10 + $0x35c] sm:$0xff]
    %v2761 = vld [vmem:[%s10 + $0x364] sm:$0xff]
    %v2762 = vld [vmem:[%s10 + $0x36c] sm:$0xf]
    %v2763 = vld [vmem:[%s10 + $0x370] sm:$0xff]
    %v2764 = vld [vmem:[%s10 + $0x378] sm:$0xff]
    %v2765 = vld [vmem:[%s10 + $0x380] sm:$0xf]
    %v2766 = vld [vmem:[%s10 + $0x384] sm:$0xff]
    %v2767 = vld [vmem:[%s10 + $0x38c] sm:$0xff]
    %v2768 = vld [vmem:[%s10 + $0x394] sm:$0xf]
    %v2769 = vld [vmem:[%s10 + $0x398] sm:$0xff]
    %v2770 = vld [vmem:[%s10 + $0x3a0] sm:$0xff]
    %v2771 = vld [vmem:[%s10 + $0x3a8] sm:$0xf]
    %v2772 = vld [vmem:[%s10 + $0x3ac] sm:$0xff]
    %v2773 = vld [vmem:[%s10 + $0x3b4] sm:$0xff]
    %v2774 = vld [vmem:[%s10 + $0x3bc] sm:$0xf]
    %v2775 = vld [vmem:[%s10 + $0x3c0] sm:$0xff]
    %v2776 = vld [vmem:[%s10 + $0x3c8] sm:$0xff]
    %v2777 = vld [vmem:[%s10 + $0x3d0] sm:$0xf]
    %v2778 = vld [vmem:[%s10 + $0x3d4] sm:$0xff]
    %v2779 = vld [vmem:[%s10 + $0x3dc] sm:$0xff]
    %v2780 = vld [vmem:[%s10 + $0x3e4] sm:$0xf]
    %v2781 = vld [vmem:[%s10 + $0x3e8] sm:$0xff]
    %v2782 = vld [vmem:[%s10 + $0x3f0] sm:$0xff]
    %v2783 = vld [vmem:[%s10 + $0x3f8] sm:$0xf]
    %v2784 = vld [vmem:[%s10 + $0x3fc] sm:$0xff]
    %v2785 = vld [vmem:[%s10 + $0x404] sm:$0xff]
    %v2786 = vld [vmem:[%s10 + $0x40c] sm:$0xf]
    %v2787 = vld [vmem:[%s10 + $0x410] sm:$0xff]
    %v2788 = vld [vmem:[%s10 + $0x418] sm:$0xff]
    %v2789 = vld [vmem:[%s10 + $0x420] sm:$0xf]
    %v2790 = vld [vmem:[%s10 + $0x424] sm:$0xff]
    %v2791 = vld [vmem:[%s10 + $0x42c] sm:$0xff]
    %v2792 = vld [vmem:[%s10 + $0x434] sm:$0xf]
    %v2793 = vld [vmem:[%s10 + $0x438] sm:$0xff]
    %v2794 = vld [vmem:[%s10 + $0x440] sm:$0xff]
    %v2795 = vld [vmem:[%s10 + $0x448] sm:$0xf]
    %v2796 = vld [vmem:[%s10 + $0x44c] sm:$0xff]
    %v2797 = vld [vmem:[%s10 + $0x454] sm:$0xff]
    %v2798 = vld [vmem:[%s10 + $0x45c] sm:$0xf]
    %v2799 = vld [vmem:[%s10 + $0x460] sm:$0xff]
    %v2800 = vld [vmem:[%s10 + $0x468] sm:$0xff]
    %v2801 = vld [vmem:[%s10 + $0x470] sm:$0xf]
    %v2802 = vld [vmem:[%s10 + $0x474] sm:$0xff]
    %v2803 = vld [vmem:[%s10 + $0x47c] sm:$0xff]
    %v2804 = vld [vmem:[%s10 + $0x484] sm:$0xf]
    %v2805 = vld [vmem:[%s10 + $0x488] sm:$0xff]
    %v2806 = vld [vmem:[%s10 + $0x490] sm:$0xff]
    %v2807 = vld [vmem:[%s10 + $0x498] sm:$0xf]
    %v2808 = vld [vmem:[%s10 + $0x49c] sm:$0xff]
    %v2809 = vld [vmem:[%s10 + $0x4a4] sm:$0xff]
    %v2810 = vld [vmem:[%s10 + $0x4ac] sm:$0xf]
    %v2811 = vld [vmem:[%s10 + $0x4b0] sm:$0xff]
    %v2812 = vld [vmem:[%s10 + $0x4b8] sm:$0xff]
    %v2813 = vld [vmem:[%s10 + $0x4c0] sm:$0xf]
    %v2814 = vld [vmem:[%s10 + $0x4c4] sm:$0xff]
    %v2815 = vld [vmem:[%s10 + $0x4cc] sm:$0xff]
    %v2816 = vld [vmem:[%s10 + $0x4d4] sm:$0xf]
    %v2817 = vld [vmem:[%s10 + $0x4d8] sm:$0xff]
    %v2818 = vld [vmem:[%s10 + $0x4e0] sm:$0xff]
    %v2819 = vld [vmem:[%s10 + $0x4e8] sm:$0xf]
    %v2820 = vld [vmem:[%s10 + $0x4ec] sm:$0xff]
    %v2821 = vld [vmem:[%s10 + $0x4f4] sm:$0xff]
    %v2822 = vld [vmem:[%s10 + $0x4fc] sm:$0xf]
    %v2823 = vld [vmem:[%s10 + $0x500] sm:$0xff]
    %v2824 = vld [vmem:[%s10 + $0x508] sm:$0xff]
    %v2825 = vld [vmem:[%s10 + $0x510] sm:$0xf]
    %v2826 = vld [vmem:[%s10 + $0x514] sm:$0xff]
    %v2827 = vld [vmem:[%s10 + $0x51c] sm:$0xff]
    %v2828 = vld [vmem:[%s10 + $0x524] sm:$0xf]
    %v2829 = vld [vmem:[%s10 + $0x528] sm:$0xff]
    %v2830 = vld [vmem:[%s10 + $0x530] sm:$0xff]
    %v2831 = vld [vmem:[%s10 + $0x538] sm:$0xf]
    %v2832 = vld [vmem:[%s10 + $0x53c] sm:$0xff]
    %v2833 = vld [vmem:[%s10 + $0x544] sm:$0xff]
    %v2834 = vld [vmem:[%s10 + $0x54c] sm:$0xf]
    %v2835 = vld [vmem:[%s10 + $0x550] sm:$0xff]
    %v2836 = vld [vmem:[%s10 + $0x558] sm:$0xff]
    %v2837 = vld [vmem:[%s10 + $0x560] sm:$0xf]
    %v2838 = vld [vmem:[%s10 + $0x564] sm:$0xff]
    %v2839 = vld [vmem:[%s10 + $0x56c] sm:$0xff]
    %v2840 = vld [vmem:[%s10 + $0x574] sm:$0xf]
    %v2841 = vld [vmem:[%s10 + $0x578] sm:$0xff]
    %v2842 = vld [vmem:[%s10 + $0x580] sm:$0xff]
    %v2843 = vld [vmem:[%s10 + $0x588] sm:$0xf]
    %v2844 = vld [vmem:[%s10 + $0x58c] sm:$0xff]
    %v2845 = vld [vmem:[%s10 + $0x594] sm:$0xff]
    %v2846 = vld [vmem:[%s10 + $0x59c] sm:$0xf]
    %v2847 = vld [vmem:[%s10 + $0x5a0] sm:$0xff]
    %v2848 = vld [vmem:[%s10 + $0x5a8] sm:$0xff]
    %v2849 = vld [vmem:[%s10 + $0x5b0] sm:$0xf]
    %v2850 = vld [vmem:[%s10 + $0x5b4] sm:$0xff]
    %v2851 = vld [vmem:[%s10 + $0x5bc] sm:$0xff]
    %v2852 = vld [vmem:[%s10 + $0x5c4] sm:$0xf]
    %v2853 = vld [vmem:[%s10 + $0x5c8] sm:$0xff]
    %v2854 = vld [vmem:[%s10 + $0x5d0] sm:$0xff]
    %v2855 = vld [vmem:[%s10 + $0x5d8] sm:$0xf]
    %v2856 = vld [vmem:[%s10 + $0x5dc] sm:$0xff]
    %v2857 = vld [vmem:[%s10 + $0x5e4] sm:$0xff]
    %v2858 = vld [vmem:[%s10 + $0x5ec] sm:$0xf]
    %v2859 = vld [vmem:[%s10 + $0x5f0] sm:$0xff]
    %v2860 = vld [vmem:[%s10 + $0x5f8] sm:$0xff]
    %v2861 = vld [vmem:[%s10 + $0x600] sm:$0xf]
    %v2862 = vld [vmem:[%s10 + $0x604] sm:$0xff]
    %v2863 = vld [vmem:[%s10 + $0x60c] sm:$0xff]
    %v2864 = vld [vmem:[%s10 + $0x614] sm:$0xf]
    %v2865 = vld [vmem:[%s10 + $0x618] sm:$0xff]
    %v2866 = vld [vmem:[%s10 + $0x620] sm:$0xff]
    %v2867 = vld [vmem:[%s10 + $0x628] sm:$0xf]
    %v2868 = vld [vmem:[%s10 + $0x62c] sm:$0xff]
    %v2869 = vld [vmem:[%s10 + $0x634] sm:$0xff]
    %v2870 = vld [vmem:[%s10 + $0x63c] sm:$0xf]
    %v2871 = vld [vmem:[%s11] sm:$0x1f]
    %v2873 = vlaneseq
    %v2874 = vshrl.u32 %v2873, 7
    %v2875 = vsub.s32 0, %v2874
    %v2876 = vrot.slane %v2871, %v2875
    %v2877 = vlaneseq
    %v2878 = vshrl.u32 %v2877, 7
    %v2879 = vsub.s32 1, %v2878
    %v2880 = vrot.slane %v2871, %v2879
    %v2881 = vlaneseq
    %v2882 = vshrl.u32 %v2881, 7
    %v2883 = vsub.s32 2, %v2882
    %v2884 = vrot.slane %v2871, %v2883
    %v2885 = vlaneseq
    %v2886 = vshrl.u32 %v2885, 7
    %v2887 = vsub.s32 3, %v2886
    %v2888 = vrot.slane %v2871, %v2887
    %v2889 = vlaneseq
    %v2890 = vshrl.u32 %v2889, 7
    %v2891 = vsub.s32 4, %v2890
    %v2892 = vrot.slane %v2871, %v2891
    %v3138 = vunpack.c.l.b16 %v2631
    %v3139 = vunpack.c.h.b16 %v2631
    %v3140 = vunpack.c.l.b16 %v2632
    %v3141 = vunpack.c.h.b16 %v2632
    %v3142 = vunpack.c.l.b16 %v2633
    %v3143 = vunpack.c.l.b16 %v2634
    %v3144 = vunpack.c.h.b16 %v2634
    %v3145 = vunpack.c.l.b16 %v2635
    %v3146 = vunpack.c.h.b16 %v2635
    %v3147 = vunpack.c.l.b16 %v2636
    %v3148 = vunpack.c.l.b16 %v2637
    %v3149 = vunpack.c.h.b16 %v2637
    %v3150 = vunpack.c.l.b16 %v2638
    %v3151 = vunpack.c.h.b16 %v2638
    %v3152 = vunpack.c.l.b16 %v2639
    %v3153 = vunpack.c.l.b16 %v2640
    %v3154 = vunpack.c.h.b16 %v2640
    %v3155 = vunpack.c.l.b16 %v2641
    %v3156 = vunpack.c.h.b16 %v2641
    %v3157 = vunpack.c.l.b16 %v2642
    %v3158 = vunpack.c.l.b16 %v2643
    %v3159 = vunpack.c.h.b16 %v2643
    %v3160 = vunpack.c.l.b16 %v2644
    %v3161 = vunpack.c.h.b16 %v2644
    %v3162 = vunpack.c.l.b16 %v2645
    %v3163 = vunpack.c.l.b16 %v2646
    %v3164 = vunpack.c.h.b16 %v2646
    %v3165 = vunpack.c.l.b16 %v2647
    %v3166 = vunpack.c.h.b16 %v2647
    %v3167 = vunpack.c.l.b16 %v2648
    %v3168 = vunpack.c.l.b16 %v2649
    %v3169 = vunpack.c.h.b16 %v2649
    %v3170 = vunpack.c.l.b16 %v2650
    %v3171 = vunpack.c.h.b16 %v2650
    %v3172 = vunpack.c.l.b16 %v2651
    %v3173 = vunpack.c.l.b16 %v2652
    %v3174 = vunpack.c.h.b16 %v2652
    %v3175 = vunpack.c.l.b16 %v2653
    %v3176 = vunpack.c.h.b16 %v2653
    %v3177 = vunpack.c.l.b16 %v2654
    %v3178 = vunpack.c.l.b16 %v2655
    %v3179 = vunpack.c.h.b16 %v2655
    %v3180 = vunpack.c.l.b16 %v2656
    %v3181 = vunpack.c.h.b16 %v2656
    %v3182 = vunpack.c.l.b16 %v2657
    %v3183 = vunpack.c.l.b16 %v2658
    %v3184 = vunpack.c.h.b16 %v2658
    %v3185 = vunpack.c.l.b16 %v2659
    %v3186 = vunpack.c.h.b16 %v2659
    %v3187 = vunpack.c.l.b16 %v2660
    %v3188 = vunpack.c.l.b16 %v2661
    %v3189 = vunpack.c.h.b16 %v2661
    %v3190 = vunpack.c.l.b16 %v2662
    %v3191 = vunpack.c.h.b16 %v2662
    %v3192 = vunpack.c.l.b16 %v2663
    %v3193 = vunpack.c.l.b16 %v2664
    %v3194 = vunpack.c.h.b16 %v2664
    %v3195 = vunpack.c.l.b16 %v2665
    %v3196 = vunpack.c.h.b16 %v2665
    %v3197 = vunpack.c.l.b16 %v2666
    %v3198 = vunpack.c.l.b16 %v2667
    %v3199 = vunpack.c.h.b16 %v2667
    %v3200 = vunpack.c.l.b16 %v2668
    %v3201 = vunpack.c.h.b16 %v2668
    %v3202 = vunpack.c.l.b16 %v2669
    %v3203 = vunpack.c.l.b16 %v2670
    %v3204 = vunpack.c.h.b16 %v2670
    %v3205 = vunpack.c.l.b16 %v2671
    %v3206 = vunpack.c.h.b16 %v2671
    %v3207 = vunpack.c.l.b16 %v2672
    %v3208 = vunpack.c.l.b16 %v2673
    %v3209 = vunpack.c.h.b16 %v2673
    %v3210 = vunpack.c.l.b16 %v2674
    %v3211 = vunpack.c.h.b16 %v2674
    %v3212 = vunpack.c.l.b16 %v2675
    %v3213 = vunpack.c.l.b16 %v2676
    %v3214 = vunpack.c.h.b16 %v2676
    %v3215 = vunpack.c.l.b16 %v2677
    %v3216 = vunpack.c.h.b16 %v2677
    %v3217 = vunpack.c.l.b16 %v2678
    %v3218 = vunpack.c.l.b16 %v2679
    %v3219 = vunpack.c.h.b16 %v2679
    %v3220 = vunpack.c.l.b16 %v2680
    %v3221 = vunpack.c.h.b16 %v2680
    %v3222 = vunpack.c.l.b16 %v2681
    %v3223 = vunpack.c.l.b16 %v2682
    %v3224 = vunpack.c.h.b16 %v2682
    %v3225 = vunpack.c.l.b16 %v2683
    %v3226 = vunpack.c.h.b16 %v2683
    %v3227 = vunpack.c.l.b16 %v2684
    %v3228 = vunpack.c.l.b16 %v2685
    %v3229 = vunpack.c.h.b16 %v2685
    %v3230 = vunpack.c.l.b16 %v2686
    %v3231 = vunpack.c.h.b16 %v2686
    %v3232 = vunpack.c.l.b16 %v2687
    %v3233 = vunpack.c.l.b16 %v2688
    %v3234 = vunpack.c.h.b16 %v2688
    %v3235 = vunpack.c.l.b16 %v2689
    %v3236 = vunpack.c.h.b16 %v2689
    %v3237 = vunpack.c.l.b16 %v2690
    %v3238 = vunpack.c.l.b16 %v2691
    %v3239 = vunpack.c.h.b16 %v2691
    %v3240 = vunpack.c.l.b16 %v2692
    %v3241 = vunpack.c.h.b16 %v2692
    %v3242 = vunpack.c.l.b16 %v2693
    %v3243 = vunpack.c.l.b16 %v2694
    %v3244 = vunpack.c.h.b16 %v2694
    %v3245 = vunpack.c.l.b16 %v2695
    %v3246 = vunpack.c.h.b16 %v2695
    %v3247 = vunpack.c.l.b16 %v2696
    %v3248 = vunpack.c.l.b16 %v2697
    %v3249 = vunpack.c.h.b16 %v2697
    %v3250 = vunpack.c.l.b16 %v2698
    %v3251 = vunpack.c.h.b16 %v2698
    %v3252 = vunpack.c.l.b16 %v2699
    %v3253 = vunpack.c.l.b16 %v2700
    %v3254 = vunpack.c.h.b16 %v2700
    %v3255 = vunpack.c.l.b16 %v2701
    %v3256 = vunpack.c.h.b16 %v2701
    %v3257 = vunpack.c.l.b16 %v2702
    %v3258 = vunpack.c.l.b16 %v2703
    %v3259 = vunpack.c.h.b16 %v2703
    %v3260 = vunpack.c.l.b16 %v2704
    %v3261 = vunpack.c.h.b16 %v2704
    %v3262 = vunpack.c.l.b16 %v2705
    %v3263 = vunpack.c.l.b16 %v2706
    %v3264 = vunpack.c.h.b16 %v2706
    %v3265 = vunpack.c.l.b16 %v2707
    %v3266 = vunpack.c.h.b16 %v2707
    %v3267 = vunpack.c.l.b16 %v2708
    %v3268 = vunpack.c.l.b16 %v2709
    %v3269 = vunpack.c.h.b16 %v2709
    %v3270 = vunpack.c.l.b16 %v2710
    %v3271 = vunpack.c.h.b16 %v2710
    %v3272 = vunpack.c.l.b16 %v2711
    %v3273 = vunpack.c.l.b16 %v2712
    %v3274 = vunpack.c.h.b16 %v2712
    %v3275 = vunpack.c.l.b16 %v2713
    %v3276 = vunpack.c.h.b16 %v2713
    %v3277 = vunpack.c.l.b16 %v2714
    %v3278 = vunpack.c.l.b16 %v2715
    %v3279 = vunpack.c.h.b16 %v2715
    %v3280 = vunpack.c.l.b16 %v2716
    %v3281 = vunpack.c.h.b16 %v2716
    %v3282 = vunpack.c.l.b16 %v2717
    %v3283 = vunpack.c.l.b16 %v2718
    %v3284 = vunpack.c.h.b16 %v2718
    %v3285 = vunpack.c.l.b16 %v2719
    %v3286 = vunpack.c.h.b16 %v2719
    %v3287 = vunpack.c.l.b16 %v2720
    %v3288 = vunpack.c.l.b16 %v2721
    %v3289 = vunpack.c.h.b16 %v2721
    %v3290 = vunpack.c.l.b16 %v2722
    %v3291 = vunpack.c.h.b16 %v2722
    %v3292 = vunpack.c.l.b16 %v2723
    %v3293 = vunpack.c.l.b16 %v2724
    %v3294 = vunpack.c.h.b16 %v2724
    %v3295 = vunpack.c.l.b16 %v2725
    %v3296 = vunpack.c.h.b16 %v2725
    %v3297 = vunpack.c.l.b16 %v2726
    %v3298 = vunpack.c.l.b16 %v2727
    %v3299 = vunpack.c.h.b16 %v2727
    %v3300 = vunpack.c.l.b16 %v2728
    %v3301 = vunpack.c.h.b16 %v2728
    %v3302 = vunpack.c.l.b16 %v2729
    %v3303 = vunpack.c.l.b16 %v2730
    %v3304 = vunpack.c.h.b16 %v2730
    %v3305 = vunpack.c.l.b16 %v2731
    %v3306 = vunpack.c.h.b16 %v2731
    %v3307 = vunpack.c.l.b16 %v2732
    %v3308 = vunpack.c.l.b16 %v2733
    %v3309 = vunpack.c.h.b16 %v2733
    %v3310 = vunpack.c.l.b16 %v2734
    %v3311 = vunpack.c.h.b16 %v2734
    %v3312 = vunpack.c.l.b16 %v2735
    %v3313 = vunpack.c.l.b16 %v2736
    %v3314 = vunpack.c.h.b16 %v2736
    %v3315 = vunpack.c.l.b16 %v2737
    %v3316 = vunpack.c.h.b16 %v2737
    %v3317 = vunpack.c.l.b16 %v2738
    %v3318 = vunpack.c.l.b16 %v2739
    %v3319 = vunpack.c.h.b16 %v2739
    %v3320 = vunpack.c.l.b16 %v2740
    %v3321 = vunpack.c.h.b16 %v2740
    %v3322 = vunpack.c.l.b16 %v2741
    %v3323 = vunpack.c.l.b16 %v2742
    %v3324 = vunpack.c.h.b16 %v2742
    %v3325 = vunpack.c.l.b16 %v2743
    %v3326 = vunpack.c.h.b16 %v2743
    %v3327 = vunpack.c.l.b16 %v2744
    %v3328 = vunpack.c.l.b16 %v2745
    %v3329 = vunpack.c.h.b16 %v2745
    %v3330 = vunpack.c.l.b16 %v2746
    %v3331 = vunpack.c.h.b16 %v2746
    %v3332 = vunpack.c.l.b16 %v2747
    %v3333 = vunpack.c.l.b16 %v2748
    %v3334 = vunpack.c.h.b16 %v2748
    %v3335 = vunpack.c.l.b16 %v2749
    %v3336 = vunpack.c.h.b16 %v2749
    %v3337 = vunpack.c.l.b16 %v2750
    %v3338 = vunpack.c.l.b16 %v2751
    %v3339 = vunpack.c.h.b16 %v2751
    %v3340 = vunpack.c.l.b16 %v2752
    %v3341 = vunpack.c.h.b16 %v2752
    %v3342 = vunpack.c.l.b16 %v2753
    %v3343 = vunpack.c.l.b16 %v2754
    %v3344 = vunpack.c.h.b16 %v2754
    %v3345 = vunpack.c.l.b16 %v2755
    %v3346 = vunpack.c.h.b16 %v2755
    %v3347 = vunpack.c.l.b16 %v2756
    %v3348 = vunpack.c.l.b16 %v2757
    %v3349 = vunpack.c.h.b16 %v2757
    %v3350 = vunpack.c.l.b16 %v2758
    %v3351 = vunpack.c.h.b16 %v2758
    %v3352 = vunpack.c.l.b16 %v2759
    %v3353 = vunpack.c.l.b16 %v2760
    %v3354 = vunpack.c.h.b16 %v2760
    %v3355 = vunpack.c.l.b16 %v2761
    %v3356 = vunpack.c.h.b16 %v2761
    %v3357 = vunpack.c.l.b16 %v2762
    %v3358 = vunpack.c.l.b16 %v2763
    %v3359 = vunpack.c.h.b16 %v2763
    %v3360 = vunpack.c.l.b16 %v2764
    %v3361 = vunpack.c.h.b16 %v2764
    %v3362 = vunpack.c.l.b16 %v2765
    %v3363 = vunpack.c.l.b16 %v2766
    %v3364 = vunpack.c.h.b16 %v2766
    %v3365 = vunpack.c.l.b16 %v2767
    %v3366 = vunpack.c.h.b16 %v2767
    %v3367 = vunpack.c.l.b16 %v2768
    %v3368 = vunpack.c.l.b16 %v2769
    %v3369 = vunpack.c.h.b16 %v2769
    %v3370 = vunpack.c.l.b16 %v2770
    %v3371 = vunpack.c.h.b16 %v2770
    %v3372 = vunpack.c.l.b16 %v2771
    %v3373 = vunpack.c.l.b16 %v2772
    %v3374 = vunpack.c.h.b16 %v2772
    %v3375 = vunpack.c.l.b16 %v2773
    %v3376 = vunpack.c.h.b16 %v2773
    %v3377 = vunpack.c.l.b16 %v2774
    %v3378 = vunpack.c.l.b16 %v2775
    %v3379 = vunpack.c.h.b16 %v2775
    %v3380 = vunpack.c.l.b16 %v2776
    %v3381 = vunpack.c.h.b16 %v2776
    %v3382 = vunpack.c.l.b16 %v2777
    %v3383 = vunpack.c.l.b16 %v2778
    %v3384 = vunpack.c.h.b16 %v2778
    %v3385 = vunpack.c.l.b16 %v2779
    %v3386 = vunpack.c.h.b16 %v2779
    %v3387 = vunpack.c.l.b16 %v2780
    %v3388 = vunpack.c.l.b16 %v2781
    %v3389 = vunpack.c.h.b16 %v2781
    %v3390 = vunpack.c.l.b16 %v2782
    %v3391 = vunpack.c.h.b16 %v2782
    %v3392 = vunpack.c.l.b16 %v2783
    %v3393 = vunpack.c.l.b16 %v2784
    %v3394 = vunpack.c.h.b16 %v2784
    %v3395 = vunpack.c.l.b16 %v2785
    %v3396 = vunpack.c.h.b16 %v2785
    %v3397 = vunpack.c.l.b16 %v2786
    %v3398 = vunpack.c.l.b16 %v2787
    %v3399 = vunpack.c.h.b16 %v2787
    %v3400 = vunpack.c.l.b16 %v2788
    %v3401 = vunpack.c.h.b16 %v2788
    %v3402 = vunpack.c.l.b16 %v2789
    %v3403 = vunpack.c.l.b16 %v2790
    %v3404 = vunpack.c.h.b16 %v2790
    %v3405 = vunpack.c.l.b16 %v2791
    %v3406 = vunpack.c.h.b16 %v2791
    %v3407 = vunpack.c.l.b16 %v2792
    %v3408 = vunpack.c.l.b16 %v2793
    %v3409 = vunpack.c.h.b16 %v2793
    %v3410 = vunpack.c.l.b16 %v2794
    %v3411 = vunpack.c.h.b16 %v2794
    %v3412 = vunpack.c.l.b16 %v2795
    %v3413 = vunpack.c.l.b16 %v2796
    %v3414 = vunpack.c.h.b16 %v2796
    %v3415 = vunpack.c.l.b16 %v2797
    %v3416 = vunpack.c.h.b16 %v2797
    %v3417 = vunpack.c.l.b16 %v2798
    %v3418 = vunpack.c.l.b16 %v2799
    %v3419 = vunpack.c.h.b16 %v2799
    %v3420 = vunpack.c.l.b16 %v2800
    %v3421 = vunpack.c.h.b16 %v2800
    %v3422 = vunpack.c.l.b16 %v2801
    %v3423 = vunpack.c.l.b16 %v2802
    %v3424 = vunpack.c.h.b16 %v2802
    %v3425 = vunpack.c.l.b16 %v2803
    %v3426 = vunpack.c.h.b16 %v2803
    %v3427 = vunpack.c.l.b16 %v2804
    %v3428 = vunpack.c.l.b16 %v2805
    %v3429 = vunpack.c.h.b16 %v2805
    %v3430 = vunpack.c.l.b16 %v2806
    %v3431 = vunpack.c.h.b16 %v2806
    %v3432 = vunpack.c.l.b16 %v2807
    %v3433 = vunpack.c.l.b16 %v2808
    %v3434 = vunpack.c.h.b16 %v2808
    %v3435 = vunpack.c.l.b16 %v2809
    %v3436 = vunpack.c.h.b16 %v2809
    %v3437 = vunpack.c.l.b16 %v2810
    %v3438 = vunpack.c.l.b16 %v2811
    %v3439 = vunpack.c.h.b16 %v2811
    %v3440 = vunpack.c.l.b16 %v2812
    %v3441 = vunpack.c.h.b16 %v2812
    %v3442 = vunpack.c.l.b16 %v2813
    %v3443 = vunpack.c.l.b16 %v2814
    %v3444 = vunpack.c.h.b16 %v2814
    %v3445 = vunpack.c.l.b16 %v2815
    %v3446 = vunpack.c.h.b16 %v2815
    %v3447 = vunpack.c.l.b16 %v2816
    %v3448 = vunpack.c.l.b16 %v2817
    %v3449 = vunpack.c.h.b16 %v2817
    %v3450 = vunpack.c.l.b16 %v2818
    %v3451 = vunpack.c.h.b16 %v2818
    %v3452 = vunpack.c.l.b16 %v2819
    %v3453 = vunpack.c.l.b16 %v2820
    %v3454 = vunpack.c.h.b16 %v2820
    %v3455 = vunpack.c.l.b16 %v2821
    %v3456 = vunpack.c.h.b16 %v2821
    %v3457 = vunpack.c.l.b16 %v2822
    %v3458 = vunpack.c.l.b16 %v2823
    %v3459 = vunpack.c.h.b16 %v2823
    %v3460 = vunpack.c.l.b16 %v2824
    %v3461 = vunpack.c.h.b16 %v2824
    %v3462 = vunpack.c.l.b16 %v2825
    %v3463 = vunpack.c.l.b16 %v2826
    %v3464 = vunpack.c.h.b16 %v2826
    %v3465 = vunpack.c.l.b16 %v2827
    %v3466 = vunpack.c.h.b16 %v2827
    %v3467 = vunpack.c.l.b16 %v2828
    %v3468 = vunpack.c.l.b16 %v2829
    %v3469 = vunpack.c.h.b16 %v2829
    %v3470 = vunpack.c.l.b16 %v2830
    %v3471 = vunpack.c.h.b16 %v2830
    %v3472 = vunpack.c.l.b16 %v2831
    %v3473 = vunpack.c.l.b16 %v2832
    %v3474 = vunpack.c.h.b16 %v2832
    %v3475 = vunpack.c.l.b16 %v2833
    %v3476 = vunpack.c.h.b16 %v2833
    %v3477 = vunpack.c.l.b16 %v2834
    %v3478 = vunpack.c.l.b16 %v2835
    %v3479 = vunpack.c.h.b16 %v2835
    %v3480 = vunpack.c.l.b16 %v2836
    %v3481 = vunpack.c.h.b16 %v2836
    %v3482 = vunpack.c.l.b16 %v2837
    %v3483 = vunpack.c.l.b16 %v2838
    %v3484 = vunpack.c.h.b16 %v2838
    %v3485 = vunpack.c.l.b16 %v2839
    %v3486 = vunpack.c.h.b16 %v2839
    %v3487 = vunpack.c.l.b16 %v2840
    %v3488 = vunpack.c.l.b16 %v2841
    %v3489 = vunpack.c.h.b16 %v2841
    %v3490 = vunpack.c.l.b16 %v2842
    %v3491 = vunpack.c.h.b16 %v2842
    %v3492 = vunpack.c.l.b16 %v2843
    %v3493 = vunpack.c.l.b16 %v2844
    %v3494 = vunpack.c.h.b16 %v2844
    %v3495 = vunpack.c.l.b16 %v2845
    %v3496 = vunpack.c.h.b16 %v2845
    %v3497 = vunpack.c.l.b16 %v2846
    %v3498 = vunpack.c.l.b16 %v2847
    %v3499 = vunpack.c.h.b16 %v2847
    %v3500 = vunpack.c.l.b16 %v2848
    %v3501 = vunpack.c.h.b16 %v2848
    %v3502 = vunpack.c.l.b16 %v2849
    %v3503 = vunpack.c.l.b16 %v2850
    %v3504 = vunpack.c.h.b16 %v2850
    %v3505 = vunpack.c.l.b16 %v2851
    %v3506 = vunpack.c.h.b16 %v2851
    %v3507 = vunpack.c.l.b16 %v2852
    %v3508 = vunpack.c.l.b16 %v2853
    %v3509 = vunpack.c.h.b16 %v2853
    %v3510 = vunpack.c.l.b16 %v2854
    %v3511 = vunpack.c.h.b16 %v2854
    %v3512 = vunpack.c.l.b16 %v2855
    %v3513 = vunpack.c.l.b16 %v2856
    %v3514 = vunpack.c.h.b16 %v2856
    %v3515 = vunpack.c.l.b16 %v2857
    %v3516 = vunpack.c.h.b16 %v2857
    %v3517 = vunpack.c.l.b16 %v2858
    %v3518 = vunpack.c.l.b16 %v2859
    %v3519 = vunpack.c.h.b16 %v2859
    %v3520 = vunpack.c.l.b16 %v2860
    %v3521 = vunpack.c.h.b16 %v2860
    %v3522 = vunpack.c.l.b16 %v2861
    %v3523 = vunpack.c.l.b16 %v2862
    %v3524 = vunpack.c.h.b16 %v2862
    %v3525 = vunpack.c.l.b16 %v2863
    %v3526 = vunpack.c.h.b16 %v2863
    %v3527 = vunpack.c.l.b16 %v2864
    %v3528 = vunpack.c.l.b16 %v2865
    %v3529 = vunpack.c.h.b16 %v2865
    %v3530 = vunpack.c.l.b16 %v2866
    %v3531 = vunpack.c.h.b16 %v2866
    %v3532 = vunpack.c.l.b16 %v2867
    %v3533 = vunpack.c.l.b16 %v2868
    %v3534 = vunpack.c.h.b16 %v2868
    %v3535 = vunpack.c.l.b16 %v2869
    %v3536 = vunpack.c.h.b16 %v2869
    %v3537 = vunpack.c.l.b16 %v2870
    %v3538 = vpack.c.b16 %v3143, %v3138
    %v3539 = vpack.c.b16 %v3144, %v3139
    %v3540 = vpack.c.b16 %v3145, %v3140
    %v3541 = vpack.c.b16 %v3146, %v3141
    %v3542 = vpack.c.b16 %v3147, %v3142
    %v3543 = vpack.c.b16 %v3153, %v3148
    %v3544 = vpack.c.b16 %v3154, %v3149
    %v3545 = vpack.c.b16 %v3155, %v3150
    %v3546 = vpack.c.b16 %v3156, %v3151
    %v3547 = vpack.c.b16 %v3157, %v3152
    %v3548 = vpack.c.b16 %v3163, %v3158
    %v3549 = vpack.c.b16 %v3164, %v3159
    %v3550 = vpack.c.b16 %v3165, %v3160
    %v3551 = vpack.c.b16 %v3166, %v3161
    %v3552 = vpack.c.b16 %v3167, %v3162
    %v3553 = vpack.c.b16 %v3173, %v3168
    %v3554 = vpack.c.b16 %v3174, %v3169
    %v3555 = vpack.c.b16 %v3175, %v3170
    %v3556 = vpack.c.b16 %v3176, %v3171
    %v3557 = vpack.c.b16 %v3177, %v3172
    %v3558 = vpack.c.b16 %v3183, %v3178
    %v3559 = vpack.c.b16 %v3184, %v3179
    %v3560 = vpack.c.b16 %v3185, %v3180
    %v3561 = vpack.c.b16 %v3186, %v3181
    %v3562 = vpack.c.b16 %v3187, %v3182
    %v3563 = vpack.c.b16 %v3193, %v3188
    %v3564 = vpack.c.b16 %v3194, %v3189
    %v3565 = vpack.c.b16 %v3195, %v3190
    %v3566 = vpack.c.b16 %v3196, %v3191
    %v3567 = vpack.c.b16 %v3197, %v3192
    %v3568 = vpack.c.b16 %v3203, %v3198
    %v3569 = vpack.c.b16 %v3204, %v3199
    %v3570 = vpack.c.b16 %v3205, %v3200
    %v3571 = vpack.c.b16 %v3206, %v3201
    %v3572 = vpack.c.b16 %v3207, %v3202
    %v3573 = vpack.c.b16 %v3213, %v3208
    %v3574 = vpack.c.b16 %v3214, %v3209
    %v3575 = vpack.c.b16 %v3215, %v3210
    %v3576 = vpack.c.b16 %v3216, %v3211
    %v3577 = vpack.c.b16 %v3217, %v3212
    %v3578 = vpack.c.b16 %v3223, %v3218
    %v3579 = vpack.c.b16 %v3224, %v3219
    %v3580 = vpack.c.b16 %v3225, %v3220
    %v3581 = vpack.c.b16 %v3226, %v3221
    %v3582 = vpack.c.b16 %v3227, %v3222
    %v3583 = vpack.c.b16 %v3233, %v3228
    %v3584 = vpack.c.b16 %v3234, %v3229
    %v3585 = vpack.c.b16 %v3235, %v3230
    %v3586 = vpack.c.b16 %v3236, %v3231
    %v3587 = vpack.c.b16 %v3237, %v3232
    %v3588 = vpack.c.b16 %v3243, %v3238
    %v3589 = vpack.c.b16 %v3244, %v3239
    %v3590 = vpack.c.b16 %v3245, %v3240
    %v3591 = vpack.c.b16 %v3246, %v3241
    %v3592 = vpack.c.b16 %v3247, %v3242
    %v3593 = vpack.c.b16 %v3253, %v3248
    %v3594 = vpack.c.b16 %v3254, %v3249
    %v3595 = vpack.c.b16 %v3255, %v3250
    %v3596 = vpack.c.b16 %v3256, %v3251
    %v3597 = vpack.c.b16 %v3257, %v3252
    %v3598 = vpack.c.b16 %v3263, %v3258
    %v3599 = vpack.c.b16 %v3264, %v3259
    %v3600 = vpack.c.b16 %v3265, %v3260
    %v3601 = vpack.c.b16 %v3266, %v3261
    %v3602 = vpack.c.b16 %v3267, %v3262
    %v3603 = vpack.c.b16 %v3273, %v3268
    %v3604 = vpack.c.b16 %v3274, %v3269
    %v3605 = vpack.c.b16 %v3275, %v3270
    %v3606 = vpack.c.b16 %v3276, %v3271
    %v3607 = vpack.c.b16 %v3277, %v3272
    %v3608 = vpack.c.b16 %v3283, %v3278
    %v3609 = vpack.c.b16 %v3284, %v3279
    %v3610 = vpack.c.b16 %v3285, %v3280
    %v3611 = vpack.c.b16 %v3286, %v3281
    %v3612 = vpack.c.b16 %v3287, %v3282
    %v3613 = vpack.c.b16 %v3293, %v3288
    %v3614 = vpack.c.b16 %v3294, %v3289
    %v3615 = vpack.c.b16 %v3295, %v3290
    %v3616 = vpack.c.b16 %v3296, %v3291
    %v3617 = vpack.c.b16 %v3297, %v3292
    %v3618 = vpack.c.b16 %v3303, %v3298
    %v3619 = vpack.c.b16 %v3304, %v3299
    %v3620 = vpack.c.b16 %v3305, %v3300
    %v3621 = vpack.c.b16 %v3306, %v3301
    %v3622 = vpack.c.b16 %v3307, %v3302
    %v3623 = vpack.c.b16 %v3313, %v3308
    %v3624 = vpack.c.b16 %v3314, %v3309
    %v3625 = vpack.c.b16 %v3315, %v3310
    %v3626 = vpack.c.b16 %v3316, %v3311
    %v3627 = vpack.c.b16 %v3317, %v3312
    %v3628 = vpack.c.b16 %v3323, %v3318
    %v3629 = vpack.c.b16 %v3324, %v3319
    %v3630 = vpack.c.b16 %v3325, %v3320
    %v3631 = vpack.c.b16 %v3326, %v3321
    %v3632 = vpack.c.b16 %v3327, %v3322
    %v3633 = vpack.c.b16 %v3333, %v3328
    %v3634 = vpack.c.b16 %v3334, %v3329
    %v3635 = vpack.c.b16 %v3335, %v3330
    %v3636 = vpack.c.b16 %v3336, %v3331
    %v3637 = vpack.c.b16 %v3337, %v3332
    %v3638 = vpack.c.b16 %v3343, %v3338
    %v3639 = vpack.c.b16 %v3344, %v3339
    %v3640 = vpack.c.b16 %v3345, %v3340
    %v3641 = vpack.c.b16 %v3346, %v3341
    %v3642 = vpack.c.b16 %v3347, %v3342
    %v3643 = vpack.c.b16 %v3353, %v3348
    %v3644 = vpack.c.b16 %v3354, %v3349
    %v3645 = vpack.c.b16 %v3355, %v3350
    %v3646 = vpack.c.b16 %v3356, %v3351
    %v3647 = vpack.c.b16 %v3357, %v3352
    %v3648 = vpack.c.b16 %v3363, %v3358
    %v3649 = vpack.c.b16 %v3364, %v3359
    %v3650 = vpack.c.b16 %v3365, %v3360
    %v3651 = vpack.c.b16 %v3366, %v3361
    %v3652 = vpack.c.b16 %v3367, %v3362
    %v3653 = vpack.c.b16 %v3373, %v3368
    %v3654 = vpack.c.b16 %v3374, %v3369
    %v3655 = vpack.c.b16 %v3375, %v3370
    %v3656 = vpack.c.b16 %v3376, %v3371
    %v3657 = vpack.c.b16 %v3377, %v3372
    %v3658 = vpack.c.b16 %v3383, %v3378
    %v3659 = vpack.c.b16 %v3384, %v3379
    %v3660 = vpack.c.b16 %v3385, %v3380
    %v3661 = vpack.c.b16 %v3386, %v3381
    %v3662 = vpack.c.b16 %v3387, %v3382
    %v3663 = vpack.c.b16 %v3393, %v3388
    %v3664 = vpack.c.b16 %v3394, %v3389
    %v3665 = vpack.c.b16 %v3395, %v3390
    %v3666 = vpack.c.b16 %v3396, %v3391
    %v3667 = vpack.c.b16 %v3397, %v3392
    %v3668 = vpack.c.b16 %v3403, %v3398
    %v3669 = vpack.c.b16 %v3404, %v3399
    %v3670 = vpack.c.b16 %v3405, %v3400
    %v3671 = vpack.c.b16 %v3406, %v3401
    %v3672 = vpack.c.b16 %v3407, %v3402
    %v3673 = vpack.c.b16 %v3413, %v3408
    %v3674 = vpack.c.b16 %v3414, %v3409
    %v3675 = vpack.c.b16 %v3415, %v3410
    %v3676 = vpack.c.b16 %v3416, %v3411
    %v3677 = vpack.c.b16 %v3417, %v3412
    %v3678 = vpack.c.b16 %v3423, %v3418
    %v3679 = vpack.c.b16 %v3424, %v3419
    %v3680 = vpack.c.b16 %v3425, %v3420
    %v3681 = vpack.c.b16 %v3426, %v3421
    %v3682 = vpack.c.b16 %v3427, %v3422
    %v3683 = vpack.c.b16 %v3433, %v3428
    %v3684 = vpack.c.b16 %v3434, %v3429
    %v3685 = vpack.c.b16 %v3435, %v3430
    %v3686 = vpack.c.b16 %v3436, %v3431
    %v3687 = vpack.c.b16 %v3437, %v3432
    %v3688 = vpack.c.b16 %v3443, %v3438
    %v3689 = vpack.c.b16 %v3444, %v3439
    %v3690 = vpack.c.b16 %v3445, %v3440
    %v3691 = vpack.c.b16 %v3446, %v3441
    %v3692 = vpack.c.b16 %v3447, %v3442
    %v3693 = vpack.c.b16 %v3453, %v3448
    %v3694 = vpack.c.b16 %v3454, %v3449
    %v3695 = vpack.c.b16 %v3455, %v3450
    %v3696 = vpack.c.b16 %v3456, %v3451
    %v3697 = vpack.c.b16 %v3457, %v3452
    %v3698 = vpack.c.b16 %v3463, %v3458
    %v3699 = vpack.c.b16 %v3464, %v3459
    %v3700 = vpack.c.b16 %v3465, %v3460
    %v3701 = vpack.c.b16 %v3466, %v3461
    %v3702 = vpack.c.b16 %v3467, %v3462
    %v3703 = vpack.c.b16 %v3473, %v3468
    %v3704 = vpack.c.b16 %v3474, %v3469
    %v3705 = vpack.c.b16 %v3475, %v3470
    %v3706 = vpack.c.b16 %v3476, %v3471
    %v3707 = vpack.c.b16 %v3477, %v3472
    %v3708 = vpack.c.b16 %v3483, %v3478
    %v3709 = vpack.c.b16 %v3484, %v3479
    %v3710 = vpack.c.b16 %v3485, %v3480
    %v3711 = vpack.c.b16 %v3486, %v3481
    %v3712 = vpack.c.b16 %v3487, %v3482
    %v3713 = vpack.c.b16 %v3493, %v3488
    %v3714 = vpack.c.b16 %v3494, %v3489
    %v3715 = vpack.c.b16 %v3495, %v3490
    %v3716 = vpack.c.b16 %v3496, %v3491
    %v3717 = vpack.c.b16 %v3497, %v3492
    %v3718 = vpack.c.b16 %v3503, %v3498
    %v3719 = vpack.c.b16 %v3504, %v3499
    %v3720 = vpack.c.b16 %v3505, %v3500
    %v3721 = vpack.c.b16 %v3506, %v3501
    %v3722 = vpack.c.b16 %v3507, %v3502
    %v3723 = vpack.c.b16 %v3513, %v3508
    %v3724 = vpack.c.b16 %v3514, %v3509
    %v3725 = vpack.c.b16 %v3515, %v3510
    %v3726 = vpack.c.b16 %v3516, %v3511
    %v3727 = vpack.c.b16 %v3517, %v3512
    %v3728 = vpack.c.b16 %v3523, %v3518
    %v3729 = vpack.c.b16 %v3524, %v3519
    %v3730 = vpack.c.b16 %v3525, %v3520
    %v3731 = vpack.c.b16 %v3526, %v3521
    %v3732 = vpack.c.b16 %v3527, %v3522
    %v3733 = vpack.c.b16 %v3533, %v3528
    %v3734 = vpack.c.b16 %v3534, %v3529
    %v3735 = vpack.c.b16 %v3535, %v3530
    %v3736 = vpack.c.b16 %v3536, %v3531
    %v3737 = vpack.c.b16 %v3537, %v3532
    %3938 = vmatprep.subr.bf16.mxu0 %v3574
    %3939 = vmatpush1.bf16.msra.mxu0 %v3573
    %3940 = vmatprep.subr.bf16.mxu0 %v3569
    %3941 = vmatpush1.bf16.msra.mxu0 %v3568
    %3942 = vmatprep.subr.bf16.mxu0 %v3564
    %3943 = vmatpush1.bf16.msra.mxu0 %v3563
    %3944 = vmatprep.subr.bf16.mxu0 %v3559
    %3945 = vmatpush1.bf16.msra.mxu0 %v3558
    %3946 = vmatprep.subr.bf16.mxu0 %v3554
    %3947 = vmatpush1.bf16.msra.mxu0 %v3553
    %3948 = vmatprep.subr.bf16.mxu0 %v3549
    %3949 = vmatpush1.bf16.msra.mxu0 %v3548
    %3950 = vmatprep.subr.bf16.mxu0 %v3544
    %3951 = vmatpush1.bf16.msra.mxu0 %v3543
    %3952 = vmatprep.subr.bf16.mxu0 %v3539
    %3953 = vmatpush1.bf16.msra.mxu0 %v3538
    %3954 = vmatprep.subr.bf16.mxu0 %v3614
    %3955 = vmatpush2.bf16.msra.mxu0 %v3613
    %3956 = vmatprep.subr.bf16.mxu0 %v3609
    %3957 = vmatpush2.bf16.msra.mxu0 %v3608
    %3958 = vmatprep.subr.bf16.mxu0 %v3604
    %3959 = vmatpush2.bf16.msra.mxu0 %v3603
    %3960 = vmatprep.subr.bf16.mxu0 %v3599
    %3961 = vmatpush2.bf16.msra.mxu0 %v3598
    %3962 = vmatprep.subr.bf16.mxu0 %v3594
    %3963 = vmatpush2.bf16.msra.mxu0 %v3593
    %3964 = vmatprep.subr.bf16.mxu0 %v3589
    %3965 = vmatpush2.bf16.msra.mxu0 %v3588
    %3966 = vmatprep.subr.bf16.mxu0 %v3584
    %3967 = vmatpush2.bf16.msra.mxu0 %v3583
    %3968 = vmatprep.subr.bf16.mxu0 %v3579
    %3969 = vmatpush2.bf16.msra.mxu0 %v3578
    %3970 = vmatprep.mubr.bf16.mxu0 %v2627
    %3971 = vmatmul.mubr.bf16.gmra.mxu0 %v2626
    %v3972 = vpop.f32.mrf.mxu0
    %v3973 = vadd.f32 %v2876, %v3972
    %v3974 = vpop.f32.mrf.mxu0
    %v3975 = vadd.f32 %v2880, %v3974
    %v3976 = vpop.f32.mrf.mxu0
    %v3977 = vpop.f32.mrf.mxu0
    %3978 = vdwg.mxu0
    %3979 = vmatprep.subr.bf16.mxu0 %v3654
    %3980 = vmatpush1.bf16.msra.mxu0 %v3653
    %3981 = vmatprep.subr.bf16.mxu0 %v3649
    %3982 = vmatpush1.bf16.msra.mxu0 %v3648
    %3983 = vmatprep.subr.bf16.mxu0 %v3644
    %3984 = vmatpush1.bf16.msra.mxu0 %v3643
    %3985 = vmatprep.subr.bf16.mxu0 %v3639
    %3986 = vmatpush1.bf16.msra.mxu0 %v3638
    %3987 = vmatprep.subr.bf16.mxu0 %v3634
    %3988 = vmatpush1.bf16.msra.mxu0 %v3633
    %3989 = vmatprep.subr.bf16.mxu0 %v3629
    %3990 = vmatpush1.bf16.msra.mxu0 %v3628
    %3991 = vmatprep.subr.bf16.mxu0 %v3624
    %3992 = vmatpush1.bf16.msra.mxu0 %v3623
    %3993 = vmatprep.subr.bf16.mxu0 %v3619
    %3994 = vmatpush1.bf16.msra.mxu0 %v3618
    %3995 = vmatprep.subr.bf16.mxu0 %v3694
    %3996 = vmatpush2.bf16.msra.mxu0 %v3693
    %3997 = vmatprep.subr.bf16.mxu0 %v3689
    %3998 = vmatpush2.bf16.msra.mxu0 %v3688
    %3999 = vmatprep.subr.bf16.mxu0 %v3684
    %4000 = vmatpush2.bf16.msra.mxu0 %v3683
    %4001 = vmatprep.subr.bf16.mxu0 %v3679
    %4002 = vmatpush2.bf16.msra.mxu0 %v3678
    %4003 = vmatprep.subr.bf16.mxu0 %v3674
    %4004 = vmatpush2.bf16.msra.mxu0 %v3673
    %4005 = vmatprep.subr.bf16.mxu0 %v3669
    %4006 = vmatpush2.bf16.msra.mxu0 %v3668
    %4007 = vmatprep.subr.bf16.mxu0 %v3664
    %4008 = vmatpush2.bf16.msra.mxu0 %v3663
    %4009 = vmatprep.subr.bf16.mxu0 %v3659
    %4010 = vmatpush2.bf16.msra.mxu0 %v3658
    %4011 = vmatprep.mubr.bf16.mxu0 %v2629
    %4012 = vmatmul.mubr.bf16.gmra.mxu0 %v2628
    %v4013 = vpop.f32.mrf.mxu0
    %v4014 = vadd.f32 %v3973, %v4013
    %v4015 = vpop.f32.mrf.mxu0
    %v4016 = vadd.f32 %v3975, %v4015
    %v4017 = vpop.f32.mrf.mxu0
    %v4018 = vpop.f32.mrf.mxu0
    %4019 = vdwg.mxu0
    %4020 = vmatprep.subr.bf16.mxu0 %v3734
    %4021 = vmatpush1.bf16.msra.mxu0 %v3733
    %4022 = vmatprep.subr.bf16.mxu0 %v3729
    %4023 = vmatpush1.bf16.msra.mxu0 %v3728
    %4024 = vmatprep.subr.bf16.mxu0 %v3724
    %4025 = vmatpush1.bf16.msra.mxu0 %v3723
    %4026 = vmatprep.subr.bf16.mxu0 %v3719
    %4027 = vmatpush1.bf16.msra.mxu0 %v3718
    %4028 = vmatprep.subr.bf16.mxu0 %v3714
    %4029 = vmatpush1.bf16.msra.mxu0 %v3713
    %4030 = vmatprep.subr.bf16.mxu0 %v3709
    %4031 = vmatpush1.bf16.msra.mxu0 %v3708
    %4032 = vmatprep.subr.bf16.mxu0 %v3704
    %4033 = vmatpush1.bf16.msra.mxu0 %v3703
    %4034 = vmatprep.subr.bf16.mxu0 %v3699
    %4035 = vmatpush1.bf16.msra.mxu0 %v3698
    %4036 = vmatprep.subr.bf16.mxu0 0
    %4037 = vmatpush2.bf16.msra.mxu0 0
    %4038 = vmatprep.subr.bf16.mxu0 0
    %4039 = vmatpush2.bf16.msra.mxu0 0
    %4040 = vmatprep.subr.bf16.mxu0 0
    %4041 = vmatpush2.bf16.msra.mxu0 0
    %4042 = vmatprep.subr.bf16.mxu0 0
    %4043 = vmatpush2.bf16.msra.mxu0 0
    %4044 = vmatprep.subr.bf16.mxu0 0
    %4045 = vmatpush2.bf16.msra.mxu0 0
    %4046 = vmatprep.subr.bf16.mxu0 0
    %4047 = vmatpush2.bf16.msra.mxu0 0
    %4048 = vmatprep.subr.bf16.mxu0 0
    %4049 = vmatpush2.bf16.msra.mxu0 0
    %4050 = vmatprep.subr.bf16.mxu0 0
    %4051 = vmatpush2.bf16.msra.mxu0 0
    %4052 = vmatprep.mubr.bf16.mxu0 0
    %4053 = vmatmul.mubr.bf16.gmra.mxu0 %v2630
    %v4054 = vpop.f32.mrf.mxu0
    %v4055 = vadd.f32 %v4014, %v4054
    %v4056 = vpop.f32.mrf.mxu0
    %v4057 = vadd.f32 %v4016, %v4056
    %v4058 = vpop.f32.mrf.mxu0
    %v4059 = vpop.f32.mrf.mxu0
    %4060 = vdwg.mxu0
    %4061 = vmatprep.subr.bf16.mxu0 %v3576
    %4062 = vmatpush1.bf16.msra.mxu0 %v3575
    %4063 = vmatprep.subr.bf16.mxu0 %v3571
    %4064 = vmatpush1.bf16.msra.mxu0 %v3570
    %4065 = vmatprep.subr.bf16.mxu0 %v3566
    %4066 = vmatpush1.bf16.msra.mxu0 %v3565
    %4067 = vmatprep.subr.bf16.mxu0 %v3561
    %4068 = vmatpush1.bf16.msra.mxu0 %v3560
    %4069 = vmatprep.subr.bf16.mxu0 %v3556
    %4070 = vmatpush1.bf16.msra.mxu0 %v3555
    %4071 = vmatprep.subr.bf16.mxu0 %v3551
    %4072 = vmatpush1.bf16.msra.mxu0 %v3550
    %4073 = vmatprep.subr.bf16.mxu0 %v3546
    %4074 = vmatpush1.bf16.msra.mxu0 %v3545
    %4075 = vmatprep.subr.bf16.mxu0 %v3541
    %4076 = vmatpush1.bf16.msra.mxu0 %v3540
    %4077 = vmatprep.subr.bf16.mxu0 %v3616
    %4078 = vmatpush2.bf16.msra.mxu0 %v3615
    %4079 = vmatprep.subr.bf16.mxu0 %v3611
    %4080 = vmatpush2.bf16.msra.mxu0 %v3610
    %4081 = vmatprep.subr.bf16.mxu0 %v3606
    %4082 = vmatpush2.bf16.msra.mxu0 %v3605
    %4083 = vmatprep.subr.bf16.mxu0 %v3601
    %4084 = vmatpush2.bf16.msra.mxu0 %v3600
    %4085 = vmatprep.subr.bf16.mxu0 %v3596
    %4086 = vmatpush2.bf16.msra.mxu0 %v3595
    %4087 = vmatprep.subr.bf16.mxu0 %v3591
    %4088 = vmatpush2.bf16.msra.mxu0 %v3590
    %4089 = vmatprep.subr.bf16.mxu0 %v3586
    %4090 = vmatpush2.bf16.msra.mxu0 %v3585
    %4091 = vmatprep.subr.bf16.mxu0 %v3581
    %4092 = vmatpush2.bf16.msra.mxu0 %v3580
    %4093 = vmatprep.mubr.bf16.mxu0 %v2627
    %4094 = vmatmul.mubr.bf16.gmra.mxu0 %v2626
    %v4095 = vpop.f32.mrf.mxu0
    %v4096 = vadd.f32 %v2884, %v4095
    %v4097 = vpop.f32.mrf.mxu0
    %v4098 = vadd.f32 %v2888, %v4097
    %v4099 = vpop.f32.mrf.mxu0
    %v4100 = vpop.f32.mrf.mxu0
    %4101 = vdwg.mxu0
    %4102 = vmatprep.subr.bf16.mxu0 %v3656
    %4103 = vmatpush1.bf16.msra.mxu0 %v3655
    %4104 = vmatprep.subr.bf16.mxu0 %v3651
    %4105 = vmatpush1.bf16.msra.mxu0 %v3650
    %4106 = vmatprep.subr.bf16.mxu0 %v3646
    %4107 = vmatpush1.bf16.msra.mxu0 %v3645
    %4108 = vmatprep.subr.bf16.mxu0 %v3641
    %4109 = vmatpush1.bf16.msra.mxu0 %v3640
    %4110 = vmatprep.subr.bf16.mxu0 %v3636
    %4111 = vmatpush1.bf16.msra.mxu0 %v3635
    %4112 = vmatprep.subr.bf16.mxu0 %v3631
    %4113 = vmatpush1.bf16.msra.mxu0 %v3630
    %4114 = vmatprep.subr.bf16.mxu0 %v3626
    %4115 = vmatpush1.bf16.msra.mxu0 %v3625
    %4116 = vmatprep.subr.bf16.mxu0 %v3621
    %4117 = vmatpush1.bf16.msra.mxu0 %v3620
    %4118 = vmatprep.subr.bf16.mxu0 %v3696
    %4119 = vmatpush2.bf16.msra.mxu0 %v3695
    %4120 = vmatprep.subr.bf16.mxu0 %v3691
    %4121 = vmatpush2.bf16.msra.mxu0 %v3690
    %4122 = vmatprep.subr.bf16.mxu0 %v3686
    %4123 = vmatpush2.bf16.msra.mxu0 %v3685
    %4124 = vmatprep.subr.bf16.mxu0 %v3681
    %4125 = vmatpush2.bf16.msra.mxu0 %v3680
    %4126 = vmatprep.subr.bf16.mxu0 %v3676
    %4127 = vmatpush2.bf16.msra.mxu0 %v3675
    %4128 = vmatprep.subr.bf16.mxu0 %v3671
    %4129 = vmatpush2.bf16.msra.mxu0 %v3670
    %4130 = vmatprep.subr.bf16.mxu0 %v3666
    %4131 = vmatpush2.bf16.msra.mxu0 %v3665
    %4132 = vmatprep.subr.bf16.mxu0 %v3661
    %4133 = vmatpush2.bf16.msra.mxu0 %v3660
    %4134 = vmatprep.mubr.bf16.mxu0 %v2629
    %4135 = vmatmul.mubr.bf16.gmra.mxu0 %v2628
    %v4136 = vpop.f32.mrf.mxu0
    %v4137 = vadd.f32 %v4096, %v4136
    %v4138 = vpop.f32.mrf.mxu0
    %v4139 = vadd.f32 %v4098, %v4138
    %v4140 = vpop.f32.mrf.mxu0
    %v4141 = vpop.f32.mrf.mxu0
    %4142 = vdwg.mxu0
    %4143 = vmatprep.subr.bf16.mxu0 %v3736
    %4144 = vmatpush1.bf16.msra.mxu0 %v3735
    %4145 = vmatprep.subr.bf16.mxu0 %v3731
    %4146 = vmatpush1.bf16.msra.mxu0 %v3730
    %4147 = vmatprep.subr.bf16.mxu0 %v3726
    %4148 = vmatpush1.bf16.msra.mxu0 %v3725
    %4149 = vmatprep.subr.bf16.mxu0 %v3721
    %4150 = vmatpush1.bf16.msra.mxu0 %v3720
    %4151 = vmatprep.subr.bf16.mxu0 %v3716
    %4152 = vmatpush1.bf16.msra.mxu0 %v3715
    %4153 = vmatprep.subr.bf16.mxu0 %v3711
    %4154 = vmatpush1.bf16.msra.mxu0 %v3710
    %4155 = vmatprep.subr.bf16.mxu0 %v3706
    %4156 = vmatpush1.bf16.msra.mxu0 %v3705
    %4157 = vmatprep.subr.bf16.mxu0 %v3701
    %4158 = vmatpush1.bf16.msra.mxu0 %v3700
    %4159 = vmatprep.subr.bf16.mxu0 0
    %4160 = vmatpush2.bf16.msra.mxu0 0
    %4161 = vmatprep.subr.bf16.mxu0 0
    %4162 = vmatpush2.bf16.msra.mxu0 0
    %4163 = vmatprep.subr.bf16.mxu0 0
    %4164 = vmatpush2.bf16.msra.mxu0 0
    %4165 = vmatprep.subr.bf16.mxu0 0
    %4166 = vmatpush2.bf16.msra.mxu0 0
    %4167 = vmatprep.subr.bf16.mxu0 0
    %4168 = vmatpush2.bf16.msra.mxu0 0
    %4169 = vmatprep.subr.bf16.mxu0 0
    %4170 = vmatpush2.bf16.msra.mxu0 0
    %4171 = vmatprep.subr.bf16.mxu0 0
    %4172 = vmatpush2.bf16.msra.mxu0 0
    %4173 = vmatprep.subr.bf16.mxu0 0
    %4174 = vmatpush2.bf16.msra.mxu0 0
    %4175 = vmatprep.mubr.bf16.mxu0 0
    %4176 = vmatmul.mubr.bf16.gmra.mxu0 %v2630
    %v4177 = vpop.f32.mrf.mxu0
    %v4178 = vadd.f32 %v4137, %v4177
    %v4179 = vpop.f32.mrf.mxu0
    %v4180 = vadd.f32 %v4139, %v4179
    %v4181 = vpop.f32.mrf.mxu0
    %v4182 = vpop.f32.mrf.mxu0
    %4183 = vdwg.mxu0
    %4184 = vmatprep.subr.bf16.mxu0 0
    %4185 = vmatpush1.bf16.msra.mxu0 %v3577
    %4186 = vmatprep.subr.bf16.mxu0 0
    %4187 = vmatpush1.bf16.msra.mxu0 %v3572
    %4188 = vmatprep.subr.bf16.mxu0 0
    %4189 = vmatpush1.bf16.msra.mxu0 %v3567
    %4190 = vmatprep.subr.bf16.mxu0 0
    %4191 = vmatpush1.bf16.msra.mxu0 %v3562
    %4192 = vmatprep.subr.bf16.mxu0 0
    %4193 = vmatpush1.bf16.msra.mxu0 %v3557
    %4194 = vmatprep.subr.bf16.mxu0 0
    %4195 = vmatpush1.bf16.msra.mxu0 %v3552
    %4196 = vmatprep.subr.bf16.mxu0 0
    %4197 = vmatpush1.bf16.msra.mxu0 %v3547
    %4198 = vmatprep.subr.bf16.mxu0 0
    %4199 = vmatpush1.bf16.msra.mxu0 %v3542
    %4200 = vmatprep.subr.bf16.mxu0 0
    %4201 = vmatpush2.bf16.msra.mxu0 %v3617
    %4202 = vmatprep.subr.bf16.mxu0 0
    %4203 = vmatpush2.bf16.msra.mxu0 %v3612
    %4204 = vmatprep.subr.bf16.mxu0 0
    %4205 = vmatpush2.bf16.msra.mxu0 %v3607
    %4206 = vmatprep.subr.bf16.mxu0 0
    %4207 = vmatpush2.bf16.msra.mxu0 %v3602
    %4208 = vmatprep.subr.bf16.mxu0 0
    %4209 = vmatpush2.bf16.msra.mxu0 %v3597
    %4210 = vmatprep.subr.bf16.mxu0 0
    %4211 = vmatpush2.bf16.msra.mxu0 %v3592
    %4212 = vmatprep.subr.bf16.mxu0 0
    %4213 = vmatpush2.bf16.msra.mxu0 %v3587
    %4214 = vmatprep.subr.bf16.mxu0 0
    %4215 = vmatpush2.bf16.msra.mxu0 %v3582
    %4216 = vmatprep.mubr.bf16.mxu0 %v2627
    %4217 = vmatmul.mubr.bf16.gmra.mxu0 %v2626
    %v4218 = vpop.f32.mrf.mxu0
    %v4219 = vadd.f32 %v2892, %v4218
    %v4220 = vpop.f32.mrf.mxu0
    %v4221 = vpop.f32.mrf.mxu0
    %v4222 = vpop.f32.mrf.mxu0
    %4223 = vdwg.mxu0
    %4224 = vmatprep.subr.bf16.mxu0 0
    %4225 = vmatpush1.bf16.msra.mxu0 %v3657
    %4226 = vmatprep.subr.bf16.mxu0 0
    %4227 = vmatpush1.bf16.msra.mxu0 %v3652
    %4228 = vmatprep.subr.bf16.mxu0 0
    %4229 = vmatpush1.bf16.msra.mxu0 %v3647
    %4230 = vmatprep.subr.bf16.mxu0 0
    %4231 = vmatpush1.bf16.msra.mxu0 %v3642
    %4232 = vmatprep.subr.bf16.mxu0 0
    %4233 = vmatpush1.bf16.msra.mxu0 %v3637
    %4234 = vmatprep.subr.bf16.mxu0 0
    %4235 = vmatpush1.bf16.msra.mxu0 %v3632
    %4236 = vmatprep.subr.bf16.mxu0 0
    %4237 = vmatpush1.bf16.msra.mxu0 %v3627
    %4238 = vmatprep.subr.bf16.mxu0 0
    %4239 = vmatpush1.bf16.msra.mxu0 %v3622
    %4240 = vmatprep.subr.bf16.mxu0 0
    %4241 = vmatpush2.bf16.msra.mxu0 %v3697
    %4242 = vmatprep.subr.bf16.mxu0 0
    %4243 = vmatpush2.bf16.msra.mxu0 %v3692
    %4244 = vmatprep.subr.bf16.mxu0 0
    %4245 = vmatpush2.bf16.msra.mxu0 %v3687
    %4246 = vmatprep.subr.bf16.mxu0 0
    %4247 = vmatpush2.bf16.msra.mxu0 %v3682
    %4248 = vmatprep.subr.bf16.mxu0 0
    %4249 = vmatpush2.bf16.msra.mxu0 %v3677
    %4250 = vmatprep.subr.bf16.mxu0 0
    %4251 = vmatpush2.bf16.msra.mxu0 %v3672
    %4252 = vmatprep.subr.bf16.mxu0 0
    %4253 = vmatpush2.bf16.msra.mxu0 %v3667
    %4254 = vmatprep.subr.bf16.mxu0 0
    %4255 = vmatpush2.bf16.msra.mxu0 %v3662
    %4256 = vmatprep.mubr.bf16.mxu0 %v2629
    %4257 = vmatmul.mubr.bf16.gmra.mxu0 %v2628
    %v4258 = vpop.f32.mrf.mxu0
    %v4259 = vadd.f32 %v4219, %v4258
    %v4260 = vpop.f32.mrf.mxu0
    %v4261 = vpop.f32.mrf.mxu0
    %v4262 = vpop.f32.mrf.mxu0
    %4263 = vdwg.mxu0
    %4264 = vmatprep.subr.bf16.mxu0 0
    %4265 = vmatpush1.bf16.msra.mxu0 %v3737
    %4266 = vmatprep.subr.bf16.mxu0 0
    %4267 = vmatpush1.bf16.msra.mxu0 %v3732
    %4268 = vmatprep.subr.bf16.mxu0 0
    %4269 = vmatpush1.bf16.msra.mxu0 %v3727
    %4270 = vmatprep.subr.bf16.mxu0 0
    %4271 = vmatpush1.bf16.msra.mxu0 %v3722
    %4272 = vmatprep.subr.bf16.mxu0 0
    %4273 = vmatpush1.bf16.msra.mxu0 %v3717
    %4274 = vmatprep.subr.bf16.mxu0 0
    %4275 = vmatpush1.bf16.msra.mxu0 %v3712
    %4276 = vmatprep.subr.bf16.mxu0 0
    %4277 = vmatpush1.bf16.msra.mxu0 %v3707
    %4278 = vmatprep.subr.bf16.mxu0 0
    %4279 = vmatpush1.bf16.msra.mxu0 %v3702
    %4280 = vmatprep.subr.bf16.mxu0 0
    %4281 = vmatpush2.bf16.msra.mxu0 0
    %4282 = vmatprep.subr.bf16.mxu0 0
    %4283 = vmatpush2.bf16.msra.mxu0 0
    %4284 = vmatprep.subr.bf16.mxu0 0
    %4285 = vmatpush2.bf16.msra.mxu0 0
    %4286 = vmatprep.subr.bf16.mxu0 0
    %4287 = vmatpush2.bf16.msra.mxu0 0
    %4288 = vmatprep.subr.bf16.mxu0 0
    %4289 = vmatpush2.bf16.msra.mxu0 0
    %4290 = vmatprep.subr.bf16.mxu0 0
    %4291 = vmatpush2.bf16.msra.mxu0 0
    %4292 = vmatprep.subr.bf16.mxu0 0
    %4293 = vmatpush2.bf16.msra.mxu0 0
    %4294 = vmatprep.subr.bf16.mxu0 0
    %4295 = vmatpush2.bf16.msra.mxu0 0
    %4296 = vmatprep.mubr.bf16.mxu0 0
    %4297 = vmatmul.mubr.bf16.gmra.mxu0 %v2630
    %v4298 = vpop.f32.mrf.mxu0
    %v4299 = vadd.f32 %v4259, %v4298
    %v4300 = vpop.f32.mrf.mxu0
    %v4301 = vpop.f32.mrf.mxu0
    %v4302 = vpop.f32.mrf.mxu0
    %4303 = vdwg.mxu0
    %v4304 = vmax.f32 %v4055, 0.0
    %v4305 = vmax.f32 %v4057, 0.0
    %v4306 = vmax.f32 %v4178, 0.0
    %v4307 = vmax.f32 %v4180, 0.0
    %v4308 = vmax.f32 %v4299, 0.0
    %v4309 = vpack.c.bf16 %v4304, %v4304
    %v4310 = vpack.c.bf16 %v4305, %v4305
    %v4311 = vpack.c.bf16 %v4306, %v4306
    %v4312 = vpack.c.bf16 %v4307, %v4307
    %v4313 = vpack.c.bf16 %v4308, %v4308
    %v4314 = vld [vmem:[%s12] sm:$0xf]
    %v4315 = vld [vmem:[%s12 + $0x4] sm:$0xf]
    %v4316 = vld [vmem:[%s12 + $0x8] sm:$0xf]
    %v4317 = vld [vmem:[%s12 + $0xc] sm:$0xf]
    %v4318 = vld [vmem:[%s12 + $0x10] sm:$0xf]
    %v4319 = vld [vmem:[%s12 + $0x14] sm:$0xf]
    %v4320 = vld [vmem:[%s12 + $0x18] sm:$0xf]
    %v4321 = vld [vmem:[%s12 + $0x1c] sm:$0xf]
    %v4322 = vld [vmem:[%s12 + $0x20] sm:$0xf]
    %v4323 = vld [vmem:[%s12 + $0x24] sm:$0xf]
    %v4324 = vld [vmem:[%s12 + $0x28] sm:$0xf]
    %v4325 = vld [vmem:[%s12 + $0x2c] sm:$0xf]
    %v4326 = vld [vmem:[%s12 + $0x30] sm:$0xf]
    %v4327 = vld [vmem:[%s12 + $0x34] sm:$0xf]
    %v4328 = vld [vmem:[%s12 + $0x38] sm:$0xf]
    %v4329 = vld [vmem:[%s12 + $0x3c] sm:$0xf]
    %v4330 = vld [vmem:[%s12 + $0x40] sm:$0xf]
    %v4331 = vld [vmem:[%s12 + $0x44] sm:$0xf]
    %v4332 = vld [vmem:[%s12 + $0x48] sm:$0xf]
    %v4333 = vld [vmem:[%s12 + $0x4c] sm:$0xf]
    %v4334 = vld [vmem:[%s12 + $0x50] sm:$0xf]
    %v4335 = vld [vmem:[%s12 + $0x54] sm:$0xf]
    %v4336 = vld [vmem:[%s12 + $0x58] sm:$0xf]
    %v4337 = vld [vmem:[%s12 + $0x5c] sm:$0xf]
    %v4338 = vld [vmem:[%s12 + $0x60] sm:$0xf]
    %v4339 = vld [vmem:[%s12 + $0x64] sm:$0xf]
    %v4340 = vld [vmem:[%s12 + $0x68] sm:$0xf]
    %v4341 = vld [vmem:[%s12 + $0x6c] sm:$0xf]
    %v4342 = vld [vmem:[%s12 + $0x70] sm:$0xf]
    %v4343 = vld [vmem:[%s12 + $0x74] sm:$0xf]
    %v4344 = vld [vmem:[%s12 + $0x78] sm:$0xf]
    %v4345 = vld [vmem:[%s12 + $0x7c] sm:$0xf]
    %v4346 = vld [vmem:[%s12 + $0x80] sm:$0xf]
    %v4347 = vld [vmem:[%s12 + $0x84] sm:$0xf]
    %v4348 = vld [vmem:[%s12 + $0x88] sm:$0xf]
    %v4349 = vld [vmem:[%s12 + $0x8c] sm:$0xf]
    %v4350 = vld [vmem:[%s12 + $0x90] sm:$0xf]
    %v4351 = vld [vmem:[%s12 + $0x94] sm:$0xf]
    %v4352 = vld [vmem:[%s12 + $0x98] sm:$0xf]
    %v4353 = vld [vmem:[%s12 + $0x9c] sm:$0xf]
    %v4354 = vld [vmem:[%s12 + $0xa0] sm:$0xf]
    %v4355 = vld [vmem:[%s12 + $0xa4] sm:$0xf]
    %v4356 = vld [vmem:[%s12 + $0xa8] sm:$0xf]
    %v4357 = vld [vmem:[%s12 + $0xac] sm:$0xf]
    %v4358 = vld [vmem:[%s12 + $0xb0] sm:$0xf]
    %v4359 = vld [vmem:[%s12 + $0xb4] sm:$0xf]
    %v4360 = vld [vmem:[%s12 + $0xb8] sm:$0xf]
    %v4361 = vld [vmem:[%s12 + $0xbc] sm:$0xf]
    %v4362 = vld [vmem:[%s12 + $0xc0] sm:$0xf]
    %v4363 = vld [vmem:[%s12 + $0xc4] sm:$0xf]
    %v4364 = vld [vmem:[%s12 + $0xc8] sm:$0xf]
    %v4365 = vld [vmem:[%s12 + $0xcc] sm:$0xf]
    %v4366 = vld [vmem:[%s12 + $0xd0] sm:$0xf]
    %v4367 = vld [vmem:[%s12 + $0xd4] sm:$0xf]
    %v4368 = vld [vmem:[%s12 + $0xd8] sm:$0xf]
    %v4369 = vld [vmem:[%s12 + $0xdc] sm:$0xf]
    %v4370 = vld [vmem:[%s12 + $0xe0] sm:$0xf]
    %v4371 = vld [vmem:[%s12 + $0xe4] sm:$0xf]
    %v4372 = vld [vmem:[%s12 + $0xe8] sm:$0xf]
    %v4373 = vld [vmem:[%s12 + $0xec] sm:$0xf]
    %v4374 = vld [vmem:[%s12 + $0xf0] sm:$0xf]
    %v4375 = vld [vmem:[%s12 + $0xf4] sm:$0xf]
    %v4376 = vld [vmem:[%s12 + $0xf8] sm:$0xf]
    %v4377 = vld [vmem:[%s12 + $0xfc] sm:$0xf]
    %v4378 = vld [vmem:[%s12 + $0x100] sm:$0xf]
    %v4379 = vld [vmem:[%s12 + $0x104] sm:$0xf]
    %v4380 = vld [vmem:[%s12 + $0x108] sm:$0xf]
    %v4381 = vld [vmem:[%s12 + $0x10c] sm:$0xf]
    %v4382 = vld [vmem:[%s12 + $0x110] sm:$0xf]
    %v4383 = vld [vmem:[%s12 + $0x114] sm:$0xf]
    %v4384 = vld [vmem:[%s12 + $0x118] sm:$0xf]
    %v4385 = vld [vmem:[%s12 + $0x11c] sm:$0xf]
    %v4386 = vld [vmem:[%s12 + $0x120] sm:$0xf]
    %v4387 = vld [vmem:[%s12 + $0x124] sm:$0xf]
    %v4388 = vld [vmem:[%s12 + $0x128] sm:$0xf]
    %v4389 = vld [vmem:[%s12 + $0x12c] sm:$0xf]
    %v4390 = vld [vmem:[%s12 + $0x130] sm:$0xf]
    %v4391 = vld [vmem:[%s12 + $0x134] sm:$0xf]
    %v4392 = vld [vmem:[%s12 + $0x138] sm:$0xf]
    %v4393 = vld [vmem:[%s12 + $0x13c] sm:$0xf]
    %v4394 = vld [vmem:[%s13] sm:$0x1]
    %v4396 = vlaneseq
    %v4397 = vshrl.u32 %v4396, 7
    %v4398 = vsub.s32 0, %v4397
    %v4399 = vrot.slane %v4394, %v4398
    %v4481 = vunpack.c.l.b16 %v4314
    %v4482 = vunpack.c.l.b16 %v4315
    %v4483 = vunpack.c.l.b16 %v4316
    %v4484 = vunpack.c.l.b16 %v4317
    %v4485 = vunpack.c.l.b16 %v4318
    %v4486 = vunpack.c.l.b16 %v4319
    %v4487 = vunpack.c.l.b16 %v4320
    %v4488 = vunpack.c.l.b16 %v4321
    %v4489 = vunpack.c.l.b16 %v4322
    %v4490 = vunpack.c.l.b16 %v4323
    %v4491 = vunpack.c.l.b16 %v4324
    %v4492 = vunpack.c.l.b16 %v4325
    %v4493 = vunpack.c.l.b16 %v4326
    %v4494 = vunpack.c.l.b16 %v4327
    %v4495 = vunpack.c.l.b16 %v4328
    %v4496 = vunpack.c.l.b16 %v4329
    %v4497 = vunpack.c.l.b16 %v4330
    %v4498 = vunpack.c.l.b16 %v4331
    %v4499 = vunpack.c.l.b16 %v4332
    %v4500 = vunpack.c.l.b16 %v4333
    %v4501 = vunpack.c.l.b16 %v4334
    %v4502 = vunpack.c.l.b16 %v4335
    %v4503 = vunpack.c.l.b16 %v4336
    %v4504 = vunpack.c.l.b16 %v4337
    %v4505 = vunpack.c.l.b16 %v4338
    %v4506 = vunpack.c.l.b16 %v4339
    %v4507 = vunpack.c.l.b16 %v4340
    %v4508 = vunpack.c.l.b16 %v4341
    %v4509 = vunpack.c.l.b16 %v4342
    %v4510 = vunpack.c.l.b16 %v4343
    %v4511 = vunpack.c.l.b16 %v4344
    %v4512 = vunpack.c.l.b16 %v4345
    %v4513 = vunpack.c.l.b16 %v4346
    %v4514 = vunpack.c.l.b16 %v4347
    %v4515 = vunpack.c.l.b16 %v4348
    %v4516 = vunpack.c.l.b16 %v4349
    %v4517 = vunpack.c.l.b16 %v4350
    %v4518 = vunpack.c.l.b16 %v4351
    %v4519 = vunpack.c.l.b16 %v4352
    %v4520 = vunpack.c.l.b16 %v4353
    %v4521 = vunpack.c.l.b16 %v4354
    %v4522 = vunpack.c.l.b16 %v4355
    %v4523 = vunpack.c.l.b16 %v4356
    %v4524 = vunpack.c.l.b16 %v4357
    %v4525 = vunpack.c.l.b16 %v4358
    %v4526 = vunpack.c.l.b16 %v4359
    %v4527 = vunpack.c.l.b16 %v4360
    %v4528 = vunpack.c.l.b16 %v4361
    %v4529 = vunpack.c.l.b16 %v4362
    %v4530 = vunpack.c.l.b16 %v4363
    %v4531 = vunpack.c.l.b16 %v4364
    %v4532 = vunpack.c.l.b16 %v4365
    %v4533 = vunpack.c.l.b16 %v4366
    %v4534 = vunpack.c.l.b16 %v4367
    %v4535 = vunpack.c.l.b16 %v4368
    %v4536 = vunpack.c.l.b16 %v4369
    %v4537 = vunpack.c.l.b16 %v4370
    %v4538 = vunpack.c.l.b16 %v4371
    %v4539 = vunpack.c.l.b16 %v4372
    %v4540 = vunpack.c.l.b16 %v4373
    %v4541 = vunpack.c.l.b16 %v4374
    %v4542 = vunpack.c.l.b16 %v4375
    %v4543 = vunpack.c.l.b16 %v4376
    %v4544 = vunpack.c.l.b16 %v4377
    %v4545 = vunpack.c.l.b16 %v4378
    %v4546 = vunpack.c.l.b16 %v4379
    %v4547 = vunpack.c.l.b16 %v4380
    %v4548 = vunpack.c.l.b16 %v4381
    %v4549 = vunpack.c.l.b16 %v4382
    %v4550 = vunpack.c.l.b16 %v4383
    %v4551 = vunpack.c.l.b16 %v4384
    %v4552 = vunpack.c.l.b16 %v4385
    %v4553 = vunpack.c.l.b16 %v4386
    %v4554 = vunpack.c.l.b16 %v4387
    %v4555 = vunpack.c.l.b16 %v4388
    %v4556 = vunpack.c.l.b16 %v4389
    %v4557 = vunpack.c.l.b16 %v4390
    %v4558 = vunpack.c.l.b16 %v4391
    %v4559 = vunpack.c.l.b16 %v4392
    %v4560 = vunpack.c.l.b16 %v4393
    %v4561 = vpack.c.b16 %v4482, %v4481
    %v4562 = vpack.c.b16 %v4484, %v4483
    %v4563 = vpack.c.b16 %v4486, %v4485
    %v4564 = vpack.c.b16 %v4488, %v4487
    %v4565 = vpack.c.b16 %v4490, %v4489
    %v4566 = vpack.c.b16 %v4492, %v4491
    %v4567 = vpack.c.b16 %v4494, %v4493
    %v4568 = vpack.c.b16 %v4496, %v4495
    %v4569 = vpack.c.b16 %v4498, %v4497
    %v4570 = vpack.c.b16 %v4500, %v4499
    %v4571 = vpack.c.b16 %v4502, %v4501
    %v4572 = vpack.c.b16 %v4504, %v4503
    %v4573 = vpack.c.b16 %v4506, %v4505
    %v4574 = vpack.c.b16 %v4508, %v4507
    %v4575 = vpack.c.b16 %v4510, %v4509
    %v4576 = vpack.c.b16 %v4512, %v4511
    %v4577 = vpack.c.b16 %v4514, %v4513
    %v4578 = vpack.c.b16 %v4516, %v4515
    %v4579 = vpack.c.b16 %v4518, %v4517
    %v4580 = vpack.c.b16 %v4520, %v4519
    %v4581 = vpack.c.b16 %v4522, %v4521
    %v4582 = vpack.c.b16 %v4524, %v4523
    %v4583 = vpack.c.b16 %v4526, %v4525
    %v4584 = vpack.c.b16 %v4528, %v4527
    %v4585 = vpack.c.b16 %v4530, %v4529
    %v4586 = vpack.c.b16 %v4532, %v4531
    %v4587 = vpack.c.b16 %v4534, %v4533
    %v4588 = vpack.c.b16 %v4536, %v4535
    %v4589 = vpack.c.b16 %v4538, %v4537
    %v4590 = vpack.c.b16 %v4540, %v4539
    %v4591 = vpack.c.b16 %v4542, %v4541
    %v4592 = vpack.c.b16 %v4544, %v4543
    %v4593 = vpack.c.b16 %v4546, %v4545
    %v4594 = vpack.c.b16 %v4548, %v4547
    %v4595 = vpack.c.b16 %v4550, %v4549
    %v4596 = vpack.c.b16 %v4552, %v4551
    %v4597 = vpack.c.b16 %v4554, %v4553
    %v4598 = vpack.c.b16 %v4556, %v4555
    %v4599 = vpack.c.b16 %v4558, %v4557
    %v4600 = vpack.c.b16 %v4560, %v4559
    %4641 = vmatprep.subr.bf16.mxu0 0
    %4642 = vmatpush1.bf16.msra.mxu0 %v4568
    %4643 = vmatprep.subr.bf16.mxu0 0
    %4644 = vmatpush1.bf16.msra.mxu0 %v4567
    %4645 = vmatprep.subr.bf16.mxu0 0
    %4646 = vmatpush1.bf16.msra.mxu0 %v4566
    %4647 = vmatprep.subr.bf16.mxu0 0
    %4648 = vmatpush1.bf16.msra.mxu0 %v4565
    %4649 = vmatprep.subr.bf16.mxu0 0
    %4650 = vmatpush1.bf16.msra.mxu0 %v4564
    %4651 = vmatprep.subr.bf16.mxu0 0
    %4652 = vmatpush1.bf16.msra.mxu0 %v4563
    %4653 = vmatprep.subr.bf16.mxu0 0
    %4654 = vmatpush1.bf16.msra.mxu0 %v4562
    %4655 = vmatprep.subr.bf16.mxu0 0
    %4656 = vmatpush1.bf16.msra.mxu0 %v4561
    %4657 = vmatprep.subr.bf16.mxu0 0
    %4658 = vmatpush2.bf16.msra.mxu0 %v4576
    %4659 = vmatprep.subr.bf16.mxu0 0
    %4660 = vmatpush2.bf16.msra.mxu0 %v4575
    %4661 = vmatprep.subr.bf16.mxu0 0
    %4662 = vmatpush2.bf16.msra.mxu0 %v4574
    %4663 = vmatprep.subr.bf16.mxu0 0
    %4664 = vmatpush2.bf16.msra.mxu0 %v4573
    %4665 = vmatprep.subr.bf16.mxu0 0
    %4666 = vmatpush2.bf16.msra.mxu0 %v4572
    %4667 = vmatprep.subr.bf16.mxu0 0
    %4668 = vmatpush2.bf16.msra.mxu0 %v4571
    %4669 = vmatprep.subr.bf16.mxu0 0
    %4670 = vmatpush2.bf16.msra.mxu0 %v4570
    %4671 = vmatprep.subr.bf16.mxu0 0
    %4672 = vmatpush2.bf16.msra.mxu0 %v4569
    %4673 = vmatprep.mubr.bf16.mxu0 %v4310
    %4674 = vmatmul.mubr.bf16.gmra.mxu0 %v4309
    %v4675 = vpop.f32.mrf.mxu0
    %v4676 = vadd.f32 %v4399, %v4675
    %v4677 = vpop.f32.mrf.mxu0
    %v4678 = vpop.f32.mrf.mxu0
    %v4679 = vpop.f32.mrf.mxu0
    %4680 = vdwg.mxu0
    %4681 = vmatprep.subr.bf16.mxu0 0
    %4682 = vmatpush1.bf16.msra.mxu0 %v4584
    %4683 = vmatprep.subr.bf16.mxu0 0
    %4684 = vmatpush1.bf16.msra.mxu0 %v4583
    %4685 = vmatprep.subr.bf16.mxu0 0
    %4686 = vmatpush1.bf16.msra.mxu0 %v4582
    %4687 = vmatprep.subr.bf16.mxu0 0
    %4688 = vmatpush1.bf16.msra.mxu0 %v4581
    %4689 = vmatprep.subr.bf16.mxu0 0
    %4690 = vmatpush1.bf16.msra.mxu0 %v4580
    %4691 = vmatprep.subr.bf16.mxu0 0
    %4692 = vmatpush1.bf16.msra.mxu0 %v4579
    %4693 = vmatprep.subr.bf16.mxu0 0
    %4694 = vmatpush1.bf16.msra.mxu0 %v4578
    %4695 = vmatprep.subr.bf16.mxu0 0
    %4696 = vmatpush1.bf16.msra.mxu0 %v4577
    %4697 = vmatprep.subr.bf16.mxu0 0
    %4698 = vmatpush2.bf16.msra.mxu0 %v4592
    %4699 = vmatprep.subr.bf16.mxu0 0
    %4700 = vmatpush2.bf16.msra.mxu0 %v4591
    %4701 = vmatprep.subr.bf16.mxu0 0
    %4702 = vmatpush2.bf16.msra.mxu0 %v4590
    %4703 = vmatprep.subr.bf16.mxu0 0
    %4704 = vmatpush2.bf16.msra.mxu0 %v4589
    %4705 = vmatprep.subr.bf16.mxu0 0
    %4706 = vmatpush2.bf16.msra.mxu0 %v4588
    %4707 = vmatprep.subr.bf16.mxu0 0
    %4708 = vmatpush2.bf16.msra.mxu0 %v4587
    %4709 = vmatprep.subr.bf16.mxu0 0
    %4710 = vmatpush2.bf16.msra.mxu0 %v4586
    %4711 = vmatprep.subr.bf16.mxu0 0
    %4712 = vmatpush2.bf16.msra.mxu0 %v4585
    %4713 = vmatprep.mubr.bf16.mxu0 %v4312
    %4714 = vmatmul.mubr.bf16.gmra.mxu0 %v4311
    %v4715 = vpop.f32.mrf.mxu0
    %v4716 = vadd.f32 %v4676, %v4715
    %v4717 = vpop.f32.mrf.mxu0
    %v4718 = vpop.f32.mrf.mxu0
    %v4719 = vpop.f32.mrf.mxu0
    %4720 = vdwg.mxu0
    %4721 = vmatprep.subr.bf16.mxu0 0
    %4722 = vmatpush1.bf16.msra.mxu0 %v4600
    %4723 = vmatprep.subr.bf16.mxu0 0
    %4724 = vmatpush1.bf16.msra.mxu0 %v4599
    %4725 = vmatprep.subr.bf16.mxu0 0
    %4726 = vmatpush1.bf16.msra.mxu0 %v4598
    %4727 = vmatprep.subr.bf16.mxu0 0
    %4728 = vmatpush1.bf16.msra.mxu0 %v4597
    %4729 = vmatprep.subr.bf16.mxu0 0
    %4730 = vmatpush1.bf16.msra.mxu0 %v4596
    %4731 = vmatprep.subr.bf16.mxu0 0
    %4732 = vmatpush1.bf16.msra.mxu0 %v4595
    %4733 = vmatprep.subr.bf16.mxu0 0
    %4734 = vmatpush1.bf16.msra.mxu0 %v4594
    %4735 = vmatprep.subr.bf16.mxu0 0
    %4736 = vmatpush1.bf16.msra.mxu0 %v4593
    %4737 = vmatprep.subr.bf16.mxu0 0
    %4738 = vmatpush2.bf16.msra.mxu0 0
    %4739 = vmatprep.subr.bf16.mxu0 0
    %4740 = vmatpush2.bf16.msra.mxu0 0
    %4741 = vmatprep.subr.bf16.mxu0 0
    %4742 = vmatpush2.bf16.msra.mxu0 0
    %4743 = vmatprep.subr.bf16.mxu0 0
    %4744 = vmatpush2.bf16.msra.mxu0 0
    %4745 = vmatprep.subr.bf16.mxu0 0
    %4746 = vmatpush2.bf16.msra.mxu0 0
    %4747 = vmatprep.subr.bf16.mxu0 0
    %4748 = vmatpush2.bf16.msra.mxu0 0
    %4749 = vmatprep.subr.bf16.mxu0 0
    %4750 = vmatpush2.bf16.msra.mxu0 0
    %4751 = vmatprep.subr.bf16.mxu0 0
    %4752 = vmatpush2.bf16.msra.mxu0 0
    %4753 = vmatprep.mubr.bf16.mxu0 0
    %4754 = vmatmul.mubr.bf16.gmra.mxu0 %v4313
    %v4755 = vpop.f32.mrf.mxu0
    %v4756 = vadd.f32 %v4716, %v4755
    %v4757 = vpop.f32.mrf.mxu0
    %v4758 = vpop.f32.mrf.mxu0
    %v4759 = vpop.f32.mrf.mxu0
    %4760 = vdwg.mxu0
    %4761 = vst [vmem:[#allocation4] sm:$0x3] %v4756
    // Predicated region
    $region58: #{critic_forward.1} parent=1 // pred_check
      _
    $region59: #{critic_forward.1} parent=1 // pred_check_branch
      %4763 = sbr.rel (0) target = $region61
    $region60: #{critic_forward.1} parent=1 // pred_region
      %s4765 = ssub.s32 32, 32
      %4766 = vsyncadd [#allocation5], %s4765
      %s4768 = sshll.u32 [#allocation4], 4
      %s4769 = int_to_ptr.vmem [resolvable:$true] %s4768
      %4771 = dma.vmem_to_hbm [thread:$0]  %s4769, 32, %s14, [#allocation5]
    $region61: #{critic_forward.1} parent=1 // pred_fallthru
      _
    // Predicated region
    $region62: #{critic_forward.1} parent=1 // pred_check
      _
    $region63: #{critic_forward.1} parent=1 // pred_check_branch
      %4773 = sbr.rel (0) target = $region65
    $region64: #{critic_forward.1} parent=1 // pred_region
      %4774 = dma.done [#allocation5], 32
    $region65: #{critic_forward.1} parent=1 // pred_fallthru
      _
    %4775 = vsyncpa [#allocation5], 1

</llo_original>
